<compile_context>
chip_gen: v6e
topology: v6e:2x2x1
jax: 0.10.0
libtpu: 0.0.40
codegen_flags: <defaults>
</compile_context>

<pallas_src>
import math
import jax
import jax.numpy as jnp
from jax.experimental import pallas as pl
from jax.experimental.pallas import tpu as pltpu

# ---- small synthetic config (phobert-base scaled down; functional-test shapes) ----
B = 2              # batch
S = 8              # sequence length
H = 32             # hidden size
NH = 2             # attention heads
DH = H // NH       # head dim
I = 4 * H          # FFN intermediate
L = 4              # encoder layers (>=4 so "last 4 hidden states" are layer outputs)
VOCAB = 100
MAXPOS = 64
NUM_CLS = 6
NUM_REG = 30
HEAD_PAD = 128     # lane-dense packed head output width (6 + 30 + zero pad)
EPS = 1e-12

assert L >= 4, "CLS-concat of the last 4 hidden states assumes >=4 layers"


def _ln(x, g, b):
    """LayerNorm over the last axis, f32 math."""
    mu = jnp.mean(x, axis=-1, keepdims=True)
    var = jnp.mean(jnp.square(x - mu), axis=-1, keepdims=True)
    return (x - mu) * jax.lax.rsqrt(var + EPS) * g + b


# ---------------- fused kernel: L encoder layers + CLS-concat heads ----------------

def fused_bert_kernel(x0_ref, mask_ref,
                      wqkv_ref, bqkv_ref, wo_ref, bo_ref,
                      ln1g_ref, ln1b_ref, w1_ref, b1_ref,
                      w2_ref, b2_ref, ln2g_ref, ln2b_ref,
                      wh_ref, bh_ref, out_ref):
    # Post-embedding-LN activation, kept f32 across the whole network.
    x = x0_ref[...].reshape(B * S, H)

    # Additive attention mask, broadcast ONCE for all layers / heads.
    # Layout matches the (head-major, then batch) fold used below: n = h*B + b.
    mask3 = jnp.broadcast_to(mask_ref[...], (B, S, S))            # (B, S, S)
    mask_nb = jnp.concatenate([mask3] * NH, axis=0)               # (NH*B, S, S)

    scale = 1.0 / math.sqrt(DH)
    cls_rows = []

    for l in range(L):                     # static unroll; w_ref[l] is a static index
        xbf = x.astype(jnp.bfloat16)

        # --- fused QKV projection (bf16 MXU, f32 accumulate) ---
        qkv = jnp.dot(xbf, wqkv_ref[l],
                      preferred_element_type=jnp.float32) + bqkv_ref[l]   # (B*S, 3H)

        # --- fold (head, batch) into one leading batch dim: (NH*B, S, DH) ---
        # (lane slices are DH-wide; at real dims pre-permute wqkv so these are
        #  128-aligned — here they are negligible)
        q = jnp.concatenate(
            [qkv[:, h * DH:(h + 1) * DH].reshape(B, S, DH) for h in range(NH)], axis=0)
        k = jnp.concatenate(
            [qkv[:, H + h * DH:H + (h + 1) * DH].reshape(B, S, DH) for h in range(NH)], axis=0)
        v = jnp.concatenate(
            [qkv[:, 2 * H + h * DH:2 * H + (h + 1) * DH].reshape(B, S, DH) for h in range(NH)], axis=0)

        # --- batched scores + softmax (one einsum for all heads) ---
        s = jnp.einsum('nqd,nkd->nqk', q, k,
                       preferred_element_type=jnp.float32) * scale + mask_nb
        m = jnp.max(s, axis=-1, keepdims=True)
        e = jnp.exp(s - m)                                               # EUP
        p = e * pl.reciprocal(jnp.sum(e, axis=-1, keepdims=True), approx=True)

        # --- batched P@V, then ONE full-K output projection ---
        o = jnp.einsum('nqk,nkd->nqd', p, v,
                       preferred_element_type=jnp.float32)               # (NH*B, S, DH)
        ctx = jnp.concatenate(
            [o[h * B:(h + 1) * B].reshape(B * S, DH) for h in range(NH)], axis=-1)  # (B*S, H)
        attn = jnp.dot(ctx.astype(jnp.bfloat16), wo_ref[l],
                       preferred_element_type=jnp.float32) + bo_ref[l]

        # --- residual + post-attention LayerNorm (f32) ---
        h1 = _ln(attn + x, ln1g_ref[l], ln1b_ref[l])

        # --- FFN: Linear -> GELU -> Linear (bf16 matmuls, f32 elementwise) ---
        ff = jnp.dot(h1.astype(jnp.bfloat16), w1_ref[l],
                     preferred_element_type=jnp.float32) + b1_ref[l]
        # TODO(synk): HF BERT uses erf GELU; tanh approx (EUP-friendly) has a tiny delta.
        ff = jax.nn.gelu(ff)
        ff = jnp.dot(ff.astype(jnp.bfloat16), w2_ref[l],
                     preferred_element_type=jnp.float32) + b2_ref[l]
        x = _ln(ff + h1, ln2g_ref[l], ln2b_ref[l])                       # (B*S, H)

        cls_rows.append(x.reshape(B, S, H)[:, 0, :])                     # CLS of layer l

    # --- concat CLS of the last 4 layers in PyTorch cat order: [-1, -2, -3, -4] ---
    feats = jnp.concatenate(
        [cls_rows[L - 1], cls_rows[L - 2], cls_rows[L - 3], cls_rows[L - 4]], axis=-1)  # (B, 4H)

    # --- classifier + regressor as one packed lane-dense matmul ---
    head = jnp.dot(feats.astype(jnp.bfloat16), wh_ref[...],
                   preferred_element_type=jnp.float32) + bh_ref[...]     # (B, 128)
    lane = jax.lax.broadcasted_iota(jnp.int32, head.shape, 1)
    # sigmoid only on the classifier lanes; regressor lanes pass through.
    out_ref[...] = jnp.where(lane < NUM_CLS, jax.nn.sigmoid(head), head)


# ---------------- pallas_call wrapper ----------------

def _cost_estimate(args):
    rows = B * S
    per_layer = (2 * rows * H * 3 * H                   # fused QKV
                 + 4 * NH * B * S * S * DH              # scores + PV (head-batched)
                 + 2 * rows * H * H                     # output projection (full K)
                 + 4 * rows * H * I)                    # FFN
    flops = L * per_layer + 2 * B * (4 * H) * HEAD_PAD
    transcendentals = L * (NH * B * S * S + rows * I) + B * HEAD_PAD
    bytes_accessed = sum(int(a.size) * a.dtype.itemsize for a in args)
    bytes_accessed += B * HEAD_PAD * 4
    return pl.CostEstimate(flops=flops, transcendentals=transcendentals,
                           bytes_accessed=bytes_accessed)


def fused_bert_pallas(x0, add_mask, p):
    args = (x0, add_mask,
            p['wqkv'], p['bqkv'], p['wo'], p['bo'],
            p['ln1g'], p['ln1b'], p['w1'], p['b1'],
            p['w2'], p['b2'], p['ln2g'], p['ln2b'],
            p['w_head'], p['b_head'])

    # No grid: a single kernel invocation with all (tiny) operands whole-array
    # resident in VMEM — removes per-grid-step pipeline overhead entirely.
    return pl.pallas_call(
        fused_bert_kernel,
        out_shape=jax.ShapeDtypeStruct((B, HEAD_PAD), jnp.float32),
        compiler_params=pltpu.CompilerParams(
            # Tiny working set; explicit budget is safe on v5e/v6e/v7x.
            # At real dims: ~96 MiB on v5e/v6e, <= ~56 MiB on v7x (64 MiB physical).
            vmem_limit_bytes=32 * 1024 * 1024,
        ),
        cost_estimate=_cost_estimate(args),
    )(*args)


# ---------------- parameters ----------------

def init_params(key):
    keys = jax.random.split(key, 12)

    def dense(k, shape, scale=0.02):
        return scale * jax.random.normal(k, shape, jnp.float32)

    params = {
        'word_emb': dense(keys[0], (VOCAB, H)),
        'pos_emb': dense(keys[1], (MAXPOS, H)),
        'type_emb': dense(keys[2], (2, H)),
        'emb_ln_g': jnp.ones((1, H), jnp.float32),
        'emb_ln_b': jnp.zeros((1, H), jnp.float32),
        # per-layer weights stacked on a leading L axis; matmul weights in bf16
        'wqkv': dense(keys[3], (L, H, 3 * H)).astype(jnp.bfloat16),
        'bqkv': jnp.zeros((L, 1, 3 * H), jnp.float32),
        'wo': dense(keys[4], (L, H, H)).astype(jnp.bfloat16),
        'bo': jnp.zeros((L, 1, H), jnp.float32),
        'ln1g': jnp.ones((L, 1, H), jnp.float32),
        'ln1b': jnp.zeros((L, 1, H), jnp.float32),
        'w1': dense(keys[5], (L, H, I)).astype(jnp.bfloat16),
        'b1': jnp.zeros((L, 1, I), jnp.float32),
        'w2': dense(keys[6], (L, I, H)).astype(jnp.bfloat16),
        'b2': jnp.zeros((L, 1, H), jnp.float32),
        'ln2g': jnp.ones((L, 1, H), jnp.float32),
        'ln2b': jnp.zeros((L, 1, H), jnp.float32),
    }
    # lane-dense packed head: columns [0:6] classifier, [6:36] regressor, rest zero pad
    cls_w = dense(keys[7], (4 * H, NUM_CLS))
    reg_w = dense(keys[8], (4 * H, NUM_REG))
    w_head = jnp.zeros((4 * H, HEAD_PAD), jnp.float32)
    w_head = w_head.at[:, :NUM_CLS].set(cls_w)
    w_head = w_head.at[:, NUM_CLS:NUM_CLS + NUM_REG].set(reg_w)
    params['w_head'] = w_head.astype(jnp.bfloat16)
    params['b_head'] = jnp.zeros((1, HEAD_PAD), jnp.float32)
    return params


# ---------------- forward pass ----------------

def custom_bert_forward(params, input_ids, attention_mask):
    # Embedding gathers + embedding LayerNorm are glue (plain JAX; XLA fuses them).
    # Everything downstream runs in one fused Pallas call (L encoder layers,
    # CLS concat of the last 4 hidden states, classifier + regressor heads).
    pos_ids = jnp.arange(S)
    emb = (jnp.take(params['word_emb'], input_ids, axis=0)
           + params['pos_emb'][pos_ids][None, :, :]
           + params['type_emb'][0][None, None, :])   # token_type_ids == 0 (phobert)
    x0 = _ln(emb, params['emb_ln_g'][None], params['emb_ln_b'][None])   # (B, S, H)
    add_mask = ((1.0 - attention_mask.astype(jnp.float32)) * -1e9)[:, None, :]  # (B,1,S)
    # nn.Dropout(0.1) is identity at inference time.
    # TODO(synk): pooler / output_attentions are computed-but-unused in the original forward; skipped.

    head_out = fused_bert_pallas(x0, add_mask, params)          # (B, 128) lane-dense slab
    cls_out = head_out[:, :NUM_CLS]                             # sigmoid'd in-kernel
    reg_out = head_out[:, NUM_CLS:NUM_CLS + NUM_REG].reshape(-1, 6, 5)
    return cls_out, reg_out


if __name__ == "__main__":
    key = jax.random.PRNGKey(0)
    pkey, dkey = jax.random.split(key)
    params = init_params(pkey)

    input_ids = jax.random.randint(dkey, (B, S), 0, VOCAB, dtype=jnp.int32)
    attention_mask = jnp.ones((B, S), jnp.float32).at[1, S - 2:].set(0.0)  # pad last 2 of sample 1

    cls_out, reg_out = custom_bert_forward(params, input_ids, attention_mask)
    jax.block_until_ready((cls_out, reg_out))

    assert cls_out.shape == (B, NUM_CLS) and cls_out.dtype == jnp.float32
    assert reg_out.shape == (B, 6, 5) and reg_out.dtype == jnp.float32
    assert bool(jnp.all(jnp.isfinite(cls_out))) and bool(jnp.all(jnp.isfinite(reg_out)))
    assert bool(jnp.all((cls_out >= 0.0) & (cls_out <= 1.0)))
    print("KERNEL_OK")
</pallas_src>

<mosaic_0001>
module attributes {stable_mosaic.version = 11 : i64} {
  func.func @fused_bert_kernel(%arg0: memref<2x8x32xf32, #tpu.memory_space<vmem>>, %arg1: memref<2x1x8xf32, #tpu.memory_space<vmem>>, %arg2: memref<4x32x96xbf16, #tpu.memory_space<vmem>>, %arg3: memref<4x1x96xf32, #tpu.memory_space<vmem>>, %arg4: memref<4x32x32xbf16, #tpu.memory_space<vmem>>, %arg5: memref<4x1x32xf32, #tpu.memory_space<vmem>>, %arg6: memref<4x1x32xf32, #tpu.memory_space<vmem>>, %arg7: memref<4x1x32xf32, #tpu.memory_space<vmem>>, %arg8: memref<4x32x128xbf16, #tpu.memory_space<vmem>>, %arg9: memref<4x1x128xf32, #tpu.memory_space<vmem>>, %arg10: memref<4x128x32xbf16, #tpu.memory_space<vmem>>, %arg11: memref<4x1x32xf32, #tpu.memory_space<vmem>>, %arg12: memref<4x1x32xf32, #tpu.memory_space<vmem>>, %arg13: memref<4x1x32xf32, #tpu.memory_space<vmem>>, %arg14: memref<128x128xbf16, #tpu.memory_space<vmem>>, %arg15: memref<1x128xf32, #tpu.memory_space<vmem>>, %arg16: memref<2x128xf32, #tpu.memory_space<vmem>>) attributes {dimension_semantics = [], scalar_prefetch = 0 : i64, scratch_operands = 0 : i64, tpu.core_type = #tpu.core_type<tc>} {
    %c0 = arith.constant 0 : index
    %c0_0 = arith.constant 0 : index
    %c0_1 = arith.constant 0 : index
    %0 = vector.load %arg0[%c0, %c0_0, %c0_1] : memref<2x8x32xf32, #tpu.memory_space<vmem>>, vector<2x8x32xf32>
    %1 = vector.shape_cast %0 : vector<2x8x32xf32> to vector<16x32xf32>
    %c0_2 = arith.constant 0 : index
    %c0_3 = arith.constant 0 : index
    %c0_4 = arith.constant 0 : index
    %2 = vector.load %arg1[%c0_2, %c0_3, %c0_4] : memref<2x1x8xf32, #tpu.memory_space<vmem>>, vector<2x1x8xf32>
    %3 = vector.shape_cast %2 : vector<2x1x8xf32> to vector<2x1x8xf32>
    %4 = vector.broadcast %3 : vector<2x1x8xf32> to vector<2x8x8xf32>
    %5 = tpu.concatenate %4, %4 in 0 : vector<2x8x8xf32>, vector<2x8x8xf32> -> vector<4x8x8xf32>
    %6 = arith.truncf %1 : vector<16x32xf32> to vector<16x32xbf16>
    %c0_5 = arith.constant 0 : index
    %c0_6 = arith.constant 0 : index
    %c0_7 = arith.constant 0 : index
    %7 = vector.load %arg2[%c0_5, %c0_6, %c0_7] : memref<4x32x96xbf16, #tpu.memory_space<vmem>>, vector<1x32x96xbf16>
    %8 = vector.shape_cast %7 : vector<1x32x96xbf16> to vector<32x96xbf16>
    %cst = arith.constant dense<0.000000e+00> : vector<16x96xf32>
    %9 = tpu.matmul %6, %8, %cst {dimension_numbers = #tpu.dot_dimension_numbers<[1], [0], [0], [1], [0, 0, 1, 1], [], []>} : vector<16x32xbf16>, vector<32x96xbf16>, vector<16x96xf32> -> vector<16x96xf32>
    %c0_8 = arith.constant 0 : index
    %c0_9 = arith.constant 0 : index
    %c0_10 = arith.constant 0 : index
    %10 = vector.load %arg3[%c0_8, %c0_9, %c0_10] : memref<4x1x96xf32, #tpu.memory_space<vmem>>, vector<1x1x96xf32>
    %11 = vector.shape_cast %10 : vector<1x1x96xf32> to vector<1x96xf32>
    %12 = vector.broadcast %11 : vector<1x96xf32> to vector<16x96xf32>
    %13 = arith.addf %9, %12 : vector<16x96xf32>
    %14 = vector.extract_strided_slice %13 {offsets = [0, 0], sizes = [16, 16], strides = [1, 1]} : vector<16x96xf32> to vector<16x16xf32>
    %15 = vector.shape_cast %14 : vector<16x16xf32> to vector<2x8x16xf32>
    %16 = vector.extract_strided_slice %13 {offsets = [0, 16], sizes = [16, 16], strides = [1, 1]} : vector<16x96xf32> to vector<16x16xf32>
    %17 = vector.shape_cast %16 : vector<16x16xf32> to vector<2x8x16xf32>
    %18 = tpu.concatenate %15, %17 in 0 : vector<2x8x16xf32>, vector<2x8x16xf32> -> vector<4x8x16xf32>
    %19 = vector.extract_strided_slice %13 {offsets = [0, 32], sizes = [16, 16], strides = [1, 1]} : vector<16x96xf32> to vector<16x16xf32>
    %20 = vector.shape_cast %19 : vector<16x16xf32> to vector<2x8x16xf32>
    %21 = vector.extract_strided_slice %13 {offsets = [0, 48], sizes = [16, 16], strides = [1, 1]} : vector<16x96xf32> to vector<16x16xf32>
    %22 = vector.shape_cast %21 : vector<16x16xf32> to vector<2x8x16xf32>
    %23 = tpu.concatenate %20, %22 in 0 : vector<2x8x16xf32>, vector<2x8x16xf32> -> vector<4x8x16xf32>
    %24 = vector.extract_strided_slice %13 {offsets = [0, 64], sizes = [16, 16], strides = [1, 1]} : vector<16x96xf32> to vector<16x16xf32>
    %25 = vector.shape_cast %24 : vector<16x16xf32> to vector<2x8x16xf32>
    %26 = vector.extract_strided_slice %13 {offsets = [0, 80], sizes = [16, 16], strides = [1, 1]} : vector<16x96xf32> to vector<16x16xf32>
    %27 = vector.shape_cast %26 : vector<16x16xf32> to vector<2x8x16xf32>
    %28 = tpu.concatenate %25, %27 in 0 : vector<2x8x16xf32>, vector<2x8x16xf32> -> vector<4x8x16xf32>
    "tpu.trace_start"() <{level = 10 : i32, message = "nqd,nkd->nqk"}> : () -> ()
    %cst_11 = arith.constant dense<0.000000e+00> : vector<4x8x8xf32>
    %29 = tpu.matmul %18, %23, %cst_11 {dimension_numbers = #tpu.dot_dimension_numbers<[2], [2], [1], [1], [0, 0, 0, 1, 1, 1], [0], [0]>} : vector<4x8x16xf32>, vector<4x8x16xf32>, vector<4x8x8xf32> -> vector<4x8x8xf32>
    "tpu.trace_stop"() : () -> ()
    %cst_12 = arith.constant 2.500000e-01 : f32
    %30 = vector.broadcast %cst_12 : f32 to vector<4x8x8xf32>
    %31 = arith.mulf %29, %30 : vector<4x8x8xf32>
    %32 = arith.addf %31, %5 : vector<4x8x8xf32>
    %cst_13 = arith.constant dense<0xFF800000> : vector<4x8xf32>
    %33 = vector.multi_reduction <maximumf>, %32, %cst_13 [2] : vector<4x8x8xf32> to vector<4x8xf32>
    %34 = vector.shape_cast %33 : vector<4x8xf32> to vector<4x8x1xf32>
    %35 = vector.broadcast %34 : vector<4x8x1xf32> to vector<4x8x8xf32>
    %36 = arith.subf %32, %35 : vector<4x8x8xf32>
    %37 = math.exp %36 : vector<4x8x8xf32>
    %cst_14 = arith.constant dense<0.000000e+00> : vector<4x8xf32>
    %38 = vector.multi_reduction <add>, %37, %cst_14 [2] : vector<4x8x8xf32> to vector<4x8xf32>
    %39 = vector.shape_cast %38 : vector<4x8xf32> to vector<4x8x1xf32>
    %40 = tpu.reciprocal %39 {approx = true} : vector<4x8x1xf32> -> vector<4x8x1xf32>
    %41 = vector.broadcast %40 : vector<4x8x1xf32> to vector<4x8x8xf32>
    %42 = arith.mulf %37, %41 : vector<4x8x8xf32>
    "tpu.trace_start"() <{level = 10 : i32, message = "nqk,nkd->nqd"}> : () -> ()
    %cst_15 = arith.constant dense<0.000000e+00> : vector<4x8x16xf32>
    %43 = tpu.matmul %42, %28, %cst_15 {dimension_numbers = #tpu.dot_dimension_numbers<[2], [1], [1], [2], [0, 0, 0, 1, 1, 2], [0], [0]>} : vector<4x8x8xf32>, vector<4x8x16xf32>, vector<4x8x16xf32> -> vector<4x8x16xf32>
    "tpu.trace_stop"() : () -> ()
    %44 = vector.extract_strided_slice %43 {offsets = [0, 0, 0], sizes = [2, 8, 16], strides = [1, 1, 1]} : vector<4x8x16xf32> to vector<2x8x16xf32>
    %45 = vector.shape_cast %44 : vector<2x8x16xf32> to vector<16x16xf32>
    %46 = vector.extract_strided_slice %43 {offsets = [2, 0, 0], sizes = [2, 8, 16], strides = [1, 1, 1]} : vector<4x8x16xf32> to vector<2x8x16xf32>
    %47 = vector.shape_cast %46 : vector<2x8x16xf32> to vector<16x16xf32>
    %48 = tpu.concatenate %45, %47 in 1 : vector<16x16xf32>, vector<16x16xf32> -> vector<16x32xf32>
    %49 = arith.truncf %48 : vector<16x32xf32> to vector<16x32xbf16>
    %c0_16 = arith.constant 0 : index
    %c0_17 = arith.constant 0 : index
    %c0_18 = arith.constant 0 : index
    %50 = vector.load %arg4[%c0_16, %c0_17, %c0_18] : memref<4x32x32xbf16, #tpu.memory_space<vmem>>, vector<1x32x32xbf16>
    %51 = vector.shape_cast %50 : vector<1x32x32xbf16> to vector<32x32xbf16>
    %cst_19 = arith.constant dense<0.000000e+00> : vector<16x32xf32>
    %52 = tpu.matmul %49, %51, %cst_19 {dimension_numbers = #tpu.dot_dimension_numbers<[1], [0], [0], [1], [0, 0, 1, 1], [], []>} : vector<16x32xbf16>, vector<32x32xbf16>, vector<16x32xf32> -> vector<16x32xf32>
    %c0_20 = arith.constant 0 : index
    %c0_21 = arith.constant 0 : index
    %c0_22 = arith.constant 0 : index
    %53 = vector.load %arg5[%c0_20, %c0_21, %c0_22] : memref<4x1x32xf32, #tpu.memory_space<vmem>>, vector<1x1x32xf32>
    %54 = vector.shape_cast %53 : vector<1x1x32xf32> to vector<1x32xf32>
    %55 = vector.broadcast %54 : vector<1x32xf32> to vector<16x32xf32>
    %56 = arith.addf %52, %55 : vector<16x32xf32>
    %57 = arith.addf %56, %1 : vector<16x32xf32>
    %c0_23 = arith.constant 0 : index
    %c0_24 = arith.constant 0 : index
    %c0_25 = arith.constant 0 : index
    %58 = vector.load %arg6[%c0_23, %c0_24, %c0_25] : memref<4x1x32xf32, #tpu.memory_space<vmem>>, vector<1x1x32xf32>
    %59 = vector.shape_cast %58 : vector<1x1x32xf32> to vector<1x32xf32>
    %c0_26 = arith.constant 0 : index
    %c0_27 = arith.constant 0 : index
    %c0_28 = arith.constant 0 : index
    %60 = vector.load %arg7[%c0_26, %c0_27, %c0_28] : memref<4x1x32xf32, #tpu.memory_space<vmem>>, vector<1x1x32xf32>
    %61 = vector.shape_cast %60 : vector<1x1x32xf32> to vector<1x32xf32>
    %cst_29 = arith.constant dense<0.000000e+00> : vector<16xf32>
    %62 = vector.multi_reduction <add>, %57, %cst_29 [1] : vector<16x32xf32> to vector<16xf32>
    %63 = vector.shape_cast %62 : vector<16xf32> to vector<16x1xf32>
    %cst_30 = arith.constant 3.200000e+01 : f32
    %64 = vector.broadcast %cst_30 : f32 to vector<16x1xf32>
    %65 = arith.divf %63, %64 : vector<16x1xf32>
    %66 = vector.broadcast %65 : vector<16x1xf32> to vector<16x32xf32>
    %67 = arith.subf %57, %66 : vector<16x32xf32>
    %68 = arith.mulf %67, %67 : vector<16x32xf32>
    %cst_31 = arith.constant dense<0.000000e+00> : vector<16xf32>
    %69 = vector.multi_reduction <add>, %68, %cst_31 [1] : vector<16x32xf32> to vector<16xf32>
    %70 = vector.shape_cast %69 : vector<16xf32> to vector<16x1xf32>
    %cst_32 = arith.constant 3.200000e+01 : f32
    %71 = vector.broadcast %cst_32 : f32 to vector<16x1xf32>
    %72 = arith.divf %70, %71 : vector<16x1xf32>
    %73 = vector.broadcast %65 : vector<16x1xf32> to vector<16x32xf32>
    %74 = arith.subf %57, %73 : vector<16x32xf32>
    %cst_33 = arith.constant 9.99999996E-13 : f32
    %75 = vector.broadcast %cst_33 : f32 to vector<16x1xf32>
    %76 = arith.addf %72, %75 : vector<16x1xf32>
    %77 = math.rsqrt %76 : vector<16x1xf32>
    %78 = vector.broadcast %77 : vector<16x1xf32> to vector<16x32xf32>
    %79 = arith.mulf %74, %78 : vector<16x32xf32>
    %80 = vector.broadcast %59 : vector<1x32xf32> to vector<16x32xf32>
    %81 = arith.mulf %79, %80 : vector<16x32xf32>
    %82 = vector.broadcast %61 : vector<1x32xf32> to vector<16x32xf32>
    %83 = arith.addf %81, %82 : vector<16x32xf32>
    %84 = arith.truncf %83 : vector<16x32xf32> to vector<16x32xbf16>
    %c0_34 = arith.constant 0 : index
    %c0_35 = arith.constant 0 : index
    %c0_36 = arith.constant 0 : index
    %85 = vector.load %arg8[%c0_34, %c0_35, %c0_36] : memref<4x32x128xbf16, #tpu.memory_space<vmem>>, vector<1x32x128xbf16>
    %86 = vector.shape_cast %85 : vector<1x32x128xbf16> to vector<32x128xbf16>
    %cst_37 = arith.constant dense<0.000000e+00> : vector<16x128xf32>
    %87 = tpu.matmul %84, %86, %cst_37 {dimension_numbers = #tpu.dot_dimension_numbers<[1], [0], [0], [1], [0, 0, 1, 1], [], []>} : vector<16x32xbf16>, vector<32x128xbf16>, vector<16x128xf32> -> vector<16x128xf32>
    %c0_38 = arith.constant 0 : index
    %c0_39 = arith.constant 0 : index
    %c0_40 = arith.constant 0 : index
    %88 = vector.load %arg9[%c0_38, %c0_39, %c0_40] : memref<4x1x128xf32, #tpu.memory_space<vmem>>, vector<1x1x128xf32>
    %89 = vector.shape_cast %88 : vector<1x1x128xf32> to vector<1x128xf32>
    %90 = vector.broadcast %89 : vector<1x128xf32> to vector<16x128xf32>
    %91 = arith.addf %87, %90 : vector<16x128xf32>
    %92 = arith.mulf %91, %91 : vector<16x128xf32>
    %93 = arith.mulf %91, %92 : vector<16x128xf32>
    %cst_41 = arith.constant 4.471500e-02 : f32
    %94 = vector.broadcast %cst_41 : f32 to vector<16x128xf32>
    %95 = arith.mulf %94, %93 : vector<16x128xf32>
    %96 = arith.addf %91, %95 : vector<16x128xf32>
    %cst_42 = arith.constant 0.797884583 : f32
    %97 = vector.broadcast %cst_42 : f32 to vector<16x128xf32>
    %98 = arith.mulf %97, %96 : vector<16x128xf32>
    %99 = math.tanh %98 : vector<16x128xf32>
    %cst_43 = arith.constant 1.000000e+00 : f32
    %100 = vector.broadcast %cst_43 : f32 to vector<16x128xf32>
    %101 = arith.addf %100, %99 : vector<16x128xf32>
    %cst_44 = arith.constant 5.000000e-01 : f32
    %102 = vector.broadcast %cst_44 : f32 to vector<16x128xf32>
    %103 = arith.mulf %102, %101 : vector<16x128xf32>
    %104 = arith.mulf %91, %103 : vector<16x128xf32>
    %105 = arith.truncf %104 : vector<16x128xf32> to vector<16x128xbf16>
    %c0_45 = arith.constant 0 : index
    %c0_46 = arith.constant 0 : index
    %c0_47 = arith.constant 0 : index
    %106 = vector.load %arg10[%c0_45, %c0_46, %c0_47] : memref<4x128x32xbf16, #tpu.memory_space<vmem>>, vector<1x128x32xbf16>
    %107 = vector.shape_cast %106 : vector<1x128x32xbf16> to vector<128x32xbf16>
    %cst_48 = arith.constant dense<0.000000e+00> : vector<16x32xf32>
    %108 = tpu.matmul %105, %107, %cst_48 {dimension_numbers = #tpu.dot_dimension_numbers<[1], [0], [0], [1], [0, 0, 1, 1], [], []>} : vector<16x128xbf16>, vector<128x32xbf16>, vector<16x32xf32> -> vector<16x32xf32>
    %c0_49 = arith.constant 0 : index
    %c0_50 = arith.constant 0 : index
    %c0_51 = arith.constant 0 : index
    %109 = vector.load %arg11[%c0_49, %c0_50, %c0_51] : memref<4x1x32xf32, #tpu.memory_space<vmem>>, vector<1x1x32xf32>
    %110 = vector.shape_cast %109 : vector<1x1x32xf32> to vector<1x32xf32>
    %111 = vector.broadcast %110 : vector<1x32xf32> to vector<16x32xf32>
    %112 = arith.addf %108, %111 : vector<16x32xf32>
    %113 = arith.addf %112, %83 : vector<16x32xf32>
    %c0_52 = arith.constant 0 : index
    %c0_53 = arith.constant 0 : index
    %c0_54 = arith.constant 0 : index
    %114 = vector.load %arg12[%c0_52, %c0_53, %c0_54] : memref<4x1x32xf32, #tpu.memory_space<vmem>>, vector<1x1x32xf32>
    %115 = vector.shape_cast %114 : vector<1x1x32xf32> to vector<1x32xf32>
    %c0_55 = arith.constant 0 : index
    %c0_56 = arith.constant 0 : index
    %c0_57 = arith.constant 0 : index
    %116 = vector.load %arg13[%c0_55, %c0_56, %c0_57] : memref<4x1x32xf32, #tpu.memory_space<vmem>>, vector<1x1x32xf32>
    %117 = vector.shape_cast %116 : vector<1x1x32xf32> to vector<1x32xf32>
    %cst_58 = arith.constant dense<0.000000e+00> : vector<16xf32>
    %118 = vector.multi_reduction <add>, %113, %cst_58 [1] : vector<16x32xf32> to vector<16xf32>
    %119 = vector.shape_cast %118 : vector<16xf32> to vector<16x1xf32>
    %cst_59 = arith.constant 3.200000e+01 : f32
    %120 = vector.broadcast %cst_59 : f32 to vector<16x1xf32>
    %121 = arith.divf %119, %120 : vector<16x1xf32>
    %122 = vector.broadcast %121 : vector<16x1xf32> to vector<16x32xf32>
    %123 = arith.subf %113, %122 : vector<16x32xf32>
    %124 = arith.mulf %123, %123 : vector<16x32xf32>
    %cst_60 = arith.constant dense<0.000000e+00> : vector<16xf32>
    %125 = vector.multi_reduction <add>, %124, %cst_60 [1] : vector<16x32xf32> to vector<16xf32>
    %126 = vector.shape_cast %125 : vector<16xf32> to vector<16x1xf32>
    %cst_61 = arith.constant 3.200000e+01 : f32
    %127 = vector.broadcast %cst_61 : f32 to vector<16x1xf32>
    %128 = arith.divf %126, %127 : vector<16x1xf32>
    %129 = vector.broadcast %121 : vector<16x1xf32> to vector<16x32xf32>
    %130 = arith.subf %113, %129 : vector<16x32xf32>
    %cst_62 = arith.constant 9.99999996E-13 : f32
    %131 = vector.broadcast %cst_62 : f32 to vector<16x1xf32>
    %132 = arith.addf %128, %131 : vector<16x1xf32>
    %133 = math.rsqrt %132 : vector<16x1xf32>
    %134 = vector.broadcast %133 : vector<16x1xf32> to vector<16x32xf32>
    %135 = arith.mulf %130, %134 : vector<16x32xf32>
    %136 = vector.broadcast %115 : vector<1x32xf32> to vector<16x32xf32>
    %137 = arith.mulf %135, %136 : vector<16x32xf32>
    %138 = vector.broadcast %117 : vector<1x32xf32> to vector<16x32xf32>
    %139 = arith.addf %137, %138 : vector<16x32xf32>
    %140 = vector.shape_cast %139 : vector<16x32xf32> to vector<2x8x32xf32>
    %141 = vector.extract_strided_slice %140 {offsets = [0, 0, 0], sizes = [2, 1, 32], strides = [1, 1, 1]} : vector<2x8x32xf32> to vector<2x1x32xf32>
    %142 = vector.shape_cast %141 : vector<2x1x32xf32> to vector<2x32xf32>
    %143 = arith.truncf %139 : vector<16x32xf32> to vector<16x32xbf16>
    %c1 = arith.constant 1 : index
    %c0_63 = arith.constant 0 : index
    %c0_64 = arith.constant 0 : index
    %144 = vector.load %arg2[%c1, %c0_63, %c0_64] : memref<4x32x96xbf16, #tpu.memory_space<vmem>>, vector<1x32x96xbf16>
    %145 = vector.shape_cast %144 : vector<1x32x96xbf16> to vector<32x96xbf16>
    %cst_65 = arith.constant dense<0.000000e+00> : vector<16x96xf32>
    %146 = tpu.matmul %143, %145, %cst_65 {dimension_numbers = #tpu.dot_dimension_numbers<[1], [0], [0], [1], [0, 0, 1, 1], [], []>} : vector<16x32xbf16>, vector<32x96xbf16>, vector<16x96xf32> -> vector<16x96xf32>
    %c1_66 = arith.constant 1 : index
    %c0_67 = arith.constant 0 : index
    %c0_68 = arith.constant 0 : index
    %147 = vector.load %arg3[%c1_66, %c0_67, %c0_68] : memref<4x1x96xf32, #tpu.memory_space<vmem>>, vector<1x1x96xf32>
    %148 = vector.shape_cast %147 : vector<1x1x96xf32> to vector<1x96xf32>
    %149 = vector.broadcast %148 : vector<1x96xf32> to vector<16x96xf32>
    %150 = arith.addf %146, %149 : vector<16x96xf32>
    %151 = vector.extract_strided_slice %150 {offsets = [0, 0], sizes = [16, 16], strides = [1, 1]} : vector<16x96xf32> to vector<16x16xf32>
    %152 = vector.shape_cast %151 : vector<16x16xf32> to vector<2x8x16xf32>
    %153 = vector.extract_strided_slice %150 {offsets = [0, 16], sizes = [16, 16], strides = [1, 1]} : vector<16x96xf32> to vector<16x16xf32>
    %154 = vector.shape_cast %153 : vector<16x16xf32> to vector<2x8x16xf32>
    %155 = tpu.concatenate %152, %154 in 0 : vector<2x8x16xf32>, vector<2x8x16xf32> -> vector<4x8x16xf32>
    %156 = vector.extract_strided_slice %150 {offsets = [0, 32], sizes = [16, 16], strides = [1, 1]} : vector<16x96xf32> to vector<16x16xf32>
    %157 = vector.shape_cast %156 : vector<16x16xf32> to vector<2x8x16xf32>
    %158 = vector.extract_strided_slice %150 {offsets = [0, 48], sizes = [16, 16], strides = [1, 1]} : vector<16x96xf32> to vector<16x16xf32>
    %159 = vector.shape_cast %158 : vector<16x16xf32> to vector<2x8x16xf32>
    %160 = tpu.concatenate %157, %159 in 0 : vector<2x8x16xf32>, vector<2x8x16xf32> -> vector<4x8x16xf32>
    %161 = vector.extract_strided_slice %150 {offsets = [0, 64], sizes = [16, 16], strides = [1, 1]} : vector<16x96xf32> to vector<16x16xf32>
    %162 = vector.shape_cast %161 : vector<16x16xf32> to vector<2x8x16xf32>
    %163 = vector.extract_strided_slice %150 {offsets = [0, 80], sizes = [16, 16], strides = [1, 1]} : vector<16x96xf32> to vector<16x16xf32>
    %164 = vector.shape_cast %163 : vector<16x16xf32> to vector<2x8x16xf32>
    %165 = tpu.concatenate %162, %164 in 0 : vector<2x8x16xf32>, vector<2x8x16xf32> -> vector<4x8x16xf32>
    "tpu.trace_start"() <{level = 10 : i32, message = "nqd,nkd->nqk"}> : () -> ()
    %cst_69 = arith.constant dense<0.000000e+00> : vector<4x8x8xf32>
    %166 = tpu.matmul %155, %160, %cst_69 {dimension_numbers = #tpu.dot_dimension_numbers<[2], [2], [1], [1], [0, 0, 0, 1, 1, 1], [0], [0]>} : vector<4x8x16xf32>, vector<4x8x16xf32>, vector<4x8x8xf32> -> vector<4x8x8xf32>
    "tpu.trace_stop"() : () -> ()
    %cst_70 = arith.constant 2.500000e-01 : f32
    %167 = vector.broadcast %cst_70 : f32 to vector<4x8x8xf32>
    %168 = arith.mulf %166, %167 : vector<4x8x8xf32>
    %169 = arith.addf %168, %5 : vector<4x8x8xf32>
    %cst_71 = arith.constant dense<0xFF800000> : vector<4x8xf32>
    %170 = vector.multi_reduction <maximumf>, %169, %cst_71 [2] : vector<4x8x8xf32> to vector<4x8xf32>
    %171 = vector.shape_cast %170 : vector<4x8xf32> to vector<4x8x1xf32>
    %172 = vector.broadcast %171 : vector<4x8x1xf32> to vector<4x8x8xf32>
    %173 = arith.subf %169, %172 : vector<4x8x8xf32>
    %174 = math.exp %173 : vector<4x8x8xf32>
    %cst_72 = arith.constant dense<0.000000e+00> : vector<4x8xf32>
    %175 = vector.multi_reduction <add>, %174, %cst_72 [2] : vector<4x8x8xf32> to vector<4x8xf32>
    %176 = vector.shape_cast %175 : vector<4x8xf32> to vector<4x8x1xf32>
    %177 = tpu.reciprocal %176 {approx = true} : vector<4x8x1xf32> -> vector<4x8x1xf32>
    %178 = vector.broadcast %177 : vector<4x8x1xf32> to vector<4x8x8xf32>
    %179 = arith.mulf %174, %178 : vector<4x8x8xf32>
    "tpu.trace_start"() <{level = 10 : i32, message = "nqk,nkd->nqd"}> : () -> ()
    %cst_73 = arith.constant dense<0.000000e+00> : vector<4x8x16xf32>
    %180 = tpu.matmul %179, %165, %cst_73 {dimension_numbers = #tpu.dot_dimension_numbers<[2], [1], [1], [2], [0, 0, 0, 1, 1, 2], [0], [0]>} : vector<4x8x8xf32>, vector<4x8x16xf32>, vector<4x8x16xf32> -> vector<4x8x16xf32>
    "tpu.trace_stop"() : () -> ()
    %181 = vector.extract_strided_slice %180 {offsets = [0, 0, 0], sizes = [2, 8, 16], strides = [1, 1, 1]} : vector<4x8x16xf32> to vector<2x8x16xf32>
    %182 = vector.shape_cast %181 : vector<2x8x16xf32> to vector<16x16xf32>
    %183 = vector.extract_strided_slice %180 {offsets = [2, 0, 0], sizes = [2, 8, 16], strides = [1, 1, 1]} : vector<4x8x16xf32> to vector<2x8x16xf32>
    %184 = vector.shape_cast %183 : vector<2x8x16xf32> to vector<16x16xf32>
    %185 = tpu.concatenate %182, %184 in 1 : vector<16x16xf32>, vector<16x16xf32> -> vector<16x32xf32>
    %186 = arith.truncf %185 : vector<16x32xf32> to vector<16x32xbf16>
    %c1_74 = arith.constant 1 : index
    %c0_75 = arith.constant 0 : index
    %c0_76 = arith.constant 0 : index
    %187 = vector.load %arg4[%c1_74, %c0_75, %c0_76] : memref<4x32x32xbf16, #tpu.memory_space<vmem>>, vector<1x32x32xbf16>
    %188 = vector.shape_cast %187 : vector<1x32x32xbf16> to vector<32x32xbf16>
    %cst_77 = arith.constant dense<0.000000e+00> : vector<16x32xf32>
    %189 = tpu.matmul %186, %188, %cst_77 {dimension_numbers = #tpu.dot_dimension_numbers<[1], [0], [0], [1], [0, 0, 1, 1], [], []>} : vector<16x32xbf16>, vector<32x32xbf16>, vector<16x32xf32> -> vector<16x32xf32>
    %c1_78 = arith.constant 1 : index
    %c0_79 = arith.constant 0 : index
    %c0_80 = arith.constant 0 : index
    %190 = vector.load %arg5[%c1_78, %c0_79, %c0_80] : memref<4x1x32xf32, #tpu.memory_space<vmem>>, vector<1x1x32xf32>
    %191 = vector.shape_cast %190 : vector<1x1x32xf32> to vector<1x32xf32>
    %192 = vector.broadcast %191 : vector<1x32xf32> to vector<16x32xf32>
    %193 = arith.addf %189, %192 : vector<16x32xf32>
    %194 = arith.addf %193, %139 : vector<16x32xf32>
    %c1_81 = arith.constant 1 : index
    %c0_82 = arith.constant 0 : index
    %c0_83 = arith.constant 0 : index
    %195 = vector.load %arg6[%c1_81, %c0_82, %c0_83] : memref<4x1x32xf32, #tpu.memory_space<vmem>>, vector<1x1x32xf32>
    %196 = vector.shape_cast %195 : vector<1x1x32xf32> to vector<1x32xf32>
    %c1_84 = arith.constant 1 : index
    %c0_85 = arith.constant 0 : index
    %c0_86 = arith.constant 0 : index
    %197 = vector.load %arg7[%c1_84, %c0_85, %c0_86] : memref<4x1x32xf32, #tpu.memory_space<vmem>>, vector<1x1x32xf32>
    %198 = vector.shape_cast %197 : vector<1x1x32xf32> to vector<1x32xf32>
    %cst_87 = arith.constant dense<0.000000e+00> : vector<16xf32>
    %199 = vector.multi_reduction <add>, %194, %cst_87 [1] : vector<16x32xf32> to vector<16xf32>
    %200 = vector.shape_cast %199 : vector<16xf32> to vector<16x1xf32>
    %cst_88 = arith.constant 3.200000e+01 : f32
    %201 = vector.broadcast %cst_88 : f32 to vector<16x1xf32>
    %202 = arith.divf %200, %201 : vector<16x1xf32>
    %203 = vector.broadcast %202 : vector<16x1xf32> to vector<16x32xf32>
    %204 = arith.subf %194, %203 : vector<16x32xf32>
    %205 = arith.mulf %204, %204 : vector<16x32xf32>
    %cst_89 = arith.constant dense<0.000000e+00> : vector<16xf32>
    %206 = vector.multi_reduction <add>, %205, %cst_89 [1] : vector<16x32xf32> to vector<16xf32>
    %207 = vector.shape_cast %206 : vector<16xf32> to vector<16x1xf32>
    %cst_90 = arith.constant 3.200000e+01 : f32
    %208 = vector.broadcast %cst_90 : f32 to vector<16x1xf32>
    %209 = arith.divf %207, %208 : vector<16x1xf32>
    %210 = vector.broadcast %202 : vector<16x1xf32> to vector<16x32xf32>
    %211 = arith.subf %194, %210 : vector<16x32xf32>
    %cst_91 = arith.constant 9.99999996E-13 : f32
    %212 = vector.broadcast %cst_91 : f32 to vector<16x1xf32>
    %213 = arith.addf %209, %212 : vector<16x1xf32>
    %214 = math.rsqrt %213 : vector<16x1xf32>
    %215 = vector.broadcast %214 : vector<16x1xf32> to vector<16x32xf32>
    %216 = arith.mulf %211, %215 : vector<16x32xf32>
    %217 = vector.broadcast %196 : vector<1x32xf32> to vector<16x32xf32>
    %218 = arith.mulf %216, %217 : vector<16x32xf32>
    %219 = vector.broadcast %198 : vector<1x32xf32> to vector<16x32xf32>
    %220 = arith.addf %218, %219 : vector<16x32xf32>
    %221 = arith.truncf %220 : vector<16x32xf32> to vector<16x32xbf16>
    %c1_92 = arith.constant 1 : index
    %c0_93 = arith.constant 0 : index
    %c0_94 = arith.constant 0 : index
    %222 = vector.load %arg8[%c1_92, %c0_93, %c0_94] : memref<4x32x128xbf16, #tpu.memory_space<vmem>>, vector<1x32x128xbf16>
    %223 = vector.shape_cast %222 : vector<1x32x128xbf16> to vector<32x128xbf16>
    %cst_95 = arith.constant dense<0.000000e+00> : vector<16x128xf32>
    %224 = tpu.matmul %221, %223, %cst_95 {dimension_numbers = #tpu.dot_dimension_numbers<[1], [0], [0], [1], [0, 0, 1, 1], [], []>} : vector<16x32xbf16>, vector<32x128xbf16>, vector<16x128xf32> -> vector<16x128xf32>
    %c1_96 = arith.constant 1 : index
    %c0_97 = arith.constant 0 : index
    %c0_98 = arith.constant 0 : index
    %225 = vector.load %arg9[%c1_96, %c0_97, %c0_98] : memref<4x1x128xf32, #tpu.memory_space<vmem>>, vector<1x1x128xf32>
    %226 = vector.shape_cast %225 : vector<1x1x128xf32> to vector<1x128xf32>
    %227 = vector.broadcast %226 : vector<1x128xf32> to vector<16x128xf32>
    %228 = arith.addf %224, %227 : vector<16x128xf32>
    %229 = arith.mulf %228, %228 : vector<16x128xf32>
    %230 = arith.mulf %228, %229 : vector<16x128xf32>
    %cst_99 = arith.constant 4.471500e-02 : f32
    %231 = vector.broadcast %cst_99 : f32 to vector<16x128xf32>
    %232 = arith.mulf %231, %230 : vector<16x128xf32>
    %233 = arith.addf %228, %232 : vector<16x128xf32>
    %cst_100 = arith.constant 0.797884583 : f32
    %234 = vector.broadcast %cst_100 : f32 to vector<16x128xf32>
    %235 = arith.mulf %234, %233 : vector<16x128xf32>
    %236 = math.tanh %235 : vector<16x128xf32>
    %cst_101 = arith.constant 1.000000e+00 : f32
    %237 = vector.broadcast %cst_101 : f32 to vector<16x128xf32>
    %238 = arith.addf %237, %236 : vector<16x128xf32>
    %cst_102 = arith.constant 5.000000e-01 : f32
    %239 = vector.broadcast %cst_102 : f32 to vector<16x128xf32>
    %240 = arith.mulf %239, %238 : vector<16x128xf32>
    %241 = arith.mulf %228, %240 : vector<16x128xf32>
    %242 = arith.truncf %241 : vector<16x128xf32> to vector<16x128xbf16>
    %c1_103 = arith.constant 1 : index
    %c0_104 = arith.constant 0 : index
    %c0_105 = arith.constant 0 : index
    %243 = vector.load %arg10[%c1_103, %c0_104, %c0_105] : memref<4x128x32xbf16, #tpu.memory_space<vmem>>, vector<1x128x32xbf16>
    %244 = vector.shape_cast %243 : vector<1x128x32xbf16> to vector<128x32xbf16>
    %cst_106 = arith.constant dense<0.000000e+00> : vector<16x32xf32>
    %245 = tpu.matmul %242, %244, %cst_106 {dimension_numbers = #tpu.dot_dimension_numbers<[1], [0], [0], [1], [0, 0, 1, 1], [], []>} : vector<16x128xbf16>, vector<128x32xbf16>, vector<16x32xf32> -> vector<16x32xf32>
    %c1_107 = arith.constant 1 : index
    %c0_108 = arith.constant 0 : index
    %c0_109 = arith.constant 0 : index
    %246 = vector.load %arg11[%c1_107, %c0_108, %c0_109] : memref<4x1x32xf32, #tpu.memory_space<vmem>>, vector<1x1x32xf32>
    %247 = vector.shape_cast %246 : vector<1x1x32xf32> to vector<1x32xf32>
    %248 = vector.broadcast %247 : vector<1x32xf32> to vector<16x32xf32>
    %249 = arith.addf %245, %248 : vector<16x32xf32>
    %250 = arith.addf %249, %220 : vector<16x32xf32>
    %c1_110 = arith.constant 1 : index
    %c0_111 = arith.constant 0 : index
    %c0_112 = arith.constant 0 : index
    %251 = vector.load %arg12[%c1_110, %c0_111, %c0_112] : memref<4x1x32xf32, #tpu.memory_space<vmem>>, vector<1x1x32xf32>
    %252 = vector.shape_cast %251 : vector<1x1x32xf32> to vector<1x32xf32>
    %c1_113 = arith.constant 1 : index
    %c0_114 = arith.constant 0 : index
    %c0_115 = arith.constant 0 : index
    %253 = vector.load %arg13[%c1_113, %c0_114, %c0_115] : memref<4x1x32xf32, #tpu.memory_space<vmem>>, vector<1x1x32xf32>
    %254 = vector.shape_cast %253 : vector<1x1x32xf32> to vector<1x32xf32>
    %cst_116 = arith.constant dense<0.000000e+00> : vector<16xf32>
    %255 = vector.multi_reduction <add>, %250, %cst_116 [1] : vector<16x32xf32> to vector<16xf32>
    %256 = vector.shape_cast %255 : vector<16xf32> to vector<16x1xf32>
    %cst_117 = arith.constant 3.200000e+01 : f32
    %257 = vector.broadcast %cst_117 : f32 to vector<16x1xf32>
    %258 = arith.divf %256, %257 : vector<16x1xf32>
    %259 = vector.broadcast %258 : vector<16x1xf32> to vector<16x32xf32>
    %260 = arith.subf %250, %259 : vector<16x32xf32>
    %261 = arith.mulf %260, %260 : vector<16x32xf32>
    %cst_118 = arith.constant dense<0.000000e+00> : vector<16xf32>
    %262 = vector.multi_reduction <add>, %261, %cst_118 [1] : vector<16x32xf32> to vector<16xf32>
    %263 = vector.shape_cast %262 : vector<16xf32> to vector<16x1xf32>
    %cst_119 = arith.constant 3.200000e+01 : f32
    %264 = vector.broadcast %cst_119 : f32 to vector<16x1xf32>
    %265 = arith.divf %263, %264 : vector<16x1xf32>
    %266 = vector.broadcast %258 : vector<16x1xf32> to vector<16x32xf32>
    %267 = arith.subf %250, %266 : vector<16x32xf32>
    %cst_120 = arith.constant 9.99999996E-13 : f32
    %268 = vector.broadcast %cst_120 : f32 to vector<16x1xf32>
    %269 = arith.addf %265, %268 : vector<16x1xf32>
    %270 = math.rsqrt %269 : vector<16x1xf32>
    %271 = vector.broadcast %270 : vector<16x1xf32> to vector<16x32xf32>
    %272 = arith.mulf %267, %271 : vector<16x32xf32>
    %273 = vector.broadcast %252 : vector<1x32xf32> to vector<16x32xf32>
    %274 = arith.mulf %272, %273 : vector<16x32xf32>
    %275 = vector.broadcast %254 : vector<1x32xf32> to vector<16x32xf32>
    %276 = arith.addf %274, %275 : vector<16x32xf32>
    %277 = vector.shape_cast %276 : vector<16x32xf32> to vector<2x8x32xf32>
    %278 = vector.extract_strided_slice %277 {offsets = [0, 0, 0], sizes = [2, 1, 32], strides = [1, 1, 1]} : vector<2x8x32xf32> to vector<2x1x32xf32>
    %279 = vector.shape_cast %278 : vector<2x1x32xf32> to vector<2x32xf32>
    %280 = arith.truncf %276 : vector<16x32xf32> to vector<16x32xbf16>
    %c2 = arith.constant 2 : index
    %c0_121 = arith.constant 0 : index
    %c0_122 = arith.constant 0 : index
    %281 = vector.load %arg2[%c2, %c0_121, %c0_122] : memref<4x32x96xbf16, #tpu.memory_space<vmem>>, vector<1x32x96xbf16>
    %282 = vector.shape_cast %281 : vector<1x32x96xbf16> to vector<32x96xbf16>
    %cst_123 = arith.constant dense<0.000000e+00> : vector<16x96xf32>
    %283 = tpu.matmul %280, %282, %cst_123 {dimension_numbers = #tpu.dot_dimension_numbers<[1], [0], [0], [1], [0, 0, 1, 1], [], []>} : vector<16x32xbf16>, vector<32x96xbf16>, vector<16x96xf32> -> vector<16x96xf32>
    %c2_124 = arith.constant 2 : index
    %c0_125 = arith.constant 0 : index
    %c0_126 = arith.constant 0 : index
    %284 = vector.load %arg3[%c2_124, %c0_125, %c0_126] : memref<4x1x96xf32, #tpu.memory_space<vmem>>, vector<1x1x96xf32>
    %285 = vector.shape_cast %284 : vector<1x1x96xf32> to vector<1x96xf32>
    %286 = vector.broadcast %285 : vector<1x96xf32> to vector<16x96xf32>
    %287 = arith.addf %283, %286 : vector<16x96xf32>
    %288 = vector.extract_strided_slice %287 {offsets = [0, 0], sizes = [16, 16], strides = [1, 1]} : vector<16x96xf32> to vector<16x16xf32>
    %289 = vector.shape_cast %288 : vector<16x16xf32> to vector<2x8x16xf32>
    %290 = vector.extract_strided_slice %287 {offsets = [0, 16], sizes = [16, 16], strides = [1, 1]} : vector<16x96xf32> to vector<16x16xf32>
    %291 = vector.shape_cast %290 : vector<16x16xf32> to vector<2x8x16xf32>
    %292 = tpu.concatenate %289, %291 in 0 : vector<2x8x16xf32>, vector<2x8x16xf32> -> vector<4x8x16xf32>
    %293 = vector.extract_strided_slice %287 {offsets = [0, 32], sizes = [16, 16], strides = [1, 1]} : vector<16x96xf32> to vector<16x16xf32>
    %294 = vector.shape_cast %293 : vector<16x16xf32> to vector<2x8x16xf32>
    %295 = vector.extract_strided_slice %287 {offsets = [0, 48], sizes = [16, 16], strides = [1, 1]} : vector<16x96xf32> to vector<16x16xf32>
    %296 = vector.shape_cast %295 : vector<16x16xf32> to vector<2x8x16xf32>
    %297 = tpu.concatenate %294, %296 in 0 : vector<2x8x16xf32>, vector<2x8x16xf32> -> vector<4x8x16xf32>
    %298 = vector.extract_strided_slice %287 {offsets = [0, 64], sizes = [16, 16], strides = [1, 1]} : vector<16x96xf32> to vector<16x16xf32>
    %299 = vector.shape_cast %298 : vector<16x16xf32> to vector<2x8x16xf32>
    %300 = vector.extract_strided_slice %287 {offsets = [0, 80], sizes = [16, 16], strides = [1, 1]} : vector<16x96xf32> to vector<16x16xf32>
    %301 = vector.shape_cast %300 : vector<16x16xf32> to vector<2x8x16xf32>
    %302 = tpu.concatenate %299, %301 in 0 : vector<2x8x16xf32>, vector<2x8x16xf32> -> vector<4x8x16xf32>
    "tpu.trace_start"() <{level = 10 : i32, message = "nqd,nkd->nqk"}> : () -> ()
    %cst_127 = arith.constant dense<0.000000e+00> : vector<4x8x8xf32>
    %303 = tpu.matmul %292, %297, %cst_127 {dimension_numbers = #tpu.dot_dimension_numbers<[2], [2], [1], [1], [0, 0, 0, 1, 1, 1], [0], [0]>} : vector<4x8x16xf32>, vector<4x8x16xf32>, vector<4x8x8xf32> -> vector<4x8x8xf32>
    "tpu.trace_stop"() : () -> ()
    %cst_128 = arith.constant 2.500000e-01 : f32
    %304 = vector.broadcast %cst_128 : f32 to vector<4x8x8xf32>
    %305 = arith.mulf %303, %304 : vector<4x8x8xf32>
    %306 = arith.addf %305, %5 : vector<4x8x8xf32>
    %cst_129 = arith.constant dense<0xFF800000> : vector<4x8xf32>
    %307 = vector.multi_reduction <maximumf>, %306, %cst_129 [2] : vector<4x8x8xf32> to vector<4x8xf32>
    %308 = vector.shape_cast %307 : vector<4x8xf32> to vector<4x8x1xf32>
    %309 = vector.broadcast %308 : vector<4x8x1xf32> to vector<4x8x8xf32>
    %310 = arith.subf %306, %309 : vector<4x8x8xf32>
    %311 = math.exp %310 : vector<4x8x8xf32>
    %cst_130 = arith.constant dense<0.000000e+00> : vector<4x8xf32>
    %312 = vector.multi_reduction <add>, %311, %cst_130 [2] : vector<4x8x8xf32> to vector<4x8xf32>
    %313 = vector.shape_cast %312 : vector<4x8xf32> to vector<4x8x1xf32>
    %314 = tpu.reciprocal %313 {approx = true} : vector<4x8x1xf32> -> vector<4x8x1xf32>
    %315 = vector.broadcast %314 : vector<4x8x1xf32> to vector<4x8x8xf32>
    %316 = arith.mulf %311, %315 : vector<4x8x8xf32>
    "tpu.trace_start"() <{level = 10 : i32, message = "nqk,nkd->nqd"}> : () -> ()
    %cst_131 = arith.constant dense<0.000000e+00> : vector<4x8x16xf32>
    %317 = tpu.matmul %316, %302, %cst_131 {dimension_numbers = #tpu.dot_dimension_numbers<[2], [1], [1], [2], [0, 0, 0, 1, 1, 2], [0], [0]>} : vector<4x8x8xf32>, vector<4x8x16xf32>, vector<4x8x16xf32> -> vector<4x8x16xf32>
    "tpu.trace_stop"() : () -> ()
    %318 = vector.extract_strided_slice %317 {offsets = [0, 0, 0], sizes = [2, 8, 16], strides = [1, 1, 1]} : vector<4x8x16xf32> to vector<2x8x16xf32>
    %319 = vector.shape_cast %318 : vector<2x8x16xf32> to vector<16x16xf32>
    %320 = vector.extract_strided_slice %317 {offsets = [2, 0, 0], sizes = [2, 8, 16], strides = [1, 1, 1]} : vector<4x8x16xf32> to vector<2x8x16xf32>
    %321 = vector.shape_cast %320 : vector<2x8x16xf32> to vector<16x16xf32>
    %322 = tpu.concatenate %319, %321 in 1 : vector<16x16xf32>, vector<16x16xf32> -> vector<16x32xf32>
    %323 = arith.truncf %322 : vector<16x32xf32> to vector<16x32xbf16>
    %c2_132 = arith.constant 2 : index
    %c0_133 = arith.constant 0 : index
    %c0_134 = arith.constant 0 : index
    %324 = vector.load %arg4[%c2_132, %c0_133, %c0_134] : memref<4x32x32xbf16, #tpu.memory_space<vmem>>, vector<1x32x32xbf16>
    %325 = vector.shape_cast %324 : vector<1x32x32xbf16> to vector<32x32xbf16>
    %cst_135 = arith.constant dense<0.000000e+00> : vector<16x32xf32>
    %326 = tpu.matmul %323, %325, %cst_135 {dimension_numbers = #tpu.dot_dimension_numbers<[1], [0], [0], [1], [0, 0, 1, 1], [], []>} : vector<16x32xbf16>, vector<32x32xbf16>, vector<16x32xf32> -> vector<16x32xf32>
    %c2_136 = arith.constant 2 : index
    %c0_137 = arith.constant 0 : index
    %c0_138 = arith.constant 0 : index
    %327 = vector.load %arg5[%c2_136, %c0_137, %c0_138] : memref<4x1x32xf32, #tpu.memory_space<vmem>>, vector<1x1x32xf32>
    %328 = vector.shape_cast %327 : vector<1x1x32xf32> to vector<1x32xf32>
    %329 = vector.broadcast %328 : vector<1x32xf32> to vector<16x32xf32>
    %330 = arith.addf %326, %329 : vector<16x32xf32>
    %331 = arith.addf %330, %276 : vector<16x32xf32>
    %c2_139 = arith.constant 2 : index
    %c0_140 = arith.constant 0 : index
    %c0_141 = arith.constant 0 : index
    %332 = vector.load %arg6[%c2_139, %c0_140, %c0_141] : memref<4x1x32xf32, #tpu.memory_space<vmem>>, vector<1x1x32xf32>
    %333 = vector.shape_cast %332 : vector<1x1x32xf32> to vector<1x32xf32>
    %c2_142 = arith.constant 2 : index
    %c0_143 = arith.constant 0 : index
    %c0_144 = arith.constant 0 : index
    %334 = vector.load %arg7[%c2_142, %c0_143, %c0_144] : memref<4x1x32xf32, #tpu.memory_space<vmem>>, vector<1x1x32xf32>
    %335 = vector.shape_cast %334 : vector<1x1x32xf32> to vector<1x32xf32>
    %cst_145 = arith.constant dense<0.000000e+00> : vector<16xf32>
    %336 = vector.multi_reduction <add>, %331, %cst_145 [1] : vector<16x32xf32> to vector<16xf32>
    %337 = vector.shape_cast %336 : vector<16xf32> to vector<16x1xf32>
    %cst_146 = arith.constant 3.200000e+01 : f32
    %338 = vector.broadcast %cst_146 : f32 to vector<16x1xf32>
    %339 = arith.divf %337, %338 : vector<16x1xf32>
    %340 = vector.broadcast %339 : vector<16x1xf32> to vector<16x32xf32>
    %341 = arith.subf %331, %340 : vector<16x32xf32>
    %342 = arith.mulf %341, %341 : vector<16x32xf32>
    %cst_147 = arith.constant dense<0.000000e+00> : vector<16xf32>
    %343 = vector.multi_reduction <add>, %342, %cst_147 [1] : vector<16x32xf32> to vector<16xf32>
    %344 = vector.shape_cast %343 : vector<16xf32> to vector<16x1xf32>
    %cst_148 = arith.constant 3.200000e+01 : f32
    %345 = vector.broadcast %cst_148 : f32 to vector<16x1xf32>
    %346 = arith.divf %344, %345 : vector<16x1xf32>
    %347 = vector.broadcast %339 : vector<16x1xf32> to vector<16x32xf32>
    %348 = arith.subf %331, %347 : vector<16x32xf32>
    %cst_149 = arith.constant 9.99999996E-13 : f32
    %349 = vector.broadcast %cst_149 : f32 to vector<16x1xf32>
    %350 = arith.addf %346, %349 : vector<16x1xf32>
    %351 = math.rsqrt %350 : vector<16x1xf32>
    %352 = vector.broadcast %351 : vector<16x1xf32> to vector<16x32xf32>
    %353 = arith.mulf %348, %352 : vector<16x32xf32>
    %354 = vector.broadcast %333 : vector<1x32xf32> to vector<16x32xf32>
    %355 = arith.mulf %353, %354 : vector<16x32xf32>
    %356 = vector.broadcast %335 : vector<1x32xf32> to vector<16x32xf32>
    %357 = arith.addf %355, %356 : vector<16x32xf32>
    %358 = arith.truncf %357 : vector<16x32xf32> to vector<16x32xbf16>
    %c2_150 = arith.constant 2 : index
    %c0_151 = arith.constant 0 : index
    %c0_152 = arith.constant 0 : index
    %359 = vector.load %arg8[%c2_150, %c0_151, %c0_152] : memref<4x32x128xbf16, #tpu.memory_space<vmem>>, vector<1x32x128xbf16>
    %360 = vector.shape_cast %359 : vector<1x32x128xbf16> to vector<32x128xbf16>
    %cst_153 = arith.constant dense<0.000000e+00> : vector<16x128xf32>
    %361 = tpu.matmul %358, %360, %cst_153 {dimension_numbers = #tpu.dot_dimension_numbers<[1], [0], [0], [1], [0, 0, 1, 1], [], []>} : vector<16x32xbf16>, vector<32x128xbf16>, vector<16x128xf32> -> vector<16x128xf32>
    %c2_154 = arith.constant 2 : index
    %c0_155 = arith.constant 0 : index
    %c0_156 = arith.constant 0 : index
    %362 = vector.load %arg9[%c2_154, %c0_155, %c0_156] : memref<4x1x128xf32, #tpu.memory_space<vmem>>, vector<1x1x128xf32>
    %363 = vector.shape_cast %362 : vector<1x1x128xf32> to vector<1x128xf32>
    %364 = vector.broadcast %363 : vector<1x128xf32> to vector<16x128xf32>
    %365 = arith.addf %361, %364 : vector<16x128xf32>
    %366 = arith.mulf %365, %365 : vector<16x128xf32>
    %367 = arith.mulf %365, %366 : vector<16x128xf32>
    %cst_157 = arith.constant 4.471500e-02 : f32
    %368 = vector.broadcast %cst_157 : f32 to vector<16x128xf32>
    %369 = arith.mulf %368, %367 : vector<16x128xf32>
    %370 = arith.addf %365, %369 : vector<16x128xf32>
    %cst_158 = arith.constant 0.797884583 : f32
    %371 = vector.broadcast %cst_158 : f32 to vector<16x128xf32>
    %372 = arith.mulf %371, %370 : vector<16x128xf32>
    %373 = math.tanh %372 : vector<16x128xf32>
    %cst_159 = arith.constant 1.000000e+00 : f32
    %374 = vector.broadcast %cst_159 : f32 to vector<16x128xf32>
    %375 = arith.addf %374, %373 : vector<16x128xf32>
    %cst_160 = arith.constant 5.000000e-01 : f32
    %376 = vector.broadcast %cst_160 : f32 to vector<16x128xf32>
    %377 = arith.mulf %376, %375 : vector<16x128xf32>
    %378 = arith.mulf %365, %377 : vector<16x128xf32>
    %379 = arith.truncf %378 : vector<16x128xf32> to vector<16x128xbf16>
    %c2_161 = arith.constant 2 : index
    %c0_162 = arith.constant 0 : index
    %c0_163 = arith.constant 0 : index
    %380 = vector.load %arg10[%c2_161, %c0_162, %c0_163] : memref<4x128x32xbf16, #tpu.memory_space<vmem>>, vector<1x128x32xbf16>
    %381 = vector.shape_cast %380 : vector<1x128x32xbf16> to vector<128x32xbf16>
    %cst_164 = arith.constant dense<0.000000e+00> : vector<16x32xf32>
    %382 = tpu.matmul %379, %381, %cst_164 {dimension_numbers = #tpu.dot_dimension_numbers<[1], [0], [0], [1], [0, 0, 1, 1], [], []>} : vector<16x128xbf16>, vector<128x32xbf16>, vector<16x32xf32> -> vector<16x32xf32>
    %c2_165 = arith.constant 2 : index
    %c0_166 = arith.constant 0 : index
    %c0_167 = arith.constant 0 : index
    %383 = vector.load %arg11[%c2_165, %c0_166, %c0_167] : memref<4x1x32xf32, #tpu.memory_space<vmem>>, vector<1x1x32xf32>
    %384 = vector.shape_cast %383 : vector<1x1x32xf32> to vector<1x32xf32>
    %385 = vector.broadcast %384 : vector<1x32xf32> to vector<16x32xf32>
    %386 = arith.addf %382, %385 : vector<16x32xf32>
    %387 = arith.addf %386, %357 : vector<16x32xf32>
    %c2_168 = arith.constant 2 : index
    %c0_169 = arith.constant 0 : index
    %c0_170 = arith.constant 0 : index
    %388 = vector.load %arg12[%c2_168, %c0_169, %c0_170] : memref<4x1x32xf32, #tpu.memory_space<vmem>>, vector<1x1x32xf32>
    %389 = vector.shape_cast %388 : vector<1x1x32xf32> to vector<1x32xf32>
    %c2_171 = arith.constant 2 : index
    %c0_172 = arith.constant 0 : index
    %c0_173 = arith.constant 0 : index
    %390 = vector.load %arg13[%c2_171, %c0_172, %c0_173] : memref<4x1x32xf32, #tpu.memory_space<vmem>>, vector<1x1x32xf32>
    %391 = vector.shape_cast %390 : vector<1x1x32xf32> to vector<1x32xf32>
    %cst_174 = arith.constant dense<0.000000e+00> : vector<16xf32>
    %392 = vector.multi_reduction <add>, %387, %cst_174 [1] : vector<16x32xf32> to vector<16xf32>
    %393 = vector.shape_cast %392 : vector<16xf32> to vector<16x1xf32>
    %cst_175 = arith.constant 3.200000e+01 : f32
    %394 = vector.broadcast %cst_175 : f32 to vector<16x1xf32>
    %395 = arith.divf %393, %394 : vector<16x1xf32>
    %396 = vector.broadcast %395 : vector<16x1xf32> to vector<16x32xf32>
    %397 = arith.subf %387, %396 : vector<16x32xf32>
    %398 = arith.mulf %397, %397 : vector<16x32xf32>
    %cst_176 = arith.constant dense<0.000000e+00> : vector<16xf32>
    %399 = vector.multi_reduction <add>, %398, %cst_176 [1] : vector<16x32xf32> to vector<16xf32>
    %400 = vector.shape_cast %399 : vector<16xf32> to vector<16x1xf32>
    %cst_177 = arith.constant 3.200000e+01 : f32
    %401 = vector.broadcast %cst_177 : f32 to vector<16x1xf32>
    %402 = arith.divf %400, %401 : vector<16x1xf32>
    %403 = vector.broadcast %395 : vector<16x1xf32> to vector<16x32xf32>
    %404 = arith.subf %387, %403 : vector<16x32xf32>
    %cst_178 = arith.constant 9.99999996E-13 : f32
    %405 = vector.broadcast %cst_178 : f32 to vector<16x1xf32>
    %406 = arith.addf %402, %405 : vector<16x1xf32>
    %407 = math.rsqrt %406 : vector<16x1xf32>
    %408 = vector.broadcast %407 : vector<16x1xf32> to vector<16x32xf32>
    %409 = arith.mulf %404, %408 : vector<16x32xf32>
    %410 = vector.broadcast %389 : vector<1x32xf32> to vector<16x32xf32>
    %411 = arith.mulf %409, %410 : vector<16x32xf32>
    %412 = vector.broadcast %391 : vector<1x32xf32> to vector<16x32xf32>
    %413 = arith.addf %411, %412 : vector<16x32xf32>
    %414 = vector.shape_cast %413 : vector<16x32xf32> to vector<2x8x32xf32>
    %415 = vector.extract_strided_slice %414 {offsets = [0, 0, 0], sizes = [2, 1, 32], strides = [1, 1, 1]} : vector<2x8x32xf32> to vector<2x1x32xf32>
    %416 = vector.shape_cast %415 : vector<2x1x32xf32> to vector<2x32xf32>
    %417 = arith.truncf %413 : vector<16x32xf32> to vector<16x32xbf16>
    %c3 = arith.constant 3 : index
    %c0_179 = arith.constant 0 : index
    %c0_180 = arith.constant 0 : index
    %418 = vector.load %arg2[%c3, %c0_179, %c0_180] : memref<4x32x96xbf16, #tpu.memory_space<vmem>>, vector<1x32x96xbf16>
    %419 = vector.shape_cast %418 : vector<1x32x96xbf16> to vector<32x96xbf16>
    %cst_181 = arith.constant dense<0.000000e+00> : vector<16x96xf32>
    %420 = tpu.matmul %417, %419, %cst_181 {dimension_numbers = #tpu.dot_dimension_numbers<[1], [0], [0], [1], [0, 0, 1, 1], [], []>} : vector<16x32xbf16>, vector<32x96xbf16>, vector<16x96xf32> -> vector<16x96xf32>
    %c3_182 = arith.constant 3 : index
    %c0_183 = arith.constant 0 : index
    %c0_184 = arith.constant 0 : index
    %421 = vector.load %arg3[%c3_182, %c0_183, %c0_184] : memref<4x1x96xf32, #tpu.memory_space<vmem>>, vector<1x1x96xf32>
    %422 = vector.shape_cast %421 : vector<1x1x96xf32> to vector<1x96xf32>
    %423 = vector.broadcast %422 : vector<1x96xf32> to vector<16x96xf32>
    %424 = arith.addf %420, %423 : vector<16x96xf32>
    %425 = vector.extract_strided_slice %424 {offsets = [0, 0], sizes = [16, 16], strides = [1, 1]} : vector<16x96xf32> to vector<16x16xf32>
    %426 = vector.shape_cast %425 : vector<16x16xf32> to vector<2x8x16xf32>
    %427 = vector.extract_strided_slice %424 {offsets = [0, 16], sizes = [16, 16], strides = [1, 1]} : vector<16x96xf32> to vector<16x16xf32>
    %428 = vector.shape_cast %427 : vector<16x16xf32> to vector<2x8x16xf32>
    %429 = tpu.concatenate %426, %428 in 0 : vector<2x8x16xf32>, vector<2x8x16xf32> -> vector<4x8x16xf32>
    %430 = vector.extract_strided_slice %424 {offsets = [0, 32], sizes = [16, 16], strides = [1, 1]} : vector<16x96xf32> to vector<16x16xf32>
    %431 = vector.shape_cast %430 : vector<16x16xf32> to vector<2x8x16xf32>
    %432 = vector.extract_strided_slice %424 {offsets = [0, 48], sizes = [16, 16], strides = [1, 1]} : vector<16x96xf32> to vector<16x16xf32>
    %433 = vector.shape_cast %432 : vector<16x16xf32> to vector<2x8x16xf32>
    %434 = tpu.concatenate %431, %433 in 0 : vector<2x8x16xf32>, vector<2x8x16xf32> -> vector<4x8x16xf32>
    %435 = vector.extract_strided_slice %424 {offsets = [0, 64], sizes = [16, 16], strides = [1, 1]} : vector<16x96xf32> to vector<16x16xf32>
    %436 = vector.shape_cast %435 : vector<16x16xf32> to vector<2x8x16xf32>
    %437 = vector.extract_strided_slice %424 {offsets = [0, 80], sizes = [16, 16], strides = [1, 1]} : vector<16x96xf32> to vector<16x16xf32>
    %438 = vector.shape_cast %437 : vector<16x16xf32> to vector<2x8x16xf32>
    %439 = tpu.concatenate %436, %438 in 0 : vector<2x8x16xf32>, vector<2x8x16xf32> -> vector<4x8x16xf32>
    "tpu.trace_start"() <{level = 10 : i32, message = "nqd,nkd->nqk"}> : () -> ()
    %cst_185 = arith.constant dense<0.000000e+00> : vector<4x8x8xf32>
    %440 = tpu.matmul %429, %434, %cst_185 {dimension_numbers = #tpu.dot_dimension_numbers<[2], [2], [1], [1], [0, 0, 0, 1, 1, 1], [0], [0]>} : vector<4x8x16xf32>, vector<4x8x16xf32>, vector<4x8x8xf32> -> vector<4x8x8xf32>
    "tpu.trace_stop"() : () -> ()
    %cst_186 = arith.constant 2.500000e-01 : f32
    %441 = vector.broadcast %cst_186 : f32 to vector<4x8x8xf32>
    %442 = arith.mulf %440, %441 : vector<4x8x8xf32>
    %443 = arith.addf %442, %5 : vector<4x8x8xf32>
    %cst_187 = arith.constant dense<0xFF800000> : vector<4x8xf32>
    %444 = vector.multi_reduction <maximumf>, %443, %cst_187 [2] : vector<4x8x8xf32> to vector<4x8xf32>
    %445 = vector.shape_cast %444 : vector<4x8xf32> to vector<4x8x1xf32>
    %446 = vector.broadcast %445 : vector<4x8x1xf32> to vector<4x8x8xf32>
    %447 = arith.subf %443, %446 : vector<4x8x8xf32>
    %448 = math.exp %447 : vector<4x8x8xf32>
    %cst_188 = arith.constant dense<0.000000e+00> : vector<4x8xf32>
    %449 = vector.multi_reduction <add>, %448, %cst_188 [2] : vector<4x8x8xf32> to vector<4x8xf32>
    %450 = vector.shape_cast %449 : vector<4x8xf32> to vector<4x8x1xf32>
    %451 = tpu.reciprocal %450 {approx = true} : vector<4x8x1xf32> -> vector<4x8x1xf32>
    %452 = vector.broadcast %451 : vector<4x8x1xf32> to vector<4x8x8xf32>
    %453 = arith.mulf %448, %452 : vector<4x8x8xf32>
    "tpu.trace_start"() <{level = 10 : i32, message = "nqk,nkd->nqd"}> : () -> ()
    %cst_189 = arith.constant dense<0.000000e+00> : vector<4x8x16xf32>
    %454 = tpu.matmul %453, %439, %cst_189 {dimension_numbers = #tpu.dot_dimension_numbers<[2], [1], [1], [2], [0, 0, 0, 1, 1, 2], [0], [0]>} : vector<4x8x8xf32>, vector<4x8x16xf32>, vector<4x8x16xf32> -> vector<4x8x16xf32>
    "tpu.trace_stop"() : () -> ()
    %455 = vector.extract_strided_slice %454 {offsets = [0, 0, 0], sizes = [2, 8, 16], strides = [1, 1, 1]} : vector<4x8x16xf32> to vector<2x8x16xf32>
    %456 = vector.shape_cast %455 : vector<2x8x16xf32> to vector<16x16xf32>
    %457 = vector.extract_strided_slice %454 {offsets = [2, 0, 0], sizes = [2, 8, 16], strides = [1, 1, 1]} : vector<4x8x16xf32> to vector<2x8x16xf32>
    %458 = vector.shape_cast %457 : vector<2x8x16xf32> to vector<16x16xf32>
    %459 = tpu.concatenate %456, %458 in 1 : vector<16x16xf32>, vector<16x16xf32> -> vector<16x32xf32>
    %460 = arith.truncf %459 : vector<16x32xf32> to vector<16x32xbf16>
    %c3_190 = arith.constant 3 : index
    %c0_191 = arith.constant 0 : index
    %c0_192 = arith.constant 0 : index
    %461 = vector.load %arg4[%c3_190, %c0_191, %c0_192] : memref<4x32x32xbf16, #tpu.memory_space<vmem>>, vector<1x32x32xbf16>
    %462 = vector.shape_cast %461 : vector<1x32x32xbf16> to vector<32x32xbf16>
    %cst_193 = arith.constant dense<0.000000e+00> : vector<16x32xf32>
    %463 = tpu.matmul %460, %462, %cst_193 {dimension_numbers = #tpu.dot_dimension_numbers<[1], [0], [0], [1], [0, 0, 1, 1], [], []>} : vector<16x32xbf16>, vector<32x32xbf16>, vector<16x32xf32> -> vector<16x32xf32>
    %c3_194 = arith.constant 3 : index
    %c0_195 = arith.constant 0 : index
    %c0_196 = arith.constant 0 : index
    %464 = vector.load %arg5[%c3_194, %c0_195, %c0_196] : memref<4x1x32xf32, #tpu.memory_space<vmem>>, vector<1x1x32xf32>
    %465 = vector.shape_cast %464 : vector<1x1x32xf32> to vector<1x32xf32>
    %466 = vector.broadcast %465 : vector<1x32xf32> to vector<16x32xf32>
    %467 = arith.addf %463, %466 : vector<16x32xf32>
    %468 = arith.addf %467, %413 : vector<16x32xf32>
    %c3_197 = arith.constant 3 : index
    %c0_198 = arith.constant 0 : index
    %c0_199 = arith.constant 0 : index
    %469 = vector.load %arg6[%c3_197, %c0_198, %c0_199] : memref<4x1x32xf32, #tpu.memory_space<vmem>>, vector<1x1x32xf32>
    %470 = vector.shape_cast %469 : vector<1x1x32xf32> to vector<1x32xf32>
    %c3_200 = arith.constant 3 : index
    %c0_201 = arith.constant 0 : index
    %c0_202 = arith.constant 0 : index
    %471 = vector.load %arg7[%c3_200, %c0_201, %c0_202] : memref<4x1x32xf32, #tpu.memory_space<vmem>>, vector<1x1x32xf32>
    %472 = vector.shape_cast %471 : vector<1x1x32xf32> to vector<1x32xf32>
    %cst_203 = arith.constant dense<0.000000e+00> : vector<16xf32>
    %473 = vector.multi_reduction <add>, %468, %cst_203 [1] : vector<16x32xf32> to vector<16xf32>
    %474 = vector.shape_cast %473 : vector<16xf32> to vector<16x1xf32>
    %cst_204 = arith.constant 3.200000e+01 : f32
    %475 = vector.broadcast %cst_204 : f32 to vector<16x1xf32>
    %476 = arith.divf %474, %475 : vector<16x1xf32>
    %477 = vector.broadcast %476 : vector<16x1xf32> to vector<16x32xf32>
    %478 = arith.subf %468, %477 : vector<16x32xf32>
    %479 = arith.mulf %478, %478 : vector<16x32xf32>
    %cst_205 = arith.constant dense<0.000000e+00> : vector<16xf32>
    %480 = vector.multi_reduction <add>, %479, %cst_205 [1] : vector<16x32xf32> to vector<16xf32>
    %481 = vector.shape_cast %480 : vector<16xf32> to vector<16x1xf32>
    %cst_206 = arith.constant 3.200000e+01 : f32
    %482 = vector.broadcast %cst_206 : f32 to vector<16x1xf32>
    %483 = arith.divf %481, %482 : vector<16x1xf32>
    %484 = vector.broadcast %476 : vector<16x1xf32> to vector<16x32xf32>
    %485 = arith.subf %468, %484 : vector<16x32xf32>
    %cst_207 = arith.constant 9.99999996E-13 : f32
    %486 = vector.broadcast %cst_207 : f32 to vector<16x1xf32>
    %487 = arith.addf %483, %486 : vector<16x1xf32>
    %488 = math.rsqrt %487 : vector<16x1xf32>
    %489 = vector.broadcast %488 : vector<16x1xf32> to vector<16x32xf32>
    %490 = arith.mulf %485, %489 : vector<16x32xf32>
    %491 = vector.broadcast %470 : vector<1x32xf32> to vector<16x32xf32>
    %492 = arith.mulf %490, %491 : vector<16x32xf32>
    %493 = vector.broadcast %472 : vector<1x32xf32> to vector<16x32xf32>
    %494 = arith.addf %492, %493 : vector<16x32xf32>
    %495 = arith.truncf %494 : vector<16x32xf32> to vector<16x32xbf16>
    %c3_208 = arith.constant 3 : index
    %c0_209 = arith.constant 0 : index
    %c0_210 = arith.constant 0 : index
    %496 = vector.load %arg8[%c3_208, %c0_209, %c0_210] : memref<4x32x128xbf16, #tpu.memory_space<vmem>>, vector<1x32x128xbf16>
    %497 = vector.shape_cast %496 : vector<1x32x128xbf16> to vector<32x128xbf16>
    %cst_211 = arith.constant dense<0.000000e+00> : vector<16x128xf32>
    %498 = tpu.matmul %495, %497, %cst_211 {dimension_numbers = #tpu.dot_dimension_numbers<[1], [0], [0], [1], [0, 0, 1, 1], [], []>} : vector<16x32xbf16>, vector<32x128xbf16>, vector<16x128xf32> -> vector<16x128xf32>
    %c3_212 = arith.constant 3 : index
    %c0_213 = arith.constant 0 : index
    %c0_214 = arith.constant 0 : index
    %499 = vector.load %arg9[%c3_212, %c0_213, %c0_214] : memref<4x1x128xf32, #tpu.memory_space<vmem>>, vector<1x1x128xf32>
    %500 = vector.shape_cast %499 : vector<1x1x128xf32> to vector<1x128xf32>
    %501 = vector.broadcast %500 : vector<1x128xf32> to vector<16x128xf32>
    %502 = arith.addf %498, %501 : vector<16x128xf32>
    %503 = arith.mulf %502, %502 : vector<16x128xf32>
    %504 = arith.mulf %502, %503 : vector<16x128xf32>
    %cst_215 = arith.constant 4.471500e-02 : f32
    %505 = vector.broadcast %cst_215 : f32 to vector<16x128xf32>
    %506 = arith.mulf %505, %504 : vector<16x128xf32>
    %507 = arith.addf %502, %506 : vector<16x128xf32>
    %cst_216 = arith.constant 0.797884583 : f32
    %508 = vector.broadcast %cst_216 : f32 to vector<16x128xf32>
    %509 = arith.mulf %508, %507 : vector<16x128xf32>
    %510 = math.tanh %509 : vector<16x128xf32>
    %cst_217 = arith.constant 1.000000e+00 : f32
    %511 = vector.broadcast %cst_217 : f32 to vector<16x128xf32>
    %512 = arith.addf %511, %510 : vector<16x128xf32>
    %cst_218 = arith.constant 5.000000e-01 : f32
    %513 = vector.broadcast %cst_218 : f32 to vector<16x128xf32>
    %514 = arith.mulf %513, %512 : vector<16x128xf32>
    %515 = arith.mulf %502, %514 : vector<16x128xf32>
    %516 = arith.truncf %515 : vector<16x128xf32> to vector<16x128xbf16>
    %c3_219 = arith.constant 3 : index
    %c0_220 = arith.constant 0 : index
    %c0_221 = arith.constant 0 : index
    %517 = vector.load %arg10[%c3_219, %c0_220, %c0_221] : memref<4x128x32xbf16, #tpu.memory_space<vmem>>, vector<1x128x32xbf16>
    %518 = vector.shape_cast %517 : vector<1x128x32xbf16> to vector<128x32xbf16>
    %cst_222 = arith.constant dense<0.000000e+00> : vector<16x32xf32>
    %519 = tpu.matmul %516, %518, %cst_222 {dimension_numbers = #tpu.dot_dimension_numbers<[1], [0], [0], [1], [0, 0, 1, 1], [], []>} : vector<16x128xbf16>, vector<128x32xbf16>, vector<16x32xf32> -> vector<16x32xf32>
    %c3_223 = arith.constant 3 : index
    %c0_224 = arith.constant 0 : index
    %c0_225 = arith.constant 0 : index
    %520 = vector.load %arg11[%c3_223, %c0_224, %c0_225] : memref<4x1x32xf32, #tpu.memory_space<vmem>>, vector<1x1x32xf32>
    %521 = vector.shape_cast %520 : vector<1x1x32xf32> to vector<1x32xf32>
    %522 = vector.broadcast %521 : vector<1x32xf32> to vector<16x32xf32>
    %523 = arith.addf %519, %522 : vector<16x32xf32>
    %524 = arith.addf %523, %494 : vector<16x32xf32>
    %c3_226 = arith.constant 3 : index
    %c0_227 = arith.constant 0 : index
    %c0_228 = arith.constant 0 : index
    %525 = vector.load %arg12[%c3_226, %c0_227, %c0_228] : memref<4x1x32xf32, #tpu.memory_space<vmem>>, vector<1x1x32xf32>
    %526 = vector.shape_cast %525 : vector<1x1x32xf32> to vector<1x32xf32>
    %c3_229 = arith.constant 3 : index
    %c0_230 = arith.constant 0 : index
    %c0_231 = arith.constant 0 : index
    %527 = vector.load %arg13[%c3_229, %c0_230, %c0_231] : memref<4x1x32xf32, #tpu.memory_space<vmem>>, vector<1x1x32xf32>
    %528 = vector.shape_cast %527 : vector<1x1x32xf32> to vector<1x32xf32>
    %cst_232 = arith.constant dense<0.000000e+00> : vector<16xf32>
    %529 = vector.multi_reduction <add>, %524, %cst_232 [1] : vector<16x32xf32> to vector<16xf32>
    %530 = vector.shape_cast %529 : vector<16xf32> to vector<16x1xf32>
    %cst_233 = arith.constant 3.200000e+01 : f32
    %531 = vector.broadcast %cst_233 : f32 to vector<16x1xf32>
    %532 = arith.divf %530, %531 : vector<16x1xf32>
    %533 = vector.broadcast %532 : vector<16x1xf32> to vector<16x32xf32>
    %534 = arith.subf %524, %533 : vector<16x32xf32>
    %535 = arith.mulf %534, %534 : vector<16x32xf32>
    %cst_234 = arith.constant dense<0.000000e+00> : vector<16xf32>
    %536 = vector.multi_reduction <add>, %535, %cst_234 [1] : vector<16x32xf32> to vector<16xf32>
    %537 = vector.shape_cast %536 : vector<16xf32> to vector<16x1xf32>
    %cst_235 = arith.constant 3.200000e+01 : f32
    %538 = vector.broadcast %cst_235 : f32 to vector<16x1xf32>
    %539 = arith.divf %537, %538 : vector<16x1xf32>
    %540 = vector.broadcast %532 : vector<16x1xf32> to vector<16x32xf32>
    %541 = arith.subf %524, %540 : vector<16x32xf32>
    %cst_236 = arith.constant 9.99999996E-13 : f32
    %542 = vector.broadcast %cst_236 : f32 to vector<16x1xf32>
    %543 = arith.addf %539, %542 : vector<16x1xf32>
    %544 = math.rsqrt %543 : vector<16x1xf32>
    %545 = vector.broadcast %544 : vector<16x1xf32> to vector<16x32xf32>
    %546 = arith.mulf %541, %545 : vector<16x32xf32>
    %547 = vector.broadcast %526 : vector<1x32xf32> to vector<16x32xf32>
    %548 = arith.mulf %546, %547 : vector<16x32xf32>
    %549 = vector.broadcast %528 : vector<1x32xf32> to vector<16x32xf32>
    %550 = arith.addf %548, %549 : vector<16x32xf32>
    %551 = vector.shape_cast %550 : vector<16x32xf32> to vector<2x8x32xf32>
    %552 = vector.extract_strided_slice %551 {offsets = [0, 0, 0], sizes = [2, 1, 32], strides = [1, 1, 1]} : vector<2x8x32xf32> to vector<2x1x32xf32>
    %553 = vector.shape_cast %552 : vector<2x1x32xf32> to vector<2x32xf32>
    %554 = tpu.concatenate %553, %416, %279, %142 in 1 : vector<2x32xf32>, vector<2x32xf32>, vector<2x32xf32>, vector<2x32xf32> -> vector<2x128xf32>
    %555 = arith.truncf %554 : vector<2x128xf32> to vector<2x128xbf16>
    %c0_237 = arith.constant 0 : index
    %c0_238 = arith.constant 0 : index
    %556 = vector.load %arg14[%c0_237, %c0_238] : memref<128x128xbf16, #tpu.memory_space<vmem>>, vector<128x128xbf16>
    %cst_239 = arith.constant dense<0.000000e+00> : vector<2x128xf32>
    %557 = tpu.matmul %555, %556, %cst_239 {dimension_numbers = #tpu.dot_dimension_numbers<[1], [0], [0], [1], [0, 0, 1, 1], [], []>} : vector<2x128xbf16>, vector<128x128xbf16>, vector<2x128xf32> -> vector<2x128xf32>
    %c0_240 = arith.constant 0 : index
    %c0_241 = arith.constant 0 : index
    %558 = vector.load %arg15[%c0_240, %c0_241] : memref<1x128xf32, #tpu.memory_space<vmem>>, vector<1x128xf32>
    %559 = vector.broadcast %558 : vector<1x128xf32> to vector<2x128xf32>
    %560 = arith.addf %557, %559 : vector<2x128xf32>
    %561 = tpu.iota {dimensions = array<i32: 1>} : vector<2x128xi32>
    %c6_i32 = arith.constant 6 : i32
    %562 = vector.broadcast %c6_i32 : i32 to vector<2x128xi32>
    %563 = arith.cmpi slt, %561, %562 : vector<2x128xi32>
    %564 = arith.negf %560 : vector<2x128xf32>
    %565 = math.exp %564 : vector<2x128xf32>
    %cst_242 = arith.constant 1.000000e+00 : f32
    %566 = vector.broadcast %cst_242 : f32 to vector<2x128xf32>
    %567 = arith.addf %566, %565 : vector<2x128xf32>
    %568 = arith.divf %566, %567 : vector<2x128xf32>
    %569 = arith.select %563, %568, %560 : vector<2x128xi1>, vector<2x128xf32>
    %c0_243 = arith.constant 0 : index
    %c0_244 = arith.constant 0 : index
    %570 = vector.load %arg16[%c0_243, %c0_244] : memref<2x128xf32, #tpu.memory_space<vmem>>, vector<2x128xf32>
    tpu.vector_store %arg16[%c0_243, %c0_244], %569 {strides = array<i32>} : memref<2x128xf32, #tpu.memory_space<vmem>>, vector<2x128xf32>,
    return
  }
}

</mosaic_0001>

<llo_original>
// kernel: tpu_custom_call.1
$region0: #{tpu_custom_call.1}
  #allocation0 [shape = 'u32[]', space=smem, size = 0x4, offset = 0x4, fixed_abs, tag = 'smem constant byte address 0x4 - core index']
  #allocation1 [shape = 'u32[144,128]{1,0:T(1,128)}', space=vmem, size = 0x12000, scoped, tag = 'internal scratch']
  %s0 = inlined_call_operand.vmem [shape: f32[2,8,32], index: 0, kind: input, shape index: {}]
  %s1 = inlined_call_operand.vmem [shape: f32[2,1,8], index: 1, kind: input, shape index: {}]
  %s2 = inlined_call_operand.vmem [shape: bf16[4,32,96], index: 2, kind: input, shape index: {}]
  %s3 = inlined_call_operand.vmem [shape: f32[4,1,96], index: 3, kind: input, shape index: {}]
  %s4 = inlined_call_operand.vmem [shape: bf16[4,32,32], index: 4, kind: input, shape index: {}]
  %s5 = inlined_call_operand.vmem [shape: f32[4,1,32], index: 5, kind: input, shape index: {}]
  %s6 = inlined_call_operand.vmem [shape: f32[4,1,32], index: 6, kind: input, shape index: {}]
  %s7 = inlined_call_operand.vmem [shape: f32[4,1,32], index: 7, kind: input, shape index: {}]
  %s8 = inlined_call_operand.vmem [shape: bf16[4,32,128], index: 8, kind: input, shape index: {}]
  %s9 = inlined_call_operand.vmem [shape: f32[4,1,128], index: 9, kind: input, shape index: {}]
  %s10 = inlined_call_operand.vmem [shape: bf16[4,128,32], index: 10, kind: input, shape index: {}]
  %s11 = inlined_call_operand.vmem [shape: f32[4,1,32], index: 11, kind: input, shape index: {}]
  %s12 = inlined_call_operand.vmem [shape: f32[4,1,32], index: 12, kind: input, shape index: {}]
  %s13 = inlined_call_operand.vmem [shape: f32[4,1,32], index: 13, kind: input, shape index: {}]
  %s14 = inlined_call_operand.vmem [shape: bf16[128,128], index: 14, kind: input, shape index: {}]
  %s15 = inlined_call_operand.vmem [shape: f32[1,128], index: 15, kind: input, shape index: {}]
  %s16 = inlined_call_operand.hbm [shape: f32[2,128], index: 16, kind: output, shape index: {}]
  %s17 = sld [smem:[#allocation0]]
  $region74: #{tpu_custom_call.1} parent=0
    _
  %s19 = ssub.s32 1, %s17
  %s20 = scalar_select 0, %s19, %s17
  $region1: #{tpu_custom_call.1} parent=0
    #allocation2 [shape = 'u8[1024]{0}', space=vmem, size = 0x400, scoped, tag = 'output window, operand 0, single buffered']
    #allocation3 [shape = 's32[1]{0}', space=sflag, size = 0x4, scoped, tag = 'scoped memory for tpu_custom_call.1']
    %21 = vsyncpa [#allocation3], 0
    // Predicated region
    $region2: #{tpu_custom_call.1} parent=1 // pred_check
      _
    $region3: #{tpu_custom_call.1} parent=1 // pred_check_branch
      %23 = sbr.rel (0) target = $region5
    $region4: #{tpu_custom_call.1} parent=1 // pred_region
      _
    $region5: #{tpu_custom_call.1} parent=1 // pred_fallthru
      _
    // Predicated region
    $region6: #{tpu_custom_call.1} parent=1 // pred_check
      _
    $region7: #{tpu_custom_call.1} parent=1 // pred_check_branch
      %25 = sbr.rel (0) target = $region9
    $region8: #{tpu_custom_call.1} parent=1 // pred_region
      _
    $region9: #{tpu_custom_call.1} parent=1 // pred_fallthru
      _
    // Predicated region
    $region10: #{tpu_custom_call.1} parent=1 // pred_check
      _
    $region11: #{tpu_custom_call.1} parent=1 // pred_check_branch
      %27 = sbr.rel (0) target = $region13
    $region12: #{tpu_custom_call.1} parent=1 // pred_region
      _
    $region13: #{tpu_custom_call.1} parent=1 // pred_fallthru
      _
    // Predicated region
    $region14: #{tpu_custom_call.1} parent=1 // pred_check
      _
    $region15: #{tpu_custom_call.1} parent=1 // pred_check_branch
      %29 = sbr.rel (0) target = $region17
    $region16: #{tpu_custom_call.1} parent=1 // pred_region
      _
    $region17: #{tpu_custom_call.1} parent=1 // pred_fallthru
      _
    // Predicated region
    $region18: #{tpu_custom_call.1} parent=1 // pred_check
      _
    $region19: #{tpu_custom_call.1} parent=1 // pred_check_branch
      %31 = sbr.rel (0) target = $region21
    $region20: #{tpu_custom_call.1} parent=1 // pred_region
      _
    $region21: #{tpu_custom_call.1} parent=1 // pred_fallthru
      _
    // Predicated region
    $region22: #{tpu_custom_call.1} parent=1 // pred_check
      _
    $region23: #{tpu_custom_call.1} parent=1 // pred_check_branch
      %33 = sbr.rel (0) target = $region25
    $region24: #{tpu_custom_call.1} parent=1 // pred_region
      _
    $region25: #{tpu_custom_call.1} parent=1 // pred_fallthru
      _
    // Predicated region
    $region26: #{tpu_custom_call.1} parent=1 // pred_check
      _
    $region27: #{tpu_custom_call.1} parent=1 // pred_check_branch
      %35 = sbr.rel (0) target = $region29
    $region28: #{tpu_custom_call.1} parent=1 // pred_region
      _
    $region29: #{tpu_custom_call.1} parent=1 // pred_fallthru
      _
    // Predicated region
    $region30: #{tpu_custom_call.1} parent=1 // pred_check
      _
    $region31: #{tpu_custom_call.1} parent=1 // pred_check_branch
      %37 = sbr.rel (0) target = $region33
    $region32: #{tpu_custom_call.1} parent=1 // pred_region
      _
    $region33: #{tpu_custom_call.1} parent=1 // pred_fallthru
      _
    // Predicated region
    $region34: #{tpu_custom_call.1} parent=1 // pred_check
      _
    $region35: #{tpu_custom_call.1} parent=1 // pred_check_branch
      %39 = sbr.rel (0) target = $region37
    $region36: #{tpu_custom_call.1} parent=1 // pred_region
      _
    $region37: #{tpu_custom_call.1} parent=1 // pred_fallthru
      _
    // Predicated region
    $region38: #{tpu_custom_call.1} parent=1 // pred_check
      _
    $region39: #{tpu_custom_call.1} parent=1 // pred_check_branch
      %41 = sbr.rel (0) target = $region41
    $region40: #{tpu_custom_call.1} parent=1 // pred_region
      _
    $region41: #{tpu_custom_call.1} parent=1 // pred_fallthru
      _
    // Predicated region
    $region42: #{tpu_custom_call.1} parent=1 // pred_check
      _
    $region43: #{tpu_custom_call.1} parent=1 // pred_check_branch
      %43 = sbr.rel (0) target = $region45
    $region44: #{tpu_custom_call.1} parent=1 // pred_region
      _
    $region45: #{tpu_custom_call.1} parent=1 // pred_fallthru
      _
    // Predicated region
    $region46: #{tpu_custom_call.1} parent=1 // pred_check
      _
    $region47: #{tpu_custom_call.1} parent=1 // pred_check_branch
      %45 = sbr.rel (0) target = $region49
    $region48: #{tpu_custom_call.1} parent=1 // pred_region
      _
    $region49: #{tpu_custom_call.1} parent=1 // pred_fallthru
      _
    // Predicated region
    $region50: #{tpu_custom_call.1} parent=1 // pred_check
      _
    $region51: #{tpu_custom_call.1} parent=1 // pred_check_branch
      %47 = sbr.rel (0) target = $region53
    $region52: #{tpu_custom_call.1} parent=1 // pred_region
      _
    $region53: #{tpu_custom_call.1} parent=1 // pred_fallthru
      _
    // Predicated region
    $region54: #{tpu_custom_call.1} parent=1 // pred_check
      _
    $region55: #{tpu_custom_call.1} parent=1 // pred_check_branch
      %49 = sbr.rel (0) target = $region57
    $region56: #{tpu_custom_call.1} parent=1 // pred_region
      _
    $region57: #{tpu_custom_call.1} parent=1 // pred_fallthru
      _
    // Predicated region
    $region58: #{tpu_custom_call.1} parent=1 // pred_check
      _
    $region59: #{tpu_custom_call.1} parent=1 // pred_check_branch
      %51 = sbr.rel (0) target = $region61
    $region60: #{tpu_custom_call.1} parent=1 // pred_region
      _
    $region61: #{tpu_custom_call.1} parent=1 // pred_fallthru
      _
    // Predicated region
    $region62: #{tpu_custom_call.1} parent=1 // pred_check
      _
    $region63: #{tpu_custom_call.1} parent=1 // pred_check_branch
      %53 = sbr.rel (0) target = $region65
    $region64: #{tpu_custom_call.1} parent=1 // pred_region
      _
    $region65: #{tpu_custom_call.1} parent=1 // pred_fallthru
      _
    %v55 = vld [vmem:[%s0] sm:$0xff]
    %v56 = vld [vmem:[%s0 + $0x8] sm:$0xff]
    %v57 = vld [vmem:[%s1] sm:$0x1]
    %v58 = vld [vmem:[%s1 + $0x1] sm:$0x1]
    %v61 = vlaneseq
    %v62 = vshrl.u32 %v61, 7
    %v63 = vsub.s32 0, %v62
    %v64 = vrot.slane %v57, %v63
    %v65 = vlaneseq
    %v66 = vshrl.u32 %v65, 7
    %v67 = vsub.s32 0, %v66
    %v68 = vrot.slane %v58, %v67
    %v71 = vpack.c.bf16 %v56, %v55
    %v72 = vld [vmem:[%s2] sm:$0xf]
    %v73 = vld [vmem:[%s2 + $0x4] sm:$0xf]
    %v74 = vld [vmem:[%s2 + $0x8] sm:$0xf]
    %v75 = vld [vmem:[%s2 + $0xc] sm:$0xf]
    %v76 = vld [vmem:[%s3] sm:$0x1]
    %v78 = vlaneseq
    %v79 = vshrl.u32 %v78, 7
    %v80 = vsub.s32 0, %v79
    %v81 = vrot.slane %v76, %v80
    %v87 = vunpack.c.l.b16 %v72
    %v88 = vunpack.c.l.b16 %v73
    %v89 = vunpack.c.l.b16 %v74
    %v90 = vunpack.c.l.b16 %v75
    %v91 = vpack.c.b16 %v88, %v87
    %v92 = vpack.c.b16 %v90, %v89
    %vm95 = vcmask 261120
    %v97 = vsel %vm95, %v71, 0
    %99 = vmatprep.subr.bf16.mxu0 0
    %100 = vmatpush1.bf16.msra.mxu0 0
    %101 = vmatprep.subr.bf16.mxu0 0
    %102 = vmatpush1.bf16.msra.mxu0 0
    %103 = vmatprep.subr.bf16.mxu0 0
    %104 = vmatpush1.bf16.msra.mxu0 0
    %105 = vmatprep.subr.bf16.mxu0 0
    %106 = vmatpush1.bf16.msra.mxu0 0
    %107 = vmatprep.subr.bf16.mxu0 0
    %108 = vmatpush1.bf16.msra.mxu0 0
    %109 = vmatprep.subr.bf16.mxu0 0
    %110 = vmatpush1.bf16.msra.mxu0 0
    %111 = vmatprep.subr.bf16.mxu0 0
    %112 = vmatpush1.bf16.msra.mxu0 %v92
    %113 = vmatprep.subr.bf16.mxu0 0
    %114 = vmatpush1.bf16.msra.mxu0 %v91
    %115 = vmatprep.subr.bf16.mxu0 0
    %116 = vmatpush2.bf16.msra.mxu0 0
    %117 = vmatprep.subr.bf16.mxu0 0
    %118 = vmatpush2.bf16.msra.mxu0 0
    %119 = vmatprep.subr.bf16.mxu0 0
    %120 = vmatpush2.bf16.msra.mxu0 0
    %121 = vmatprep.subr.bf16.mxu0 0
    %122 = vmatpush2.bf16.msra.mxu0 0
    %123 = vmatprep.subr.bf16.mxu0 0
    %124 = vmatpush2.bf16.msra.mxu0 0
    %125 = vmatprep.subr.bf16.mxu0 0
    %126 = vmatpush2.bf16.msra.mxu0 0
    %127 = vmatprep.subr.bf16.mxu0 0
    %128 = vmatpush2.bf16.msra.mxu0 0
    %129 = vmatprep.subr.bf16.mxu0 0
    %130 = vmatpush2.bf16.msra.mxu0 0
    %131 = vmatprep.mubr.bf16.mxu0 0
    %132 = vmatmul.mubr.bf16.gmra.mxu0 %v97
    %v133 = vpop.f32.mrf.mxu0
    %v134 = vadd.f32 %v81, %v133
    %v135 = vpop.f32.mrf.mxu0
    %v136 = vpop.f32.mrf.mxu0
    %v137 = vadd.f32 %v81, %v136
    %v138 = vpop.f32.mrf.mxu0
    %139 = vdwg.mxu0
    %142 = vrot.lane.b32.xlu0 %v134, 112
    %v143 = vpop.permute.xlu0 %142
    %144 = vrot.lane.b32.xlu0 %v137, 112
    %v145 = vpop.permute.xlu0 %144
    %146 = vrot.lane.b32.xlu0 %v134, 96
    %v147 = vpop.permute.xlu0 %146
    %vm148 = vcmask 130048
    %v149 = vsel %vm148, %v134, 0
    %v151 = vsel %vm148, %v147, 0
    %153 = vmatprep.subr.mxu0 0.0
    %154 = vmatpush1.xpose.msra.mxu0 0.0
    %155 = vmatprep.subr.mxu0 0.0
    %156 = vmatpush1.xpose.msra.mxu0 0.0
    %157 = vmatprep.subr.mxu0 0.0
    %158 = vmatpush1.xpose.msra.mxu0 0.0
    %159 = vmatprep.subr.mxu0 0.0
    %160 = vmatpush1.xpose.msra.mxu0 0.0
    %161 = vmatprep.subr.mxu0 0.0
    %162 = vmatpush1.xpose.msra.mxu0 0.0
    %163 = vmatprep.subr.mxu0 0.0
    %164 = vmatpush1.xpose.msra.mxu0 0.0
    %165 = vmatprep.subr.mxu0 0.0
    %166 = vmatpush1.xpose.msra.mxu0 0.0
    %167 = vmatprep.subr.mxu0 0.0
    %168 = vmatpush1.xpose.msra.mxu0 0.0
    %169 = vmatprep.subr.mxu0 0.0
    %170 = vmatpush1.xpose.msra.mxu0 0.0
    %171 = vmatprep.subr.mxu0 0.0
    %172 = vmatpush1.xpose.msra.mxu0 0.0
    %173 = vmatprep.subr.mxu0 0.0
    %174 = vmatpush1.xpose.msra.mxu0 0.0
    %175 = vmatprep.subr.mxu0 0.0
    %176 = vmatpush1.xpose.msra.mxu0 0.0
    %177 = vmatprep.subr.mxu0 0.0
    %178 = vmatpush1.xpose.msra.mxu0 0.0
    %179 = vmatprep.subr.mxu0 0.0
    %180 = vmatpush1.xpose.msra.mxu0 0.0
    %181 = vmatprep.subr.mxu0 0.0
    %182 = vmatpush1.xpose.msra.mxu0 0.0
    %183 = vmatprep.subr.mxu0 0.0
    %184 = vmatpush1.xpose.msra.mxu0 %v151
    %185 = vmatprep.subr.mxu0 0.0
    %186 = vmatpush2.xpose.msra.mxu0 0.0
    %187 = vmatprep.subr.mxu0 0.0
    %188 = vmatpush2.xpose.msra.mxu0 0.0
    %189 = vmatprep.subr.mxu0 0.0
    %190 = vmatpush2.xpose.msra.mxu0 0.0
    %191 = vmatprep.subr.mxu0 0.0
    %192 = vmatpush2.xpose.msra.mxu0 0.0
    %193 = vmatprep.subr.mxu0 0.0
    %194 = vmatpush2.xpose.msra.mxu0 0.0
    %195 = vmatprep.subr.mxu0 0.0
    %196 = vmatpush2.xpose.msra.mxu0 0.0
    %197 = vmatprep.subr.mxu0 0.0
    %198 = vmatpush2.xpose.msra.mxu0 0.0
    %199 = vmatprep.subr.mxu0 0.0
    %200 = vmatpush2.xpose.msra.mxu0 0.0
    %201 = vmatprep.subr.mxu0 0.0
    %202 = vmatpush2.xpose.msra.mxu0 0.0
    %203 = vmatprep.subr.mxu0 0.0
    %204 = vmatpush2.xpose.msra.mxu0 0.0
    %205 = vmatprep.subr.mxu0 0.0
    %206 = vmatpush2.xpose.msra.mxu0 0.0
    %207 = vmatprep.subr.mxu0 0.0
    %208 = vmatpush2.xpose.msra.mxu0 0.0
    %209 = vmatprep.subr.mxu0 0.0
    %210 = vmatpush2.xpose.msra.mxu0 0.0
    %211 = vmatprep.subr.mxu0 0.0
    %212 = vmatpush2.xpose.msra.mxu0 0.0
    %213 = vmatprep.subr.mxu0 0.0
    %214 = vmatpush2.xpose.msra.mxu0 0.0
    %215 = vmatprep.subr.mxu0 0.0
    %216 = vmatpush2.xpose.msra.mxu0 0.0
    %217 = vmatprep.mubr.f32.mxu0 0.0
    %218 = vmatmul.mubr.f32.gmra.mxu0 %v149
    %v219 = vpop.f32.mrf.mxu0
    %v220 = vadd.f32 0.0, %v219
    %v221 = vpop.f32.mrf.mxu0
    %222 = vdwg.mxu0
    %223 = vrot.lane.b32.xlu0 %v137, 96
    %v224 = vpop.permute.xlu0 %223
    %v225 = vsel %vm148, %v137, 0
    %v227 = vsel %vm148, %v224, 0
    %229 = vmatprep.subr.mxu0 0.0
    %230 = vmatpush1.xpose.msra.mxu0 0.0
    %231 = vmatprep.subr.mxu0 0.0
    %232 = vmatpush1.xpose.msra.mxu0 0.0
    %233 = vmatprep.subr.mxu0 0.0
    %234 = vmatpush1.xpose.msra.mxu0 0.0
    %235 = vmatprep.subr.mxu0 0.0
    %236 = vmatpush1.xpose.msra.mxu0 0.0
    %237 = vmatprep.subr.mxu0 0.0
    %238 = vmatpush1.xpose.msra.mxu0 0.0
    %239 = vmatprep.subr.mxu0 0.0
    %240 = vmatpush1.xpose.msra.mxu0 0.0
    %241 = vmatprep.subr.mxu0 0.0
    %242 = vmatpush1.xpose.msra.mxu0 0.0
    %243 = vmatprep.subr.mxu0 0.0
    %244 = vmatpush1.xpose.msra.mxu0 0.0
    %245 = vmatprep.subr.mxu0 0.0
    %246 = vmatpush1.xpose.msra.mxu0 0.0
    %247 = vmatprep.subr.mxu0 0.0
    %248 = vmatpush1.xpose.msra.mxu0 0.0
    %249 = vmatprep.subr.mxu0 0.0
    %250 = vmatpush1.xpose.msra.mxu0 0.0
    %251 = vmatprep.subr.mxu0 0.0
    %252 = vmatpush1.xpose.msra.mxu0 0.0
    %253 = vmatprep.subr.mxu0 0.0
    %254 = vmatpush1.xpose.msra.mxu0 0.0
    %255 = vmatprep.subr.mxu0 0.0
    %256 = vmatpush1.xpose.msra.mxu0 0.0
    %257 = vmatprep.subr.mxu0 0.0
    %258 = vmatpush1.xpose.msra.mxu0 0.0
    %259 = vmatprep.subr.mxu0 0.0
    %260 = vmatpush1.xpose.msra.mxu0 %v227
    %261 = vmatprep.subr.mxu0 0.0
    %262 = vmatpush2.xpose.msra.mxu0 0.0
    %263 = vmatprep.subr.mxu0 0.0
    %264 = vmatpush2.xpose.msra.mxu0 0.0
    %265 = vmatprep.subr.mxu0 0.0
    %266 = vmatpush2.xpose.msra.mxu0 0.0
    %267 = vmatprep.subr.mxu0 0.0
    %268 = vmatpush2.xpose.msra.mxu0 0.0
    %269 = vmatprep.subr.mxu0 0.0
    %270 = vmatpush2.xpose.msra.mxu0 0.0
    %271 = vmatprep.subr.mxu0 0.0
    %272 = vmatpush2.xpose.msra.mxu0 0.0
    %273 = vmatprep.subr.mxu0 0.0
    %274 = vmatpush2.xpose.msra.mxu0 0.0
    %275 = vmatprep.subr.mxu0 0.0
    %276 = vmatpush2.xpose.msra.mxu0 0.0
    %277 = vmatprep.subr.mxu0 0.0
    %278 = vmatpush2.xpose.msra.mxu0 0.0
    %279 = vmatprep.subr.mxu0 0.0
    %280 = vmatpush2.xpose.msra.mxu0 0.0
    %281 = vmatprep.subr.mxu0 0.0
    %282 = vmatpush2.xpose.msra.mxu0 0.0
    %283 = vmatprep.subr.mxu0 0.0
    %284 = vmatpush2.xpose.msra.mxu0 0.0
    %285 = vmatprep.subr.mxu0 0.0
    %286 = vmatpush2.xpose.msra.mxu0 0.0
    %287 = vmatprep.subr.mxu0 0.0
    %288 = vmatpush2.xpose.msra.mxu0 0.0
    %289 = vmatprep.subr.mxu0 0.0
    %290 = vmatpush2.xpose.msra.mxu0 0.0
    %291 = vmatprep.subr.mxu0 0.0
    %292 = vmatpush2.xpose.msra.mxu0 0.0
    %293 = vmatprep.mubr.f32.mxu0 0.0
    %294 = vmatmul.mubr.f32.gmra.mxu0 %v225
    %v295 = vpop.f32.mrf.mxu0
    %v296 = vadd.f32 0.0, %v295
    %v297 = vpop.f32.mrf.mxu0
    %298 = vdwg.mxu0
    %299 = vrot.lane.b32.xlu0 %v143, 96
    %v300 = vpop.permute.xlu0 %299
    %v301 = vsel %vm148, %v143, 0
    %v303 = vsel %vm148, %v300, 0
    %305 = vmatprep.subr.mxu0 0.0
    %306 = vmatpush1.xpose.msra.mxu0 0.0
    %307 = vmatprep.subr.mxu0 0.0
    %308 = vmatpush1.xpose.msra.mxu0 0.0
    %309 = vmatprep.subr.mxu0 0.0
    %310 = vmatpush1.xpose.msra.mxu0 0.0
    %311 = vmatprep.subr.mxu0 0.0
    %312 = vmatpush1.xpose.msra.mxu0 0.0
    %313 = vmatprep.subr.mxu0 0.0
    %314 = vmatpush1.xpose.msra.mxu0 0.0
    %315 = vmatprep.subr.mxu0 0.0
    %316 = vmatpush1.xpose.msra.mxu0 0.0
    %317 = vmatprep.subr.mxu0 0.0
    %318 = vmatpush1.xpose.msra.mxu0 0.0
    %319 = vmatprep.subr.mxu0 0.0
    %320 = vmatpush1.xpose.msra.mxu0 0.0
    %321 = vmatprep.subr.mxu0 0.0
    %322 = vmatpush1.xpose.msra.mxu0 0.0
    %323 = vmatprep.subr.mxu0 0.0
    %324 = vmatpush1.xpose.msra.mxu0 0.0
    %325 = vmatprep.subr.mxu0 0.0
    %326 = vmatpush1.xpose.msra.mxu0 0.0
    %327 = vmatprep.subr.mxu0 0.0
    %328 = vmatpush1.xpose.msra.mxu0 0.0
    %329 = vmatprep.subr.mxu0 0.0
    %330 = vmatpush1.xpose.msra.mxu0 0.0
    %331 = vmatprep.subr.mxu0 0.0
    %332 = vmatpush1.xpose.msra.mxu0 0.0
    %333 = vmatprep.subr.mxu0 0.0
    %334 = vmatpush1.xpose.msra.mxu0 0.0
    %335 = vmatprep.subr.mxu0 0.0
    %336 = vmatpush1.xpose.msra.mxu0 %v303
    %337 = vmatprep.subr.mxu0 0.0
    %338 = vmatpush2.xpose.msra.mxu0 0.0
    %339 = vmatprep.subr.mxu0 0.0
    %340 = vmatpush2.xpose.msra.mxu0 0.0
    %341 = vmatprep.subr.mxu0 0.0
    %342 = vmatpush2.xpose.msra.mxu0 0.0
    %343 = vmatprep.subr.mxu0 0.0
    %344 = vmatpush2.xpose.msra.mxu0 0.0
    %345 = vmatprep.subr.mxu0 0.0
    %346 = vmatpush2.xpose.msra.mxu0 0.0
    %347 = vmatprep.subr.mxu0 0.0
    %348 = vmatpush2.xpose.msra.mxu0 0.0
    %349 = vmatprep.subr.mxu0 0.0
    %350 = vmatpush2.xpose.msra.mxu0 0.0
    %351 = vmatprep.subr.mxu0 0.0
    %352 = vmatpush2.xpose.msra.mxu0 0.0
    %353 = vmatprep.subr.mxu0 0.0
    %354 = vmatpush2.xpose.msra.mxu0 0.0
    %355 = vmatprep.subr.mxu0 0.0
    %356 = vmatpush2.xpose.msra.mxu0 0.0
    %357 = vmatprep.subr.mxu0 0.0
    %358 = vmatpush2.xpose.msra.mxu0 0.0
    %359 = vmatprep.subr.mxu0 0.0
    %360 = vmatpush2.xpose.msra.mxu0 0.0
    %361 = vmatprep.subr.mxu0 0.0
    %362 = vmatpush2.xpose.msra.mxu0 0.0
    %363 = vmatprep.subr.mxu0 0.0
    %364 = vmatpush2.xpose.msra.mxu0 0.0
    %365 = vmatprep.subr.mxu0 0.0
    %366 = vmatpush2.xpose.msra.mxu0 0.0
    %367 = vmatprep.subr.mxu0 0.0
    %368 = vmatpush2.xpose.msra.mxu0 0.0
    %369 = vmatprep.mubr.f32.mxu0 0.0
    %370 = vmatmul.mubr.f32.gmra.mxu0 %v301
    %v371 = vpop.f32.mrf.mxu0
    %v372 = vadd.f32 0.0, %v371
    %v373 = vpop.f32.mrf.mxu0
    %374 = vdwg.mxu0
    %375 = vrot.lane.b32.xlu0 %v145, 96
    %v376 = vpop.permute.xlu0 %375
    %v377 = vsel %vm148, %v145, 0
    %v379 = vsel %vm148, %v376, 0
    %381 = vmatprep.subr.mxu0 0.0
    %382 = vmatpush1.xpose.msra.mxu0 0.0
    %383 = vmatprep.subr.mxu0 0.0
    %384 = vmatpush1.xpose.msra.mxu0 0.0
    %385 = vmatprep.subr.mxu0 0.0
    %386 = vmatpush1.xpose.msra.mxu0 0.0
    %387 = vmatprep.subr.mxu0 0.0
    %388 = vmatpush1.xpose.msra.mxu0 0.0
    %389 = vmatprep.subr.mxu0 0.0
    %390 = vmatpush1.xpose.msra.mxu0 0.0
    %391 = vmatprep.subr.mxu0 0.0
    %392 = vmatpush1.xpose.msra.mxu0 0.0
    %393 = vmatprep.subr.mxu0 0.0
    %394 = vmatpush1.xpose.msra.mxu0 0.0
    %395 = vmatprep.subr.mxu0 0.0
    %396 = vmatpush1.xpose.msra.mxu0 0.0
    %397 = vmatprep.subr.mxu0 0.0
    %398 = vmatpush1.xpose.msra.mxu0 0.0
    %399 = vmatprep.subr.mxu0 0.0
    %400 = vmatpush1.xpose.msra.mxu0 0.0
    %401 = vmatprep.subr.mxu0 0.0
    %402 = vmatpush1.xpose.msra.mxu0 0.0
    %403 = vmatprep.subr.mxu0 0.0
    %404 = vmatpush1.xpose.msra.mxu0 0.0
    %405 = vmatprep.subr.mxu0 0.0
    %406 = vmatpush1.xpose.msra.mxu0 0.0
    %407 = vmatprep.subr.mxu0 0.0
    %408 = vmatpush1.xpose.msra.mxu0 0.0
    %409 = vmatprep.subr.mxu0 0.0
    %410 = vmatpush1.xpose.msra.mxu0 0.0
    %411 = vmatprep.subr.mxu0 0.0
    %412 = vmatpush1.xpose.msra.mxu0 %v379
    %413 = vmatprep.subr.mxu0 0.0
    %414 = vmatpush2.xpose.msra.mxu0 0.0
    %415 = vmatprep.subr.mxu0 0.0
    %416 = vmatpush2.xpose.msra.mxu0 0.0
    %417 = vmatprep.subr.mxu0 0.0
    %418 = vmatpush2.xpose.msra.mxu0 0.0
    %419 = vmatprep.subr.mxu0 0.0
    %420 = vmatpush2.xpose.msra.mxu0 0.0
    %421 = vmatprep.subr.mxu0 0.0
    %422 = vmatpush2.xpose.msra.mxu0 0.0
    %423 = vmatprep.subr.mxu0 0.0
    %424 = vmatpush2.xpose.msra.mxu0 0.0
    %425 = vmatprep.subr.mxu0 0.0
    %426 = vmatpush2.xpose.msra.mxu0 0.0
    %427 = vmatprep.subr.mxu0 0.0
    %428 = vmatpush2.xpose.msra.mxu0 0.0
    %429 = vmatprep.subr.mxu0 0.0
    %430 = vmatpush2.xpose.msra.mxu0 0.0
    %431 = vmatprep.subr.mxu0 0.0
    %432 = vmatpush2.xpose.msra.mxu0 0.0
    %433 = vmatprep.subr.mxu0 0.0
    %434 = vmatpush2.xpose.msra.mxu0 0.0
    %435 = vmatprep.subr.mxu0 0.0
    %436 = vmatpush2.xpose.msra.mxu0 0.0
    %437 = vmatprep.subr.mxu0 0.0
    %438 = vmatpush2.xpose.msra.mxu0 0.0
    %439 = vmatprep.subr.mxu0 0.0
    %440 = vmatpush2.xpose.msra.mxu0 0.0
    %441 = vmatprep.subr.mxu0 0.0
    %442 = vmatpush2.xpose.msra.mxu0 0.0
    %443 = vmatprep.subr.mxu0 0.0
    %444 = vmatpush2.xpose.msra.mxu0 0.0
    %445 = vmatprep.mubr.f32.mxu0 0.0
    %446 = vmatmul.mubr.f32.gmra.mxu0 %v377
    %v447 = vpop.f32.mrf.mxu0
    %v448 = vadd.f32 0.0, %v447
    %v449 = vpop.f32.mrf.mxu0
    %450 = vdwg.mxu0
    %v451 = vmul.f32 %v220, 0.25
    %v452 = vmul.f32 %v296, 0.25
    %v453 = vmul.f32 %v372, 0.25
    %v454 = vmul.f32 %v448, 0.25
    %v455 = vadd.f32 %v451, %v64
    %v456 = vadd.f32 %v452, %v68
    %v457 = vadd.f32 %v453, %v64
    %v458 = vadd.f32 %v454, %v68
    %vm459 = vcmask 64512
    %v460 = vsel %vm459, %v455, -inf
    %461 = vmax.xlane.f32.xlu0 %v460
    %v462 = vpop.xlane.xlu0 %461
    %v463 = vsel %vm459, %v456, -inf
    %464 = vmax.xlane.f32.xlu0 %v463
    %v465 = vpop.xlane.xlu0 %464
    %v466 = vsel %vm459, %v457, -inf
    %467 = vmax.xlane.f32.xlu0 %v466
    %v468 = vpop.xlane.xlu0 %467
    %v469 = vsel %vm459, %v458, -inf
    %470 = vmax.xlane.f32.xlu0 %v469
    %v471 = vpop.xlane.xlu0 %470
    %v472 = vsub.f32 %v455, %v462
    %v473 = vsub.f32 %v456, %v465
    %v474 = vsub.f32 %v457, %v468
    %v475 = vsub.f32 %v458, %v471
    %v476 = vmul.f32 %v472, 1.442695
    %v477 = vpow.pop %v476
    %v478 = vmul.f32 %v473, 1.442695
    %v479 = vpow.pop %v478
    %v480 = vmul.f32 %v474, 1.442695
    %v481 = vpow.pop %v480
    %v482 = vmul.f32 %v475, 1.442695
    %v483 = vpow.pop %v482
    %v484 = vsel %vm459, %v477, 0.0
    %485 = vadd.xlane.f32.xlu0 %v484
    %v486 = vpop.xlane.xlu0 %485
    %v487 = vsel %vm459, %v479, 0.0
    %488 = vadd.xlane.f32.xlu0 %v487
    %v489 = vpop.xlane.xlu0 %488
    %v490 = vsel %vm459, %v481, 0.0
    %491 = vadd.xlane.f32.xlu0 %v490
    %v492 = vpop.xlane.xlu0 %491
    %v493 = vsel %vm459, %v483, 0.0
    %494 = vadd.xlane.f32.xlu0 %v493
    %v495 = vpop.xlane.xlu0 %494
    %v496 = vrcp.pop %v486
    %v497 = vrcp.pop %v489
    %v498 = vrcp.pop %v492
    %v499 = vrcp.pop %v495
    %v500 = vmul.f32 %v477, %v496
    %v501 = vmul.f32 %v479, %v497
    %v502 = vmul.f32 %v481, %v498
    %v503 = vmul.f32 %v483, %v499
    %504 = vrot.lane.b32.xlu0 %v134, 64
    %v505 = vpop.permute.xlu0 %504
    %v508 = vsel %vm459, %v500, 0
    %510 = vmatprep.subr.mxu0 0.0
    %511 = vmatpush1.msra.mxu0 0.0
    %512 = vmatprep.subr.mxu0 0.0
    %513 = vmatpush1.msra.mxu0 0.0
    %514 = vmatprep.subr.mxu0 0.0
    %515 = vmatpush1.msra.mxu0 0.0
    %516 = vmatprep.subr.mxu0 0.0
    %517 = vmatpush1.msra.mxu0 0.0
    %518 = vmatprep.subr.mxu0 0.0
    %519 = vmatpush1.msra.mxu0 0.0
    %520 = vmatprep.subr.mxu0 0.0
    %521 = vmatpush1.msra.mxu0 0.0
    %522 = vmatprep.subr.mxu0 0.0
    %523 = vmatpush1.msra.mxu0 0.0
    %524 = vmatprep.subr.mxu0 0.0
    %525 = vmatpush1.msra.mxu0 0.0
    %526 = vmatprep.subr.mxu0 0.0
    %527 = vmatpush1.msra.mxu0 0.0
    %528 = vmatprep.subr.mxu0 0.0
    %529 = vmatpush1.msra.mxu0 0.0
    %530 = vmatprep.subr.mxu0 0.0
    %531 = vmatpush1.msra.mxu0 0.0
    %532 = vmatprep.subr.mxu0 0.0
    %533 = vmatpush1.msra.mxu0 0.0
    %534 = vmatprep.subr.mxu0 0.0
    %535 = vmatpush1.msra.mxu0 0.0
    %536 = vmatprep.subr.mxu0 0.0
    %537 = vmatpush1.msra.mxu0 0.0
    %538 = vmatprep.subr.mxu0 0.0
    %539 = vmatpush1.msra.mxu0 0.0
    %540 = vmatprep.subr.mxu0 0.0
    %541 = vmatpush1.msra.mxu0 %v505
    %542 = vmatprep.subr.mxu0 0.0
    %543 = vmatpush2.msra.mxu0 0.0
    %544 = vmatprep.subr.mxu0 0.0
    %545 = vmatpush2.msra.mxu0 0.0
    %546 = vmatprep.subr.mxu0 0.0
    %547 = vmatpush2.msra.mxu0 0.0
    %548 = vmatprep.subr.mxu0 0.0
    %549 = vmatpush2.msra.mxu0 0.0
    %550 = vmatprep.subr.mxu0 0.0
    %551 = vmatpush2.msra.mxu0 0.0
    %552 = vmatprep.subr.mxu0 0.0
    %553 = vmatpush2.msra.mxu0 0.0
    %554 = vmatprep.subr.mxu0 0.0
    %555 = vmatpush2.msra.mxu0 0.0
    %556 = vmatprep.subr.mxu0 0.0
    %557 = vmatpush2.msra.mxu0 0.0
    %558 = vmatprep.subr.mxu0 0.0
    %559 = vmatpush2.msra.mxu0 0.0
    %560 = vmatprep.subr.mxu0 0.0
    %561 = vmatpush2.msra.mxu0 0.0
    %562 = vmatprep.subr.mxu0 0.0
    %563 = vmatpush2.msra.mxu0 0.0
    %564 = vmatprep.subr.mxu0 0.0
    %565 = vmatpush2.msra.mxu0 0.0
    %566 = vmatprep.subr.mxu0 0.0
    %567 = vmatpush2.msra.mxu0 0.0
    %568 = vmatprep.subr.mxu0 0.0
    %569 = vmatpush2.msra.mxu0 0.0
    %570 = vmatprep.subr.mxu0 0.0
    %571 = vmatpush2.msra.mxu0 0.0
    %572 = vmatprep.subr.mxu0 0.0
    %573 = vmatpush2.msra.mxu0 0.0
    %574 = vmatprep.mubr.f32.mxu0 0.0
    %575 = vmatmul.mubr.f32.gmra.mxu0 %v508
    %v576 = vpop.f32.mrf.mxu0
    %v577 = vadd.f32 0.0, %v576
    %v578 = vpop.f32.mrf.mxu0
    %579 = vdwg.mxu0
    %580 = vrot.lane.b32.xlu0 %v137, 64
    %v581 = vpop.permute.xlu0 %580
    %v584 = vsel %vm459, %v501, 0
    %586 = vmatprep.subr.mxu0 0.0
    %587 = vmatpush1.msra.mxu0 0.0
    %588 = vmatprep.subr.mxu0 0.0
    %589 = vmatpush1.msra.mxu0 0.0
    %590 = vmatprep.subr.mxu0 0.0
    %591 = vmatpush1.msra.mxu0 0.0
    %592 = vmatprep.subr.mxu0 0.0
    %593 = vmatpush1.msra.mxu0 0.0
    %594 = vmatprep.subr.mxu0 0.0
    %595 = vmatpush1.msra.mxu0 0.0
    %596 = vmatprep.subr.mxu0 0.0
    %597 = vmatpush1.msra.mxu0 0.0
    %598 = vmatprep.subr.mxu0 0.0
    %599 = vmatpush1.msra.mxu0 0.0
    %600 = vmatprep.subr.mxu0 0.0
    %601 = vmatpush1.msra.mxu0 0.0
    %602 = vmatprep.subr.mxu0 0.0
    %603 = vmatpush1.msra.mxu0 0.0
    %604 = vmatprep.subr.mxu0 0.0
    %605 = vmatpush1.msra.mxu0 0.0
    %606 = vmatprep.subr.mxu0 0.0
    %607 = vmatpush1.msra.mxu0 0.0
    %608 = vmatprep.subr.mxu0 0.0
    %609 = vmatpush1.msra.mxu0 0.0
    %610 = vmatprep.subr.mxu0 0.0
    %611 = vmatpush1.msra.mxu0 0.0
    %612 = vmatprep.subr.mxu0 0.0
    %613 = vmatpush1.msra.mxu0 0.0
    %614 = vmatprep.subr.mxu0 0.0
    %615 = vmatpush1.msra.mxu0 0.0
    %616 = vmatprep.subr.mxu0 0.0
    %617 = vmatpush1.msra.mxu0 %v581
    %618 = vmatprep.subr.mxu0 0.0
    %619 = vmatpush2.msra.mxu0 0.0
    %620 = vmatprep.subr.mxu0 0.0
    %621 = vmatpush2.msra.mxu0 0.0
    %622 = vmatprep.subr.mxu0 0.0
    %623 = vmatpush2.msra.mxu0 0.0
    %624 = vmatprep.subr.mxu0 0.0
    %625 = vmatpush2.msra.mxu0 0.0
    %626 = vmatprep.subr.mxu0 0.0
    %627 = vmatpush2.msra.mxu0 0.0
    %628 = vmatprep.subr.mxu0 0.0
    %629 = vmatpush2.msra.mxu0 0.0
    %630 = vmatprep.subr.mxu0 0.0
    %631 = vmatpush2.msra.mxu0 0.0
    %632 = vmatprep.subr.mxu0 0.0
    %633 = vmatpush2.msra.mxu0 0.0
    %634 = vmatprep.subr.mxu0 0.0
    %635 = vmatpush2.msra.mxu0 0.0
    %636 = vmatprep.subr.mxu0 0.0
    %637 = vmatpush2.msra.mxu0 0.0
    %638 = vmatprep.subr.mxu0 0.0
    %639 = vmatpush2.msra.mxu0 0.0
    %640 = vmatprep.subr.mxu0 0.0
    %641 = vmatpush2.msra.mxu0 0.0
    %642 = vmatprep.subr.mxu0 0.0
    %643 = vmatpush2.msra.mxu0 0.0
    %644 = vmatprep.subr.mxu0 0.0
    %645 = vmatpush2.msra.mxu0 0.0
    %646 = vmatprep.subr.mxu0 0.0
    %647 = vmatpush2.msra.mxu0 0.0
    %648 = vmatprep.subr.mxu0 0.0
    %649 = vmatpush2.msra.mxu0 0.0
    %650 = vmatprep.mubr.f32.mxu0 0.0
    %651 = vmatmul.mubr.f32.gmra.mxu0 %v584
    %v652 = vpop.f32.mrf.mxu0
    %v653 = vadd.f32 0.0, %v652
    %v654 = vpop.f32.mrf.mxu0
    %655 = vdwg.mxu0
    %656 = vrot.lane.b32.xlu0 %v143, 64
    %v657 = vpop.permute.xlu0 %656
    %v660 = vsel %vm459, %v502, 0
    %662 = vmatprep.subr.mxu0 0.0
    %663 = vmatpush1.msra.mxu0 0.0
    %664 = vmatprep.subr.mxu0 0.0
    %665 = vmatpush1.msra.mxu0 0.0
    %666 = vmatprep.subr.mxu0 0.0
    %667 = vmatpush1.msra.mxu0 0.0
    %668 = vmatprep.subr.mxu0 0.0
    %669 = vmatpush1.msra.mxu0 0.0
    %670 = vmatprep.subr.mxu0 0.0
    %671 = vmatpush1.msra.mxu0 0.0
    %672 = vmatprep.subr.mxu0 0.0
    %673 = vmatpush1.msra.mxu0 0.0
    %674 = vmatprep.subr.mxu0 0.0
    %675 = vmatpush1.msra.mxu0 0.0
    %676 = vmatprep.subr.mxu0 0.0
    %677 = vmatpush1.msra.mxu0 0.0
    %678 = vmatprep.subr.mxu0 0.0
    %679 = vmatpush1.msra.mxu0 0.0
    %680 = vmatprep.subr.mxu0 0.0
    %681 = vmatpush1.msra.mxu0 0.0
    %682 = vmatprep.subr.mxu0 0.0
    %683 = vmatpush1.msra.mxu0 0.0
    %684 = vmatprep.subr.mxu0 0.0
    %685 = vmatpush1.msra.mxu0 0.0
    %686 = vmatprep.subr.mxu0 0.0
    %687 = vmatpush1.msra.mxu0 0.0
    %688 = vmatprep.subr.mxu0 0.0
    %689 = vmatpush1.msra.mxu0 0.0
    %690 = vmatprep.subr.mxu0 0.0
    %691 = vmatpush1.msra.mxu0 0.0
    %692 = vmatprep.subr.mxu0 0.0
    %693 = vmatpush1.msra.mxu0 %v657
    %694 = vmatprep.subr.mxu0 0.0
    %695 = vmatpush2.msra.mxu0 0.0
    %696 = vmatprep.subr.mxu0 0.0
    %697 = vmatpush2.msra.mxu0 0.0
    %698 = vmatprep.subr.mxu0 0.0
    %699 = vmatpush2.msra.mxu0 0.0
    %700 = vmatprep.subr.mxu0 0.0
    %701 = vmatpush2.msra.mxu0 0.0
    %702 = vmatprep.subr.mxu0 0.0
    %703 = vmatpush2.msra.mxu0 0.0
    %704 = vmatprep.subr.mxu0 0.0
    %705 = vmatpush2.msra.mxu0 0.0
    %706 = vmatprep.subr.mxu0 0.0
    %707 = vmatpush2.msra.mxu0 0.0
    %708 = vmatprep.subr.mxu0 0.0
    %709 = vmatpush2.msra.mxu0 0.0
    %710 = vmatprep.subr.mxu0 0.0
    %711 = vmatpush2.msra.mxu0 0.0
    %712 = vmatprep.subr.mxu0 0.0
    %713 = vmatpush2.msra.mxu0 0.0
    %714 = vmatprep.subr.mxu0 0.0
    %715 = vmatpush2.msra.mxu0 0.0
    %716 = vmatprep.subr.mxu0 0.0
    %717 = vmatpush2.msra.mxu0 0.0
    %718 = vmatprep.subr.mxu0 0.0
    %719 = vmatpush2.msra.mxu0 0.0
    %720 = vmatprep.subr.mxu0 0.0
    %721 = vmatpush2.msra.mxu0 0.0
    %722 = vmatprep.subr.mxu0 0.0
    %723 = vmatpush2.msra.mxu0 0.0
    %724 = vmatprep.subr.mxu0 0.0
    %725 = vmatpush2.msra.mxu0 0.0
    %726 = vmatprep.mubr.f32.mxu0 0.0
    %727 = vmatmul.mubr.f32.gmra.mxu0 %v660
    %v728 = vpop.f32.mrf.mxu0
    %v729 = vadd.f32 0.0, %v728
    %v730 = vpop.f32.mrf.mxu0
    %731 = vdwg.mxu0
    %732 = vrot.lane.b32.xlu0 %v145, 64
    %v733 = vpop.permute.xlu0 %732
    %v736 = vsel %vm459, %v503, 0
    %738 = vmatprep.subr.mxu0 0.0
    %739 = vmatpush1.msra.mxu0 0.0
    %740 = vmatprep.subr.mxu0 0.0
    %741 = vmatpush1.msra.mxu0 0.0
    %742 = vmatprep.subr.mxu0 0.0
    %743 = vmatpush1.msra.mxu0 0.0
    %744 = vmatprep.subr.mxu0 0.0
    %745 = vmatpush1.msra.mxu0 0.0
    %746 = vmatprep.subr.mxu0 0.0
    %747 = vmatpush1.msra.mxu0 0.0
    %748 = vmatprep.subr.mxu0 0.0
    %749 = vmatpush1.msra.mxu0 0.0
    %750 = vmatprep.subr.mxu0 0.0
    %751 = vmatpush1.msra.mxu0 0.0
    %752 = vmatprep.subr.mxu0 0.0
    %753 = vmatpush1.msra.mxu0 0.0
    %754 = vmatprep.subr.mxu0 0.0
    %755 = vmatpush1.msra.mxu0 0.0
    %756 = vmatprep.subr.mxu0 0.0
    %757 = vmatpush1.msra.mxu0 0.0
    %758 = vmatprep.subr.mxu0 0.0
    %759 = vmatpush1.msra.mxu0 0.0
    %760 = vmatprep.subr.mxu0 0.0
    %761 = vmatpush1.msra.mxu0 0.0
    %762 = vmatprep.subr.mxu0 0.0
    %763 = vmatpush1.msra.mxu0 0.0
    %764 = vmatprep.subr.mxu0 0.0
    %765 = vmatpush1.msra.mxu0 0.0
    %766 = vmatprep.subr.mxu0 0.0
    %767 = vmatpush1.msra.mxu0 0.0
    %768 = vmatprep.subr.mxu0 0.0
    %769 = vmatpush1.msra.mxu0 %v733
    %770 = vmatprep.subr.mxu0 0.0
    %771 = vmatpush2.msra.mxu0 0.0
    %772 = vmatprep.subr.mxu0 0.0
    %773 = vmatpush2.msra.mxu0 0.0
    %774 = vmatprep.subr.mxu0 0.0
    %775 = vmatpush2.msra.mxu0 0.0
    %776 = vmatprep.subr.mxu0 0.0
    %777 = vmatpush2.msra.mxu0 0.0
    %778 = vmatprep.subr.mxu0 0.0
    %779 = vmatpush2.msra.mxu0 0.0
    %780 = vmatprep.subr.mxu0 0.0
    %781 = vmatpush2.msra.mxu0 0.0
    %782 = vmatprep.subr.mxu0 0.0
    %783 = vmatpush2.msra.mxu0 0.0
    %784 = vmatprep.subr.mxu0 0.0
    %785 = vmatpush2.msra.mxu0 0.0
    %786 = vmatprep.subr.mxu0 0.0
    %787 = vmatpush2.msra.mxu0 0.0
    %788 = vmatprep.subr.mxu0 0.0
    %789 = vmatpush2.msra.mxu0 0.0
    %790 = vmatprep.subr.mxu0 0.0
    %791 = vmatpush2.msra.mxu0 0.0
    %792 = vmatprep.subr.mxu0 0.0
    %793 = vmatpush2.msra.mxu0 0.0
    %794 = vmatprep.subr.mxu0 0.0
    %795 = vmatpush2.msra.mxu0 0.0
    %796 = vmatprep.subr.mxu0 0.0
    %797 = vmatpush2.msra.mxu0 0.0
    %798 = vmatprep.subr.mxu0 0.0
    %799 = vmatpush2.msra.mxu0 0.0
    %800 = vmatprep.subr.mxu0 0.0
    %801 = vmatpush2.msra.mxu0 0.0
    %802 = vmatprep.mubr.f32.mxu0 0.0
    %803 = vmatmul.mubr.f32.gmra.mxu0 %v736
    %v804 = vpop.f32.mrf.mxu0
    %v805 = vadd.f32 0.0, %v804
    %v806 = vpop.f32.mrf.mxu0
    %807 = vdwg.mxu0
    %810 = vrot.lane.b32.xlu0 %v729, 16
    %v811 = vpop.permute.xlu0 %810
    %812 = vrot.lane.b32.xlu0 %v805, 16
    %v813 = vpop.permute.xlu0 %812
    %v816 = vsel %vm148, %v577, %v811
    %v817 = vsel %vm148, %v653, %v813
    %v818 = vpack.c.bf16 %v817, %v816
    %v819 = vld [vmem:[%s4] sm:$0xf]
    %v820 = vld [vmem:[%s4 + $0x4] sm:$0xf]
    %v821 = vld [vmem:[%s4 + $0x8] sm:$0xf]
    %v822 = vld [vmem:[%s4 + $0xc] sm:$0xf]
    %v823 = vld [vmem:[%s5] sm:$0x1]
    %v825 = vlaneseq
    %v826 = vshrl.u32 %v825, 7
    %v827 = vsub.s32 0, %v826
    %v828 = vrot.slane %v823, %v827
    %v834 = vunpack.c.l.b16 %v819
    %v835 = vunpack.c.l.b16 %v820
    %v836 = vunpack.c.l.b16 %v821
    %v837 = vunpack.c.l.b16 %v822
    %v838 = vpack.c.b16 %v835, %v834
    %v839 = vpack.c.b16 %v837, %v836
    %v843 = vsel %vm95, %v818, 0
    %845 = vmatprep.subr.bf16.mxu0 0
    %846 = vmatpush1.bf16.msra.mxu0 0
    %847 = vmatprep.subr.bf16.mxu0 0
    %848 = vmatpush1.bf16.msra.mxu0 0
    %849 = vmatprep.subr.bf16.mxu0 0
    %850 = vmatpush1.bf16.msra.mxu0 0
    %851 = vmatprep.subr.bf16.mxu0 0
    %852 = vmatpush1.bf16.msra.mxu0 0
    %853 = vmatprep.subr.bf16.mxu0 0
    %854 = vmatpush1.bf16.msra.mxu0 0
    %855 = vmatprep.subr.bf16.mxu0 0
    %856 = vmatpush1.bf16.msra.mxu0 0
    %857 = vmatprep.subr.bf16.mxu0 0
    %858 = vmatpush1.bf16.msra.mxu0 %v839
    %859 = vmatprep.subr.bf16.mxu0 0
    %860 = vmatpush1.bf16.msra.mxu0 %v838
    %861 = vmatprep.subr.bf16.mxu0 0
    %862 = vmatpush2.bf16.msra.mxu0 0
    %863 = vmatprep.subr.bf16.mxu0 0
    %864 = vmatpush2.bf16.msra.mxu0 0
    %865 = vmatprep.subr.bf16.mxu0 0
    %866 = vmatpush2.bf16.msra.mxu0 0
    %867 = vmatprep.subr.bf16.mxu0 0
    %868 = vmatpush2.bf16.msra.mxu0 0
    %869 = vmatprep.subr.bf16.mxu0 0
    %870 = vmatpush2.bf16.msra.mxu0 0
    %871 = vmatprep.subr.bf16.mxu0 0
    %872 = vmatpush2.bf16.msra.mxu0 0
    %873 = vmatprep.subr.bf16.mxu0 0
    %874 = vmatpush2.bf16.msra.mxu0 0
    %875 = vmatprep.subr.bf16.mxu0 0
    %876 = vmatpush2.bf16.msra.mxu0 0
    %877 = vmatprep.mubr.bf16.mxu0 0
    %878 = vmatmul.mubr.bf16.gmra.mxu0 %v843
    %v879 = vpop.f32.mrf.mxu0
    %v880 = vadd.f32 %v828, %v879
    %v881 = vpop.f32.mrf.mxu0
    %v882 = vpop.f32.mrf.mxu0
    %v883 = vadd.f32 %v828, %v882
    %v884 = vpop.f32.mrf.mxu0
    %885 = vdwg.mxu0
    %v886 = vadd.f32 %v880, %v55
    %v887 = vadd.f32 %v883, %v56
    %v888 = vld [vmem:[%s6] sm:$0x1]
    %v889 = vld [vmem:[%s7] sm:$0x1]
    %v890 = vsel %vm95, %v886, 0.0
    %891 = vadd.xlane.f32.xlu0 %v890
    %v892 = vpop.xlane.xlu0 %891
    %v893 = vsel %vm95, %v887, 0.0
    %894 = vadd.xlane.f32.xlu0 %v893
    %v895 = vpop.xlane.xlu0 %894
    %v896 = vrcp.pop 32.0
    %v897 = vmul.f32 %v892, %v896
    %v898 = vmul.f32 %v895, %v896
    %v899 = vsub.f32 %v886, %v897
    %v900 = vsub.f32 %v887, %v898
    %v901 = vmul.f32 %v899, %v899
    %v902 = vmul.f32 %v900, %v900
    %v903 = vsel %vm95, %v901, 0.0
    %904 = vadd.xlane.f32.xlu0 %v903
    %v905 = vpop.xlane.xlu0 %904
    %v906 = vsel %vm95, %v902, 0.0
    %907 = vadd.xlane.f32.xlu0 %v906
    %v908 = vpop.xlane.xlu0 %907
    %v909 = vmul.f32 %v905, %v896
    %v910 = vmul.f32 %v908, %v896
    %v911 = vadd.f32 %v909, 1e-12
    %v912 = vadd.f32 %v910, 1e-12
    %v913 = vrsqrt.pop %v911
    %v914 = vrsqrt.pop %v912
    %v915 = vmul.f32 %v899, %v913
    %v916 = vmul.f32 %v900, %v914
    %v918 = vlaneseq
    %v919 = vshrl.u32 %v918, 7
    %v920 = vsub.s32 0, %v919
    %v921 = vrot.slane %v888, %v920
    %v923 = vmul.f32 %v915, %v921
    %v924 = vmul.f32 %v916, %v921
    %v926 = vlaneseq
    %v927 = vshrl.u32 %v926, 7
    %v928 = vsub.s32 0, %v927
    %v929 = vrot.slane %v889, %v928
    %v931 = vadd.f32 %v923, %v929
    %v932 = vadd.f32 %v924, %v929
    %v933 = vpack.c.bf16 %v932, %v931
    %v934 = vld [vmem:[%s8] sm:$0xf]
    %v935 = vld [vmem:[%s8 + $0x4] sm:$0xf]
    %v936 = vld [vmem:[%s8 + $0x8] sm:$0xf]
    %v937 = vld [vmem:[%s8 + $0xc] sm:$0xf]
    %v938 = vld [vmem:[%s9] sm:$0x1]
    %v940 = vlaneseq
    %v941 = vshrl.u32 %v940, 7
    %v942 = vsub.s32 0, %v941
    %v943 = vrot.slane %v938, %v942
    %v949 = vunpack.c.l.b16 %v934
    %v950 = vunpack.c.l.b16 %v935
    %v951 = vunpack.c.l.b16 %v936
    %v952 = vunpack.c.l.b16 %v937
    %v953 = vpack.c.b16 %v950, %v949
    %v954 = vpack.c.b16 %v952, %v951
    %v958 = vsel %vm95, %v933, 0
    %960 = vmatprep.subr.bf16.mxu0 0
    %961 = vmatpush1.bf16.msra.mxu0 0
    %962 = vmatprep.subr.bf16.mxu0 0
    %963 = vmatpush1.bf16.msra.mxu0 0
    %964 = vmatprep.subr.bf16.mxu0 0
    %965 = vmatpush1.bf16.msra.mxu0 0
    %966 = vmatprep.subr.bf16.mxu0 0
    %967 = vmatpush1.bf16.msra.mxu0 0
    %968 = vmatprep.subr.bf16.mxu0 0
    %969 = vmatpush1.bf16.msra.mxu0 0
    %970 = vmatprep.subr.bf16.mxu0 0
    %971 = vmatpush1.bf16.msra.mxu0 0
    %972 = vmatprep.subr.bf16.mxu0 0
    %973 = vmatpush1.bf16.msra.mxu0 %v954
    %974 = vmatprep.subr.bf16.mxu0 0
    %975 = vmatpush1.bf16.msra.mxu0 %v953
    %976 = vmatprep.subr.bf16.mxu0 0
    %977 = vmatpush2.bf16.msra.mxu0 0
    %978 = vmatprep.subr.bf16.mxu0 0
    %979 = vmatpush2.bf16.msra.mxu0 0
    %980 = vmatprep.subr.bf16.mxu0 0
    %981 = vmatpush2.bf16.msra.mxu0 0
    %982 = vmatprep.subr.bf16.mxu0 0
    %983 = vmatpush2.bf16.msra.mxu0 0
    %984 = vmatprep.subr.bf16.mxu0 0
    %985 = vmatpush2.bf16.msra.mxu0 0
    %986 = vmatprep.subr.bf16.mxu0 0
    %987 = vmatpush2.bf16.msra.mxu0 0
    %988 = vmatprep.subr.bf16.mxu0 0
    %989 = vmatpush2.bf16.msra.mxu0 0
    %990 = vmatprep.subr.bf16.mxu0 0
    %991 = vmatpush2.bf16.msra.mxu0 0
    %992 = vmatprep.mubr.bf16.mxu0 0
    %993 = vmatmul.mubr.bf16.gmra.mxu0 %v958
    %v994 = vpop.f32.mrf.mxu0
    %v995 = vadd.f32 %v943, %v994
    %v996 = vpop.f32.mrf.mxu0
    %v997 = vpop.f32.mrf.mxu0
    %v998 = vadd.f32 %v943, %v997
    %v999 = vpop.f32.mrf.mxu0
    %1000 = vdwg.mxu0
    %v1001 = vmul.f32 %v995, %v995
    %v1002 = vmul.f32 %v998, %v998
    %v1003 = vmul.f32 %v995, %v1001
    %v1004 = vmul.f32 %v998, %v1002
    %v1005 = vmul.f32 %v1003, 0.044715
    %v1006 = vmul.f32 %v1004, 0.044715
    %v1007 = vadd.f32 %v995, %v1005
    %v1008 = vadd.f32 %v998, %v1006
    %v1009 = vmul.f32 %v1007, 0.7978846
    %v1010 = vmul.f32 %v1008, 0.7978846
    %v1011 = vtanh.pop %v1009
    %v1012 = vtanh.pop %v1010
    %v1013 = vadd.f32 %v1011, 1.0
    %v1014 = vadd.f32 %v1012, 1.0
    %v1015 = vmul.f32 %v1013, 0.5
    %v1016 = vmul.f32 %v1014, 0.5
    %v1017 = vmul.f32 %v995, %v1015
    %v1018 = vmul.f32 %v998, %v1016
    %v1019 = vpack.c.bf16 %v1018, %v1017
    %v1020 = vld [vmem:[%s10] sm:$0xf]
    %v1021 = vld [vmem:[%s10 + $0x4] sm:$0xf]
    %v1022 = vld [vmem:[%s10 + $0x8] sm:$0xf]
    %v1023 = vld [vmem:[%s10 + $0xc] sm:$0xf]
    %v1024 = vld [vmem:[%s10 + $0x10] sm:$0xf]
    %v1025 = vld [vmem:[%s10 + $0x14] sm:$0xf]
    %v1026 = vld [vmem:[%s10 + $0x18] sm:$0xf]
    %v1027 = vld [vmem:[%s10 + $0x1c] sm:$0xf]
    %v1028 = vld [vmem:[%s10 + $0x20] sm:$0xf]
    %v1029 = vld [vmem:[%s10 + $0x24] sm:$0xf]
    %v1030 = vld [vmem:[%s10 + $0x28] sm:$0xf]
    %v1031 = vld [vmem:[%s10 + $0x2c] sm:$0xf]
    %v1032 = vld [vmem:[%s10 + $0x30] sm:$0xf]
    %v1033 = vld [vmem:[%s10 + $0x34] sm:$0xf]
    %v1034 = vld [vmem:[%s10 + $0x38] sm:$0xf]
    %v1035 = vld [vmem:[%s10 + $0x3c] sm:$0xf]
    %v1036 = vld [vmem:[%s11] sm:$0x1]
    %v1038 = vlaneseq
    %v1039 = vshrl.u32 %v1038, 7
    %v1040 = vsub.s32 0, %v1039
    %v1041 = vrot.slane %v1036, %v1040
    %v1059 = vunpack.c.l.b16 %v1020
    %v1060 = vunpack.c.l.b16 %v1021
    %v1061 = vunpack.c.l.b16 %v1022
    %v1062 = vunpack.c.l.b16 %v1023
    %v1063 = vunpack.c.l.b16 %v1024
    %v1064 = vunpack.c.l.b16 %v1025
    %v1065 = vunpack.c.l.b16 %v1026
    %v1066 = vunpack.c.l.b16 %v1027
    %v1067 = vunpack.c.l.b16 %v1028
    %v1068 = vunpack.c.l.b16 %v1029
    %v1069 = vunpack.c.l.b16 %v1030
    %v1070 = vunpack.c.l.b16 %v1031
    %v1071 = vunpack.c.l.b16 %v1032
    %v1072 = vunpack.c.l.b16 %v1033
    %v1073 = vunpack.c.l.b16 %v1034
    %v1074 = vunpack.c.l.b16 %v1035
    %v1075 = vpack.c.b16 %v1060, %v1059
    %v1076 = vpack.c.b16 %v1062, %v1061
    %v1077 = vpack.c.b16 %v1064, %v1063
    %v1078 = vpack.c.b16 %v1066, %v1065
    %v1079 = vpack.c.b16 %v1068, %v1067
    %v1080 = vpack.c.b16 %v1070, %v1069
    %v1081 = vpack.c.b16 %v1072, %v1071
    %v1082 = vpack.c.b16 %v1074, %v1073
    %1091 = vmatprep.subr.bf16.mxu0 0
    %1092 = vmatpush1.bf16.msra.mxu0 %v1082
    %1093 = vmatprep.subr.bf16.mxu0 0
    %1094 = vmatpush1.bf16.msra.mxu0 %v1081
    %1095 = vmatprep.subr.bf16.mxu0 0
    %1096 = vmatpush1.bf16.msra.mxu0 %v1080
    %1097 = vmatprep.subr.bf16.mxu0 0
    %1098 = vmatpush1.bf16.msra.mxu0 %v1079
    %1099 = vmatprep.subr.bf16.mxu0 0
    %1100 = vmatpush1.bf16.msra.mxu0 %v1078
    %1101 = vmatprep.subr.bf16.mxu0 0
    %1102 = vmatpush1.bf16.msra.mxu0 %v1077
    %1103 = vmatprep.subr.bf16.mxu0 0
    %1104 = vmatpush1.bf16.msra.mxu0 %v1076
    %1105 = vmatprep.subr.bf16.mxu0 0
    %1106 = vmatpush1.bf16.msra.mxu0 %v1075
    %1107 = vmatprep.subr.bf16.mxu0 0
    %1108 = vmatpush2.bf16.msra.mxu0 0
    %1109 = vmatprep.subr.bf16.mxu0 0
    %1110 = vmatpush2.bf16.msra.mxu0 0
    %1111 = vmatprep.subr.bf16.mxu0 0
    %1112 = vmatpush2.bf16.msra.mxu0 0
    %1113 = vmatprep.subr.bf16.mxu0 0
    %1114 = vmatpush2.bf16.msra.mxu0 0
    %1115 = vmatprep.subr.bf16.mxu0 0
    %1116 = vmatpush2.bf16.msra.mxu0 0
    %1117 = vmatprep.subr.bf16.mxu0 0
    %1118 = vmatpush2.bf16.msra.mxu0 0
    %1119 = vmatprep.subr.bf16.mxu0 0
    %1120 = vmatpush2.bf16.msra.mxu0 0
    %1121 = vmatprep.subr.bf16.mxu0 0
    %1122 = vmatpush2.bf16.msra.mxu0 0
    %1123 = vmatprep.mubr.bf16.mxu0 0
    %1124 = vmatmul.mubr.bf16.gmra.mxu0 %v1019
    %v1125 = vpop.f32.mrf.mxu0
    %v1126 = vadd.f32 %v1041, %v1125
    %v1127 = vpop.f32.mrf.mxu0
    %v1128 = vpop.f32.mrf.mxu0
    %v1129 = vadd.f32 %v1041, %v1128
    %v1130 = vpop.f32.mrf.mxu0
    %1131 = vdwg.mxu0
    %v1132 = vadd.f32 %v1126, %v931
    %v1133 = vadd.f32 %v1129, %v932
    %v1134 = vld [vmem:[%s12] sm:$0x1]
    %v1135 = vld [vmem:[%s13] sm:$0x1]
    %v1136 = vsel %vm95, %v1132, 0.0
    %1137 = vadd.xlane.f32.xlu0 %v1136
    %v1138 = vpop.xlane.xlu0 %1137
    %v1139 = vsel %vm95, %v1133, 0.0
    %1140 = vadd.xlane.f32.xlu0 %v1139
    %v1141 = vpop.xlane.xlu0 %1140
    %v1142 = vmul.f32 %v1138, %v896
    %v1143 = vmul.f32 %v1141, %v896
    %v1144 = vsub.f32 %v1132, %v1142
    %v1145 = vsub.f32 %v1133, %v1143
    %v1146 = vmul.f32 %v1144, %v1144
    %v1147 = vmul.f32 %v1145, %v1145
    %v1148 = vsel %vm95, %v1146, 0.0
    %1149 = vadd.xlane.f32.xlu0 %v1148
    %v1150 = vpop.xlane.xlu0 %1149
    %v1151 = vsel %vm95, %v1147, 0.0
    %1152 = vadd.xlane.f32.xlu0 %v1151
    %v1153 = vpop.xlane.xlu0 %1152
    %v1154 = vmul.f32 %v1150, %v896
    %v1155 = vmul.f32 %v1153, %v896
    %v1156 = vadd.f32 %v1154, 1e-12
    %v1157 = vadd.f32 %v1155, 1e-12
    %v1158 = vrsqrt.pop %v1156
    %v1159 = vrsqrt.pop %v1157
    %v1160 = vmul.f32 %v1144, %v1158
    %v1161 = vmul.f32 %v1145, %v1159
    %v1163 = vlaneseq
    %v1164 = vshrl.u32 %v1163, 7
    %v1165 = vsub.s32 0, %v1164
    %v1166 = vrot.slane %v1134, %v1165
    %v1168 = vmul.f32 %v1160, %v1166
    %v1169 = vmul.f32 %v1161, %v1166
    %v1171 = vlaneseq
    %v1172 = vshrl.u32 %v1171, 7
    %v1173 = vsub.s32 0, %v1172
    %v1174 = vrot.slane %v1135, %v1173
    %v1176 = vadd.f32 %v1168, %v1174
    %v1177 = vadd.f32 %v1169, %v1174
    %v1178 = vpack.c.bf16 %v1177, %v1176
    %s1179 = scalar_lea.vmem %s2, 16
    %v1180 = vld [vmem:[%s1179] sm:$0xf]
    %v1181 = vld [vmem:[%s1179 + $0x4] sm:$0xf]
    %v1182 = vld [vmem:[%s1179 + $0x8] sm:$0xf]
    %v1183 = vld [vmem:[%s1179 + $0xc] sm:$0xf]
    %s1184 = scalar_lea.vmem %s3, 1
    %v1185 = vld [vmem:[%s1184] sm:$0x1]
    %v1187 = vlaneseq
    %v1188 = vshrl.u32 %v1187, 7
    %v1189 = vsub.s32 0, %v1188
    %v1190 = vrot.slane %v1185, %v1189
    %v1196 = vunpack.c.l.b16 %v1180
    %v1197 = vunpack.c.l.b16 %v1181
    %v1198 = vunpack.c.l.b16 %v1182
    %v1199 = vunpack.c.l.b16 %v1183
    %v1200 = vpack.c.b16 %v1197, %v1196
    %v1201 = vpack.c.b16 %v1199, %v1198
    %v1205 = vsel %vm95, %v1178, 0
    %1207 = vmatprep.subr.bf16.mxu0 0
    %1208 = vmatpush1.bf16.msra.mxu0 0
    %1209 = vmatprep.subr.bf16.mxu0 0
    %1210 = vmatpush1.bf16.msra.mxu0 0
    %1211 = vmatprep.subr.bf16.mxu0 0
    %1212 = vmatpush1.bf16.msra.mxu0 0
    %1213 = vmatprep.subr.bf16.mxu0 0
    %1214 = vmatpush1.bf16.msra.mxu0 0
    %1215 = vmatprep.subr.bf16.mxu0 0
    %1216 = vmatpush1.bf16.msra.mxu0 0
    %1217 = vmatprep.subr.bf16.mxu0 0
    %1218 = vmatpush1.bf16.msra.mxu0 0
    %1219 = vmatprep.subr.bf16.mxu0 0
    %1220 = vmatpush1.bf16.msra.mxu0 %v1201
    %1221 = vmatprep.subr.bf16.mxu0 0
    %1222 = vmatpush1.bf16.msra.mxu0 %v1200
    %1223 = vmatprep.subr.bf16.mxu0 0
    %1224 = vmatpush2.bf16.msra.mxu0 0
    %1225 = vmatprep.subr.bf16.mxu0 0
    %1226 = vmatpush2.bf16.msra.mxu0 0
    %1227 = vmatprep.subr.bf16.mxu0 0
    %1228 = vmatpush2.bf16.msra.mxu0 0
    %1229 = vmatprep.subr.bf16.mxu0 0
    %1230 = vmatpush2.bf16.msra.mxu0 0
    %1231 = vmatprep.subr.bf16.mxu0 0
    %1232 = vmatpush2.bf16.msra.mxu0 0
    %1233 = vmatprep.subr.bf16.mxu0 0
    %1234 = vmatpush2.bf16.msra.mxu0 0
    %1235 = vmatprep.subr.bf16.mxu0 0
    %1236 = vmatpush2.bf16.msra.mxu0 0
    %1237 = vmatprep.subr.bf16.mxu0 0
    %1238 = vmatpush2.bf16.msra.mxu0 0
    %1239 = vmatprep.mubr.bf16.mxu0 0
    %1240 = vmatmul.mubr.bf16.gmra.mxu0 %v1205
    %v1241 = vpop.f32.mrf.mxu0
    %v1242 = vadd.f32 %v1190, %v1241
    %v1243 = vpop.f32.mrf.mxu0
    %v1244 = vpop.f32.mrf.mxu0
    %v1245 = vadd.f32 %v1190, %v1244
    %v1246 = vpop.f32.mrf.mxu0
    %1247 = vdwg.mxu0
    %1250 = vrot.lane.b32.xlu0 %v1242, 112
    %v1251 = vpop.permute.xlu0 %1250
    %1252 = vrot.lane.b32.xlu0 %v1245, 112
    %v1253 = vpop.permute.xlu0 %1252
    %1254 = vrot.lane.b32.xlu0 %v1242, 96
    %v1255 = vpop.permute.xlu0 %1254
    %v1256 = vsel %vm148, %v1242, 0
    %v1258 = vsel %vm148, %v1255, 0
    %1260 = vmatprep.subr.mxu0 0.0
    %1261 = vmatpush1.xpose.msra.mxu0 0.0
    %1262 = vmatprep.subr.mxu0 0.0
    %1263 = vmatpush1.xpose.msra.mxu0 0.0
    %1264 = vmatprep.subr.mxu0 0.0
    %1265 = vmatpush1.xpose.msra.mxu0 0.0
    %1266 = vmatprep.subr.mxu0 0.0
    %1267 = vmatpush1.xpose.msra.mxu0 0.0
    %1268 = vmatprep.subr.mxu0 0.0
    %1269 = vmatpush1.xpose.msra.mxu0 0.0
    %1270 = vmatprep.subr.mxu0 0.0
    %1271 = vmatpush1.xpose.msra.mxu0 0.0
    %1272 = vmatprep.subr.mxu0 0.0
    %1273 = vmatpush1.xpose.msra.mxu0 0.0
    %1274 = vmatprep.subr.mxu0 0.0
    %1275 = vmatpush1.xpose.msra.mxu0 0.0
    %1276 = vmatprep.subr.mxu0 0.0
    %1277 = vmatpush1.xpose.msra.mxu0 0.0
    %1278 = vmatprep.subr.mxu0 0.0
    %1279 = vmatpush1.xpose.msra.mxu0 0.0
    %1280 = vmatprep.subr.mxu0 0.0
    %1281 = vmatpush1.xpose.msra.mxu0 0.0
    %1282 = vmatprep.subr.mxu0 0.0
    %1283 = vmatpush1.xpose.msra.mxu0 0.0
    %1284 = vmatprep.subr.mxu0 0.0
    %1285 = vmatpush1.xpose.msra.mxu0 0.0
    %1286 = vmatprep.subr.mxu0 0.0
    %1287 = vmatpush1.xpose.msra.mxu0 0.0
    %1288 = vmatprep.subr.mxu0 0.0
    %1289 = vmatpush1.xpose.msra.mxu0 0.0
    %1290 = vmatprep.subr.mxu0 0.0
    %1291 = vmatpush1.xpose.msra.mxu0 %v1258
    %1292 = vmatprep.subr.mxu0 0.0
    %1293 = vmatpush2.xpose.msra.mxu0 0.0
    %1294 = vmatprep.subr.mxu0 0.0
    %1295 = vmatpush2.xpose.msra.mxu0 0.0
    %1296 = vmatprep.subr.mxu0 0.0
    %1297 = vmatpush2.xpose.msra.mxu0 0.0
    %1298 = vmatprep.subr.mxu0 0.0
    %1299 = vmatpush2.xpose.msra.mxu0 0.0
    %1300 = vmatprep.subr.mxu0 0.0
    %1301 = vmatpush2.xpose.msra.mxu0 0.0
    %1302 = vmatprep.subr.mxu0 0.0
    %1303 = vmatpush2.xpose.msra.mxu0 0.0
    %1304 = vmatprep.subr.mxu0 0.0
    %1305 = vmatpush2.xpose.msra.mxu0 0.0
    %1306 = vmatprep.subr.mxu0 0.0
    %1307 = vmatpush2.xpose.msra.mxu0 0.0
    %1308 = vmatprep.subr.mxu0 0.0
    %1309 = vmatpush2.xpose.msra.mxu0 0.0
    %1310 = vmatprep.subr.mxu0 0.0
    %1311 = vmatpush2.xpose.msra.mxu0 0.0
    %1312 = vmatprep.subr.mxu0 0.0
    %1313 = vmatpush2.xpose.msra.mxu0 0.0
    %1314 = vmatprep.subr.mxu0 0.0
    %1315 = vmatpush2.xpose.msra.mxu0 0.0
    %1316 = vmatprep.subr.mxu0 0.0
    %1317 = vmatpush2.xpose.msra.mxu0 0.0
    %1318 = vmatprep.subr.mxu0 0.0
    %1319 = vmatpush2.xpose.msra.mxu0 0.0
    %1320 = vmatprep.subr.mxu0 0.0
    %1321 = vmatpush2.xpose.msra.mxu0 0.0
    %1322 = vmatprep.subr.mxu0 0.0
    %1323 = vmatpush2.xpose.msra.mxu0 0.0
    %1324 = vmatprep.mubr.f32.mxu0 0.0
    %1325 = vmatmul.mubr.f32.gmra.mxu0 %v1256
    %v1326 = vpop.f32.mrf.mxu0
    %v1327 = vadd.f32 0.0, %v1326
    %v1328 = vpop.f32.mrf.mxu0
    %1329 = vdwg.mxu0
    %1330 = vrot.lane.b32.xlu0 %v1245, 96
    %v1331 = vpop.permute.xlu0 %1330
    %v1332 = vsel %vm148, %v1245, 0
    %v1334 = vsel %vm148, %v1331, 0
    %1336 = vmatprep.subr.mxu0 0.0
    %1337 = vmatpush1.xpose.msra.mxu0 0.0
    %1338 = vmatprep.subr.mxu0 0.0
    %1339 = vmatpush1.xpose.msra.mxu0 0.0
    %1340 = vmatprep.subr.mxu0 0.0
    %1341 = vmatpush1.xpose.msra.mxu0 0.0
    %1342 = vmatprep.subr.mxu0 0.0
    %1343 = vmatpush1.xpose.msra.mxu0 0.0
    %1344 = vmatprep.subr.mxu0 0.0
    %1345 = vmatpush1.xpose.msra.mxu0 0.0
    %1346 = vmatprep.subr.mxu0 0.0
    %1347 = vmatpush1.xpose.msra.mxu0 0.0
    %1348 = vmatprep.subr.mxu0 0.0
    %1349 = vmatpush1.xpose.msra.mxu0 0.0
    %1350 = vmatprep.subr.mxu0 0.0
    %1351 = vmatpush1.xpose.msra.mxu0 0.0
    %1352 = vmatprep.subr.mxu0 0.0
    %1353 = vmatpush1.xpose.msra.mxu0 0.0
    %1354 = vmatprep.subr.mxu0 0.0
    %1355 = vmatpush1.xpose.msra.mxu0 0.0
    %1356 = vmatprep.subr.mxu0 0.0
    %1357 = vmatpush1.xpose.msra.mxu0 0.0
    %1358 = vmatprep.subr.mxu0 0.0
    %1359 = vmatpush1.xpose.msra.mxu0 0.0
    %1360 = vmatprep.subr.mxu0 0.0
    %1361 = vmatpush1.xpose.msra.mxu0 0.0
    %1362 = vmatprep.subr.mxu0 0.0
    %1363 = vmatpush1.xpose.msra.mxu0 0.0
    %1364 = vmatprep.subr.mxu0 0.0
    %1365 = vmatpush1.xpose.msra.mxu0 0.0
    %1366 = vmatprep.subr.mxu0 0.0
    %1367 = vmatpush1.xpose.msra.mxu0 %v1334
    %1368 = vmatprep.subr.mxu0 0.0
    %1369 = vmatpush2.xpose.msra.mxu0 0.0
    %1370 = vmatprep.subr.mxu0 0.0
    %1371 = vmatpush2.xpose.msra.mxu0 0.0
    %1372 = vmatprep.subr.mxu0 0.0
    %1373 = vmatpush2.xpose.msra.mxu0 0.0
    %1374 = vmatprep.subr.mxu0 0.0
    %1375 = vmatpush2.xpose.msra.mxu0 0.0
    %1376 = vmatprep.subr.mxu0 0.0
    %1377 = vmatpush2.xpose.msra.mxu0 0.0
    %1378 = vmatprep.subr.mxu0 0.0
    %1379 = vmatpush2.xpose.msra.mxu0 0.0
    %1380 = vmatprep.subr.mxu0 0.0
    %1381 = vmatpush2.xpose.msra.mxu0 0.0
    %1382 = vmatprep.subr.mxu0 0.0
    %1383 = vmatpush2.xpose.msra.mxu0 0.0
    %1384 = vmatprep.subr.mxu0 0.0
    %1385 = vmatpush2.xpose.msra.mxu0 0.0
    %1386 = vmatprep.subr.mxu0 0.0
    %1387 = vmatpush2.xpose.msra.mxu0 0.0
    %1388 = vmatprep.subr.mxu0 0.0
    %1389 = vmatpush2.xpose.msra.mxu0 0.0
    %1390 = vmatprep.subr.mxu0 0.0
    %1391 = vmatpush2.xpose.msra.mxu0 0.0
    %1392 = vmatprep.subr.mxu0 0.0
    %1393 = vmatpush2.xpose.msra.mxu0 0.0
    %1394 = vmatprep.subr.mxu0 0.0
    %1395 = vmatpush2.xpose.msra.mxu0 0.0
    %1396 = vmatprep.subr.mxu0 0.0
    %1397 = vmatpush2.xpose.msra.mxu0 0.0
    %1398 = vmatprep.subr.mxu0 0.0
    %1399 = vmatpush2.xpose.msra.mxu0 0.0
    %1400 = vmatprep.mubr.f32.mxu0 0.0
    %1401 = vmatmul.mubr.f32.gmra.mxu0 %v1332
    %v1402 = vpop.f32.mrf.mxu0
    %v1403 = vadd.f32 0.0, %v1402
    %v1404 = vpop.f32.mrf.mxu0
    %1405 = vdwg.mxu0
    %1406 = vrot.lane.b32.xlu0 %v1251, 96
    %v1407 = vpop.permute.xlu0 %1406
    %v1408 = vsel %vm148, %v1251, 0
    %v1410 = vsel %vm148, %v1407, 0
    %1412 = vmatprep.subr.mxu0 0.0
    %1413 = vmatpush1.xpose.msra.mxu0 0.0
    %1414 = vmatprep.subr.mxu0 0.0
    %1415 = vmatpush1.xpose.msra.mxu0 0.0
    %1416 = vmatprep.subr.mxu0 0.0
    %1417 = vmatpush1.xpose.msra.mxu0 0.0
    %1418 = vmatprep.subr.mxu0 0.0
    %1419 = vmatpush1.xpose.msra.mxu0 0.0
    %1420 = vmatprep.subr.mxu0 0.0
    %1421 = vmatpush1.xpose.msra.mxu0 0.0
    %1422 = vmatprep.subr.mxu0 0.0
    %1423 = vmatpush1.xpose.msra.mxu0 0.0
    %1424 = vmatprep.subr.mxu0 0.0
    %1425 = vmatpush1.xpose.msra.mxu0 0.0
    %1426 = vmatprep.subr.mxu0 0.0
    %1427 = vmatpush1.xpose.msra.mxu0 0.0
    %1428 = vmatprep.subr.mxu0 0.0
    %1429 = vmatpush1.xpose.msra.mxu0 0.0
    %1430 = vmatprep.subr.mxu0 0.0
    %1431 = vmatpush1.xpose.msra.mxu0 0.0
    %1432 = vmatprep.subr.mxu0 0.0
    %1433 = vmatpush1.xpose.msra.mxu0 0.0
    %1434 = vmatprep.subr.mxu0 0.0
    %1435 = vmatpush1.xpose.msra.mxu0 0.0
    %1436 = vmatprep.subr.mxu0 0.0
    %1437 = vmatpush1.xpose.msra.mxu0 0.0
    %1438 = vmatprep.subr.mxu0 0.0
    %1439 = vmatpush1.xpose.msra.mxu0 0.0
    %1440 = vmatprep.subr.mxu0 0.0
    %1441 = vmatpush1.xpose.msra.mxu0 0.0
    %1442 = vmatprep.subr.mxu0 0.0
    %1443 = vmatpush1.xpose.msra.mxu0 %v1410
    %1444 = vmatprep.subr.mxu0 0.0
    %1445 = vmatpush2.xpose.msra.mxu0 0.0
    %1446 = vmatprep.subr.mxu0 0.0
    %1447 = vmatpush2.xpose.msra.mxu0 0.0
    %1448 = vmatprep.subr.mxu0 0.0
    %1449 = vmatpush2.xpose.msra.mxu0 0.0
    %1450 = vmatprep.subr.mxu0 0.0
    %1451 = vmatpush2.xpose.msra.mxu0 0.0
    %1452 = vmatprep.subr.mxu0 0.0
    %1453 = vmatpush2.xpose.msra.mxu0 0.0
    %1454 = vmatprep.subr.mxu0 0.0
    %1455 = vmatpush2.xpose.msra.mxu0 0.0
    %1456 = vmatprep.subr.mxu0 0.0
    %1457 = vmatpush2.xpose.msra.mxu0 0.0
    %1458 = vmatprep.subr.mxu0 0.0
    %1459 = vmatpush2.xpose.msra.mxu0 0.0
    %1460 = vmatprep.subr.mxu0 0.0
    %1461 = vmatpush2.xpose.msra.mxu0 0.0
    %1462 = vmatprep.subr.mxu0 0.0
    %1463 = vmatpush2.xpose.msra.mxu0 0.0
    %1464 = vmatprep.subr.mxu0 0.0
    %1465 = vmatpush2.xpose.msra.mxu0 0.0
    %1466 = vmatprep.subr.mxu0 0.0
    %1467 = vmatpush2.xpose.msra.mxu0 0.0
    %1468 = vmatprep.subr.mxu0 0.0
    %1469 = vmatpush2.xpose.msra.mxu0 0.0
    %1470 = vmatprep.subr.mxu0 0.0
    %1471 = vmatpush2.xpose.msra.mxu0 0.0
    %1472 = vmatprep.subr.mxu0 0.0
    %1473 = vmatpush2.xpose.msra.mxu0 0.0
    %1474 = vmatprep.subr.mxu0 0.0
    %1475 = vmatpush2.xpose.msra.mxu0 0.0
    %1476 = vmatprep.mubr.f32.mxu0 0.0
    %1477 = vmatmul.mubr.f32.gmra.mxu0 %v1408
    %v1478 = vpop.f32.mrf.mxu0
    %v1479 = vadd.f32 0.0, %v1478
    %v1480 = vpop.f32.mrf.mxu0
    %1481 = vdwg.mxu0
    %1482 = vrot.lane.b32.xlu0 %v1253, 96
    %v1483 = vpop.permute.xlu0 %1482
    %v1484 = vsel %vm148, %v1253, 0
    %v1486 = vsel %vm148, %v1483, 0
    %1488 = vmatprep.subr.mxu0 0.0
    %1489 = vmatpush1.xpose.msra.mxu0 0.0
    %1490 = vmatprep.subr.mxu0 0.0
    %1491 = vmatpush1.xpose.msra.mxu0 0.0
    %1492 = vmatprep.subr.mxu0 0.0
    %1493 = vmatpush1.xpose.msra.mxu0 0.0
    %1494 = vmatprep.subr.mxu0 0.0
    %1495 = vmatpush1.xpose.msra.mxu0 0.0
    %1496 = vmatprep.subr.mxu0 0.0
    %1497 = vmatpush1.xpose.msra.mxu0 0.0
    %1498 = vmatprep.subr.mxu0 0.0
    %1499 = vmatpush1.xpose.msra.mxu0 0.0
    %1500 = vmatprep.subr.mxu0 0.0
    %1501 = vmatpush1.xpose.msra.mxu0 0.0
    %1502 = vmatprep.subr.mxu0 0.0
    %1503 = vmatpush1.xpose.msra.mxu0 0.0
    %1504 = vmatprep.subr.mxu0 0.0
    %1505 = vmatpush1.xpose.msra.mxu0 0.0
    %1506 = vmatprep.subr.mxu0 0.0
    %1507 = vmatpush1.xpose.msra.mxu0 0.0
    %1508 = vmatprep.subr.mxu0 0.0
    %1509 = vmatpush1.xpose.msra.mxu0 0.0
    %1510 = vmatprep.subr.mxu0 0.0
    %1511 = vmatpush1.xpose.msra.mxu0 0.0
    %1512 = vmatprep.subr.mxu0 0.0
    %1513 = vmatpush1.xpose.msra.mxu0 0.0
    %1514 = vmatprep.subr.mxu0 0.0
    %1515 = vmatpush1.xpose.msra.mxu0 0.0
    %1516 = vmatprep.subr.mxu0 0.0
    %1517 = vmatpush1.xpose.msra.mxu0 0.0
    %1518 = vmatprep.subr.mxu0 0.0
    %1519 = vmatpush1.xpose.msra.mxu0 %v1486
    %1520 = vmatprep.subr.mxu0 0.0
    %1521 = vmatpush2.xpose.msra.mxu0 0.0
    %1522 = vmatprep.subr.mxu0 0.0
    %1523 = vmatpush2.xpose.msra.mxu0 0.0
    %1524 = vmatprep.subr.mxu0 0.0
    %1525 = vmatpush2.xpose.msra.mxu0 0.0
    %1526 = vmatprep.subr.mxu0 0.0
    %1527 = vmatpush2.xpose.msra.mxu0 0.0
    %1528 = vmatprep.subr.mxu0 0.0
    %1529 = vmatpush2.xpose.msra.mxu0 0.0
    %1530 = vmatprep.subr.mxu0 0.0
    %1531 = vmatpush2.xpose.msra.mxu0 0.0
    %1532 = vmatprep.subr.mxu0 0.0
    %1533 = vmatpush2.xpose.msra.mxu0 0.0
    %1534 = vmatprep.subr.mxu0 0.0
    %1535 = vmatpush2.xpose.msra.mxu0 0.0
    %1536 = vmatprep.subr.mxu0 0.0
    %1537 = vmatpush2.xpose.msra.mxu0 0.0
    %1538 = vmatprep.subr.mxu0 0.0
    %1539 = vmatpush2.xpose.msra.mxu0 0.0
    %1540 = vmatprep.subr.mxu0 0.0
    %1541 = vmatpush2.xpose.msra.mxu0 0.0
    %1542 = vmatprep.subr.mxu0 0.0
    %1543 = vmatpush2.xpose.msra.mxu0 0.0
    %1544 = vmatprep.subr.mxu0 0.0
    %1545 = vmatpush2.xpose.msra.mxu0 0.0
    %1546 = vmatprep.subr.mxu0 0.0
    %1547 = vmatpush2.xpose.msra.mxu0 0.0
    %1548 = vmatprep.subr.mxu0 0.0
    %1549 = vmatpush2.xpose.msra.mxu0 0.0
    %1550 = vmatprep.subr.mxu0 0.0
    %1551 = vmatpush2.xpose.msra.mxu0 0.0
    %1552 = vmatprep.mubr.f32.mxu0 0.0
    %1553 = vmatmul.mubr.f32.gmra.mxu0 %v1484
    %v1554 = vpop.f32.mrf.mxu0
    %v1555 = vadd.f32 0.0, %v1554
    %v1556 = vpop.f32.mrf.mxu0
    %1557 = vdwg.mxu0
    %v1558 = vmul.f32 %v1327, 0.25
    %v1559 = vmul.f32 %v1403, 0.25
    %v1560 = vmul.f32 %v1479, 0.25
    %v1561 = vmul.f32 %v1555, 0.25
    %v1562 = vadd.f32 %v1558, %v64
    %v1563 = vadd.f32 %v1559, %v68
    %v1564 = vadd.f32 %v1560, %v64
    %v1565 = vadd.f32 %v1561, %v68
    %v1566 = vsel %vm459, %v1562, -inf
    %1567 = vmax.xlane.f32.xlu0 %v1566
    %v1568 = vpop.xlane.xlu0 %1567
    %v1569 = vsel %vm459, %v1563, -inf
    %1570 = vmax.xlane.f32.xlu0 %v1569
    %v1571 = vpop.xlane.xlu0 %1570
    %v1572 = vsel %vm459, %v1564, -inf
    %1573 = vmax.xlane.f32.xlu0 %v1572
    %v1574 = vpop.xlane.xlu0 %1573
    %v1575 = vsel %vm459, %v1565, -inf
    %1576 = vmax.xlane.f32.xlu0 %v1575
    %v1577 = vpop.xlane.xlu0 %1576
    %v1578 = vsub.f32 %v1562, %v1568
    %v1579 = vsub.f32 %v1563, %v1571
    %v1580 = vsub.f32 %v1564, %v1574
    %v1581 = vsub.f32 %v1565, %v1577
    %v1582 = vmul.f32 %v1578, 1.442695
    %v1583 = vpow.pop %v1582
    %v1584 = vmul.f32 %v1579, 1.442695
    %v1585 = vpow.pop %v1584
    %v1586 = vmul.f32 %v1580, 1.442695
    %v1587 = vpow.pop %v1586
    %v1588 = vmul.f32 %v1581, 1.442695
    %v1589 = vpow.pop %v1588
    %v1590 = vsel %vm459, %v1583, 0.0
    %1591 = vadd.xlane.f32.xlu0 %v1590
    %v1592 = vpop.xlane.xlu0 %1591
    %v1593 = vsel %vm459, %v1585, 0.0
    %1594 = vadd.xlane.f32.xlu0 %v1593
    %v1595 = vpop.xlane.xlu0 %1594
    %v1596 = vsel %vm459, %v1587, 0.0
    %1597 = vadd.xlane.f32.xlu0 %v1596
    %v1598 = vpop.xlane.xlu0 %1597
    %v1599 = vsel %vm459, %v1589, 0.0
    %1600 = vadd.xlane.f32.xlu0 %v1599
    %v1601 = vpop.xlane.xlu0 %1600
    %v1602 = vrcp.pop %v1592
    %v1603 = vrcp.pop %v1595
    %v1604 = vrcp.pop %v1598
    %v1605 = vrcp.pop %v1601
    %v1606 = vmul.f32 %v1583, %v1602
    %v1607 = vmul.f32 %v1585, %v1603
    %v1608 = vmul.f32 %v1587, %v1604
    %v1609 = vmul.f32 %v1589, %v1605
    %1610 = vrot.lane.b32.xlu0 %v1242, 64
    %v1611 = vpop.permute.xlu0 %1610
    %v1614 = vsel %vm459, %v1606, 0
    %1616 = vmatprep.subr.mxu0 0.0
    %1617 = vmatpush1.msra.mxu0 0.0
    %1618 = vmatprep.subr.mxu0 0.0
    %1619 = vmatpush1.msra.mxu0 0.0
    %1620 = vmatprep.subr.mxu0 0.0
    %1621 = vmatpush1.msra.mxu0 0.0
    %1622 = vmatprep.subr.mxu0 0.0
    %1623 = vmatpush1.msra.mxu0 0.0
    %1624 = vmatprep.subr.mxu0 0.0
    %1625 = vmatpush1.msra.mxu0 0.0
    %1626 = vmatprep.subr.mxu0 0.0
    %1627 = vmatpush1.msra.mxu0 0.0
    %1628 = vmatprep.subr.mxu0 0.0
    %1629 = vmatpush1.msra.mxu0 0.0
    %1630 = vmatprep.subr.mxu0 0.0
    %1631 = vmatpush1.msra.mxu0 0.0
    %1632 = vmatprep.subr.mxu0 0.0
    %1633 = vmatpush1.msra.mxu0 0.0
    %1634 = vmatprep.subr.mxu0 0.0
    %1635 = vmatpush1.msra.mxu0 0.0
    %1636 = vmatprep.subr.mxu0 0.0
    %1637 = vmatpush1.msra.mxu0 0.0
    %1638 = vmatprep.subr.mxu0 0.0
    %1639 = vmatpush1.msra.mxu0 0.0
    %1640 = vmatprep.subr.mxu0 0.0
    %1641 = vmatpush1.msra.mxu0 0.0
    %1642 = vmatprep.subr.mxu0 0.0
    %1643 = vmatpush1.msra.mxu0 0.0
    %1644 = vmatprep.subr.mxu0 0.0
    %1645 = vmatpush1.msra.mxu0 0.0
    %1646 = vmatprep.subr.mxu0 0.0
    %1647 = vmatpush1.msra.mxu0 %v1611
    %1648 = vmatprep.subr.mxu0 0.0
    %1649 = vmatpush2.msra.mxu0 0.0
    %1650 = vmatprep.subr.mxu0 0.0
    %1651 = vmatpush2.msra.mxu0 0.0
    %1652 = vmatprep.subr.mxu0 0.0
    %1653 = vmatpush2.msra.mxu0 0.0
    %1654 = vmatprep.subr.mxu0 0.0
    %1655 = vmatpush2.msra.mxu0 0.0
    %1656 = vmatprep.subr.mxu0 0.0
    %1657 = vmatpush2.msra.mxu0 0.0
    %1658 = vmatprep.subr.mxu0 0.0
    %1659 = vmatpush2.msra.mxu0 0.0
    %1660 = vmatprep.subr.mxu0 0.0
    %1661 = vmatpush2.msra.mxu0 0.0
    %1662 = vmatprep.subr.mxu0 0.0
    %1663 = vmatpush2.msra.mxu0 0.0
    %1664 = vmatprep.subr.mxu0 0.0
    %1665 = vmatpush2.msra.mxu0 0.0
    %1666 = vmatprep.subr.mxu0 0.0
    %1667 = vmatpush2.msra.mxu0 0.0
    %1668 = vmatprep.subr.mxu0 0.0
    %1669 = vmatpush2.msra.mxu0 0.0
    %1670 = vmatprep.subr.mxu0 0.0
    %1671 = vmatpush2.msra.mxu0 0.0
    %1672 = vmatprep.subr.mxu0 0.0
    %1673 = vmatpush2.msra.mxu0 0.0
    %1674 = vmatprep.subr.mxu0 0.0
    %1675 = vmatpush2.msra.mxu0 0.0
    %1676 = vmatprep.subr.mxu0 0.0
    %1677 = vmatpush2.msra.mxu0 0.0
    %1678 = vmatprep.subr.mxu0 0.0
    %1679 = vmatpush2.msra.mxu0 0.0
    %1680 = vmatprep.mubr.f32.mxu0 0.0
    %1681 = vmatmul.mubr.f32.gmra.mxu0 %v1614
    %v1682 = vpop.f32.mrf.mxu0
    %v1683 = vadd.f32 0.0, %v1682
    %v1684 = vpop.f32.mrf.mxu0
    %1685 = vdwg.mxu0
    %1686 = vrot.lane.b32.xlu0 %v1245, 64
    %v1687 = vpop.permute.xlu0 %1686
    %v1690 = vsel %vm459, %v1607, 0
    %1692 = vmatprep.subr.mxu0 0.0
    %1693 = vmatpush1.msra.mxu0 0.0
    %1694 = vmatprep.subr.mxu0 0.0
    %1695 = vmatpush1.msra.mxu0 0.0
    %1696 = vmatprep.subr.mxu0 0.0
    %1697 = vmatpush1.msra.mxu0 0.0
    %1698 = vmatprep.subr.mxu0 0.0
    %1699 = vmatpush1.msra.mxu0 0.0
    %1700 = vmatprep.subr.mxu0 0.0
    %1701 = vmatpush1.msra.mxu0 0.0
    %1702 = vmatprep.subr.mxu0 0.0
    %1703 = vmatpush1.msra.mxu0 0.0
    %1704 = vmatprep.subr.mxu0 0.0
    %1705 = vmatpush1.msra.mxu0 0.0
    %1706 = vmatprep.subr.mxu0 0.0
    %1707 = vmatpush1.msra.mxu0 0.0
    %1708 = vmatprep.subr.mxu0 0.0
    %1709 = vmatpush1.msra.mxu0 0.0
    %1710 = vmatprep.subr.mxu0 0.0
    %1711 = vmatpush1.msra.mxu0 0.0
    %1712 = vmatprep.subr.mxu0 0.0
    %1713 = vmatpush1.msra.mxu0 0.0
    %1714 = vmatprep.subr.mxu0 0.0
    %1715 = vmatpush1.msra.mxu0 0.0
    %1716 = vmatprep.subr.mxu0 0.0
    %1717 = vmatpush1.msra.mxu0 0.0
    %1718 = vmatprep.subr.mxu0 0.0
    %1719 = vmatpush1.msra.mxu0 0.0
    %1720 = vmatprep.subr.mxu0 0.0
    %1721 = vmatpush1.msra.mxu0 0.0
    %1722 = vmatprep.subr.mxu0 0.0
    %1723 = vmatpush1.msra.mxu0 %v1687
    %1724 = vmatprep.subr.mxu0 0.0
    %1725 = vmatpush2.msra.mxu0 0.0
    %1726 = vmatprep.subr.mxu0 0.0
    %1727 = vmatpush2.msra.mxu0 0.0
    %1728 = vmatprep.subr.mxu0 0.0
    %1729 = vmatpush2.msra.mxu0 0.0
    %1730 = vmatprep.subr.mxu0 0.0
    %1731 = vmatpush2.msra.mxu0 0.0
    %1732 = vmatprep.subr.mxu0 0.0
    %1733 = vmatpush2.msra.mxu0 0.0
    %1734 = vmatprep.subr.mxu0 0.0
    %1735 = vmatpush2.msra.mxu0 0.0
    %1736 = vmatprep.subr.mxu0 0.0
    %1737 = vmatpush2.msra.mxu0 0.0
    %1738 = vmatprep.subr.mxu0 0.0
    %1739 = vmatpush2.msra.mxu0 0.0
    %1740 = vmatprep.subr.mxu0 0.0
    %1741 = vmatpush2.msra.mxu0 0.0
    %1742 = vmatprep.subr.mxu0 0.0
    %1743 = vmatpush2.msra.mxu0 0.0
    %1744 = vmatprep.subr.mxu0 0.0
    %1745 = vmatpush2.msra.mxu0 0.0
    %1746 = vmatprep.subr.mxu0 0.0
    %1747 = vmatpush2.msra.mxu0 0.0
    %1748 = vmatprep.subr.mxu0 0.0
    %1749 = vmatpush2.msra.mxu0 0.0
    %1750 = vmatprep.subr.mxu0 0.0
    %1751 = vmatpush2.msra.mxu0 0.0
    %1752 = vmatprep.subr.mxu0 0.0
    %1753 = vmatpush2.msra.mxu0 0.0
    %1754 = vmatprep.subr.mxu0 0.0
    %1755 = vmatpush2.msra.mxu0 0.0
    %1756 = vmatprep.mubr.f32.mxu0 0.0
    %1757 = vmatmul.mubr.f32.gmra.mxu0 %v1690
    %v1758 = vpop.f32.mrf.mxu0
    %v1759 = vadd.f32 0.0, %v1758
    %v1760 = vpop.f32.mrf.mxu0
    %1761 = vdwg.mxu0
    %1762 = vrot.lane.b32.xlu0 %v1251, 64
    %v1763 = vpop.permute.xlu0 %1762
    %v1766 = vsel %vm459, %v1608, 0
    %1768 = vmatprep.subr.mxu0 0.0
    %1769 = vmatpush1.msra.mxu0 0.0
    %1770 = vmatprep.subr.mxu0 0.0
    %1771 = vmatpush1.msra.mxu0 0.0
    %1772 = vmatprep.subr.mxu0 0.0
    %1773 = vmatpush1.msra.mxu0 0.0
    %1774 = vmatprep.subr.mxu0 0.0
    %1775 = vmatpush1.msra.mxu0 0.0
    %1776 = vmatprep.subr.mxu0 0.0
    %1777 = vmatpush1.msra.mxu0 0.0
    %1778 = vmatprep.subr.mxu0 0.0
    %1779 = vmatpush1.msra.mxu0 0.0
    %1780 = vmatprep.subr.mxu0 0.0
    %1781 = vmatpush1.msra.mxu0 0.0
    %1782 = vmatprep.subr.mxu0 0.0
    %1783 = vmatpush1.msra.mxu0 0.0
    %1784 = vmatprep.subr.mxu0 0.0
    %1785 = vmatpush1.msra.mxu0 0.0
    %1786 = vmatprep.subr.mxu0 0.0
    %1787 = vmatpush1.msra.mxu0 0.0
    %1788 = vmatprep.subr.mxu0 0.0
    %1789 = vmatpush1.msra.mxu0 0.0
    %1790 = vmatprep.subr.mxu0 0.0
    %1791 = vmatpush1.msra.mxu0 0.0
    %1792 = vmatprep.subr.mxu0 0.0
    %1793 = vmatpush1.msra.mxu0 0.0
    %1794 = vmatprep.subr.mxu0 0.0
    %1795 = vmatpush1.msra.mxu0 0.0
    %1796 = vmatprep.subr.mxu0 0.0
    %1797 = vmatpush1.msra.mxu0 0.0
    %1798 = vmatprep.subr.mxu0 0.0
    %1799 = vmatpush1.msra.mxu0 %v1763
    %1800 = vmatprep.subr.mxu0 0.0
    %1801 = vmatpush2.msra.mxu0 0.0
    %1802 = vmatprep.subr.mxu0 0.0
    %1803 = vmatpush2.msra.mxu0 0.0
    %1804 = vmatprep.subr.mxu0 0.0
    %1805 = vmatpush2.msra.mxu0 0.0
    %1806 = vmatprep.subr.mxu0 0.0
    %1807 = vmatpush2.msra.mxu0 0.0
    %1808 = vmatprep.subr.mxu0 0.0
    %1809 = vmatpush2.msra.mxu0 0.0
    %1810 = vmatprep.subr.mxu0 0.0
    %1811 = vmatpush2.msra.mxu0 0.0
    %1812 = vmatprep.subr.mxu0 0.0
    %1813 = vmatpush2.msra.mxu0 0.0
    %1814 = vmatprep.subr.mxu0 0.0
    %1815 = vmatpush2.msra.mxu0 0.0
    %1816 = vmatprep.subr.mxu0 0.0
    %1817 = vmatpush2.msra.mxu0 0.0
    %1818 = vmatprep.subr.mxu0 0.0
    %1819 = vmatpush2.msra.mxu0 0.0
    %1820 = vmatprep.subr.mxu0 0.0
    %1821 = vmatpush2.msra.mxu0 0.0
    %1822 = vmatprep.subr.mxu0 0.0
    %1823 = vmatpush2.msra.mxu0 0.0
    %1824 = vmatprep.subr.mxu0 0.0
    %1825 = vmatpush2.msra.mxu0 0.0
    %1826 = vmatprep.subr.mxu0 0.0
    %1827 = vmatpush2.msra.mxu0 0.0
    %1828 = vmatprep.subr.mxu0 0.0
    %1829 = vmatpush2.msra.mxu0 0.0
    %1830 = vmatprep.subr.mxu0 0.0
    %1831 = vmatpush2.msra.mxu0 0.0
    %1832 = vmatprep.mubr.f32.mxu0 0.0
    %1833 = vmatmul.mubr.f32.gmra.mxu0 %v1766
    %v1834 = vpop.f32.mrf.mxu0
    %v1835 = vadd.f32 0.0, %v1834
    %v1836 = vpop.f32.mrf.mxu0
    %1837 = vdwg.mxu0
    %1838 = vrot.lane.b32.xlu0 %v1253, 64
    %v1839 = vpop.permute.xlu0 %1838
    %v1842 = vsel %vm459, %v1609, 0
    %1844 = vmatprep.subr.mxu0 0.0
    %1845 = vmatpush1.msra.mxu0 0.0
    %1846 = vmatprep.subr.mxu0 0.0
    %1847 = vmatpush1.msra.mxu0 0.0
    %1848 = vmatprep.subr.mxu0 0.0
    %1849 = vmatpush1.msra.mxu0 0.0
    %1850 = vmatprep.subr.mxu0 0.0
    %1851 = vmatpush1.msra.mxu0 0.0
    %1852 = vmatprep.subr.mxu0 0.0
    %1853 = vmatpush1.msra.mxu0 0.0
    %1854 = vmatprep.subr.mxu0 0.0
    %1855 = vmatpush1.msra.mxu0 0.0
    %1856 = vmatprep.subr.mxu0 0.0
    %1857 = vmatpush1.msra.mxu0 0.0
    %1858 = vmatprep.subr.mxu0 0.0
    %1859 = vmatpush1.msra.mxu0 0.0
    %1860 = vmatprep.subr.mxu0 0.0
    %1861 = vmatpush1.msra.mxu0 0.0
    %1862 = vmatprep.subr.mxu0 0.0
    %1863 = vmatpush1.msra.mxu0 0.0
    %1864 = vmatprep.subr.mxu0 0.0
    %1865 = vmatpush1.msra.mxu0 0.0
    %1866 = vmatprep.subr.mxu0 0.0
    %1867 = vmatpush1.msra.mxu0 0.0
    %1868 = vmatprep.subr.mxu0 0.0
    %1869 = vmatpush1.msra.mxu0 0.0
    %1870 = vmatprep.subr.mxu0 0.0
    %1871 = vmatpush1.msra.mxu0 0.0
    %1872 = vmatprep.subr.mxu0 0.0
    %1873 = vmatpush1.msra.mxu0 0.0
    %1874 = vmatprep.subr.mxu0 0.0
    %1875 = vmatpush1.msra.mxu0 %v1839
    %1876 = vmatprep.subr.mxu0 0.0
    %1877 = vmatpush2.msra.mxu0 0.0
    %1878 = vmatprep.subr.mxu0 0.0
    %1879 = vmatpush2.msra.mxu0 0.0
    %1880 = vmatprep.subr.mxu0 0.0
    %1881 = vmatpush2.msra.mxu0 0.0
    %1882 = vmatprep.subr.mxu0 0.0
    %1883 = vmatpush2.msra.mxu0 0.0
    %1884 = vmatprep.subr.mxu0 0.0
    %1885 = vmatpush2.msra.mxu0 0.0
    %1886 = vmatprep.subr.mxu0 0.0
    %1887 = vmatpush2.msra.mxu0 0.0
    %1888 = vmatprep.subr.mxu0 0.0
    %1889 = vmatpush2.msra.mxu0 0.0
    %1890 = vmatprep.subr.mxu0 0.0
    %1891 = vmatpush2.msra.mxu0 0.0
    %1892 = vmatprep.subr.mxu0 0.0
    %1893 = vmatpush2.msra.mxu0 0.0
    %1894 = vmatprep.subr.mxu0 0.0
    %1895 = vmatpush2.msra.mxu0 0.0
    %1896 = vmatprep.subr.mxu0 0.0
    %1897 = vmatpush2.msra.mxu0 0.0
    %1898 = vmatprep.subr.mxu0 0.0
    %1899 = vmatpush2.msra.mxu0 0.0
    %1900 = vmatprep.subr.mxu0 0.0
    %1901 = vmatpush2.msra.mxu0 0.0
    %1902 = vmatprep.subr.mxu0 0.0
    %1903 = vmatpush2.msra.mxu0 0.0
    %1904 = vmatprep.subr.mxu0 0.0
    %1905 = vmatpush2.msra.mxu0 0.0
    %1906 = vmatprep.subr.mxu0 0.0
    %1907 = vmatpush2.msra.mxu0 0.0
    %1908 = vmatprep.mubr.f32.mxu0 0.0
    %1909 = vmatmul.mubr.f32.gmra.mxu0 %v1842
    %v1910 = vpop.f32.mrf.mxu0
    %v1911 = vadd.f32 0.0, %v1910
    %v1912 = vpop.f32.mrf.mxu0
    %1913 = vdwg.mxu0
    %1916 = vrot.lane.b32.xlu0 %v1835, 16
    %v1917 = vpop.permute.xlu0 %1916
    %1918 = vrot.lane.b32.xlu0 %v1911, 16
    %v1919 = vpop.permute.xlu0 %1918
    %v1922 = vsel %vm148, %v1683, %v1917
    %v1923 = vsel %vm148, %v1759, %v1919
    %v1924 = vpack.c.bf16 %v1923, %v1922
    %s1925 = scalar_lea.vmem %s4, 16
    %v1926 = vld [vmem:[%s1925] sm:$0xf]
    %v1927 = vld [vmem:[%s1925 + $0x4] sm:$0xf]
    %v1928 = vld [vmem:[%s1925 + $0x8] sm:$0xf]
    %v1929 = vld [vmem:[%s1925 + $0xc] sm:$0xf]
    %s1930 = scalar_lea.vmem %s5, 1
    %v1931 = vld [vmem:[%s1930] sm:$0x1]
    %v1933 = vlaneseq
    %v1934 = vshrl.u32 %v1933, 7
    %v1935 = vsub.s32 0, %v1934
    %v1936 = vrot.slane %v1931, %v1935
    %v1942 = vunpack.c.l.b16 %v1926
    %v1943 = vunpack.c.l.b16 %v1927
    %v1944 = vunpack.c.l.b16 %v1928
    %v1945 = vunpack.c.l.b16 %v1929
    %v1946 = vpack.c.b16 %v1943, %v1942
    %v1947 = vpack.c.b16 %v1945, %v1944
    %v1951 = vsel %vm95, %v1924, 0
    %1953 = vmatprep.subr.bf16.mxu0 0
    %1954 = vmatpush1.bf16.msra.mxu0 0
    %1955 = vmatprep.subr.bf16.mxu0 0
    %1956 = vmatpush1.bf16.msra.mxu0 0
    %1957 = vmatprep.subr.bf16.mxu0 0
    %1958 = vmatpush1.bf16.msra.mxu0 0
    %1959 = vmatprep.subr.bf16.mxu0 0
    %1960 = vmatpush1.bf16.msra.mxu0 0
    %1961 = vmatprep.subr.bf16.mxu0 0
    %1962 = vmatpush1.bf16.msra.mxu0 0
    %1963 = vmatprep.subr.bf16.mxu0 0
    %1964 = vmatpush1.bf16.msra.mxu0 0
    %1965 = vmatprep.subr.bf16.mxu0 0
    %1966 = vmatpush1.bf16.msra.mxu0 %v1947
    %1967 = vmatprep.subr.bf16.mxu0 0
    %1968 = vmatpush1.bf16.msra.mxu0 %v1946
    %1969 = vmatprep.subr.bf16.mxu0 0
    %1970 = vmatpush2.bf16.msra.mxu0 0
    %1971 = vmatprep.subr.bf16.mxu0 0
    %1972 = vmatpush2.bf16.msra.mxu0 0
    %1973 = vmatprep.subr.bf16.mxu0 0
    %1974 = vmatpush2.bf16.msra.mxu0 0
    %1975 = vmatprep.subr.bf16.mxu0 0
    %1976 = vmatpush2.bf16.msra.mxu0 0
    %1977 = vmatprep.subr.bf16.mxu0 0
    %1978 = vmatpush2.bf16.msra.mxu0 0
    %1979 = vmatprep.subr.bf16.mxu0 0
    %1980 = vmatpush2.bf16.msra.mxu0 0
    %1981 = vmatprep.subr.bf16.mxu0 0
    %1982 = vmatpush2.bf16.msra.mxu0 0
    %1983 = vmatprep.subr.bf16.mxu0 0
    %1984 = vmatpush2.bf16.msra.mxu0 0
    %1985 = vmatprep.mubr.bf16.mxu0 0
    %1986 = vmatmul.mubr.bf16.gmra.mxu0 %v1951
    %v1987 = vpop.f32.mrf.mxu0
    %v1988 = vadd.f32 %v1936, %v1987
    %v1989 = vpop.f32.mrf.mxu0
    %v1990 = vpop.f32.mrf.mxu0
    %v1991 = vadd.f32 %v1936, %v1990
    %v1992 = vpop.f32.mrf.mxu0
    %1993 = vdwg.mxu0
    %v1994 = vadd.f32 %v1988, %v1176
    %v1995 = vadd.f32 %v1991, %v1177
    %s1996 = scalar_lea.vmem %s6, 1
    %v1997 = vld [vmem:[%s1996] sm:$0x1]
    %s1998 = scalar_lea.vmem %s7, 1
    %v1999 = vld [vmem:[%s1998] sm:$0x1]
    %v2000 = vsel %vm95, %v1994, 0.0
    %2001 = vadd.xlane.f32.xlu0 %v2000
    %v2002 = vpop.xlane.xlu0 %2001
    %v2003 = vsel %vm95, %v1995, 0.0
    %2004 = vadd.xlane.f32.xlu0 %v2003
    %v2005 = vpop.xlane.xlu0 %2004
    %v2006 = vmul.f32 %v2002, %v896
    %v2007 = vmul.f32 %v2005, %v896
    %v2008 = vsub.f32 %v1994, %v2006
    %v2009 = vsub.f32 %v1995, %v2007
    %v2010 = vmul.f32 %v2008, %v2008
    %v2011 = vmul.f32 %v2009, %v2009
    %v2012 = vsel %vm95, %v2010, 0.0
    %2013 = vadd.xlane.f32.xlu0 %v2012
    %v2014 = vpop.xlane.xlu0 %2013
    %v2015 = vsel %vm95, %v2011, 0.0
    %2016 = vadd.xlane.f32.xlu0 %v2015
    %v2017 = vpop.xlane.xlu0 %2016
    %v2018 = vmul.f32 %v2014, %v896
    %v2019 = vmul.f32 %v2017, %v896
    %v2020 = vadd.f32 %v2018, 1e-12
    %v2021 = vadd.f32 %v2019, 1e-12
    %v2022 = vrsqrt.pop %v2020
    %v2023 = vrsqrt.pop %v2021
    %v2024 = vmul.f32 %v2008, %v2022
    %v2025 = vmul.f32 %v2009, %v2023
    %v2027 = vlaneseq
    %v2028 = vshrl.u32 %v2027, 7
    %v2029 = vsub.s32 0, %v2028
    %v2030 = vrot.slane %v1997, %v2029
    %v2032 = vmul.f32 %v2024, %v2030
    %v2033 = vmul.f32 %v2025, %v2030
    %v2035 = vlaneseq
    %v2036 = vshrl.u32 %v2035, 7
    %v2037 = vsub.s32 0, %v2036
    %v2038 = vrot.slane %v1999, %v2037
    %v2040 = vadd.f32 %v2032, %v2038
    %v2041 = vadd.f32 %v2033, %v2038
    %v2042 = vpack.c.bf16 %v2041, %v2040
    %s2043 = scalar_lea.vmem %s8, 16
    %v2044 = vld [vmem:[%s2043] sm:$0xf]
    %v2045 = vld [vmem:[%s2043 + $0x4] sm:$0xf]
    %v2046 = vld [vmem:[%s2043 + $0x8] sm:$0xf]
    %v2047 = vld [vmem:[%s2043 + $0xc] sm:$0xf]
    %s2048 = scalar_lea.vmem %s9, 1
    %v2049 = vld [vmem:[%s2048] sm:$0x1]
    %v2051 = vlaneseq
    %v2052 = vshrl.u32 %v2051, 7
    %v2053 = vsub.s32 0, %v2052
    %v2054 = vrot.slane %v2049, %v2053
    %v2060 = vunpack.c.l.b16 %v2044
    %v2061 = vunpack.c.l.b16 %v2045
    %v2062 = vunpack.c.l.b16 %v2046
    %v2063 = vunpack.c.l.b16 %v2047
    %v2064 = vpack.c.b16 %v2061, %v2060
    %v2065 = vpack.c.b16 %v2063, %v2062
    %v2069 = vsel %vm95, %v2042, 0
    %2071 = vmatprep.subr.bf16.mxu0 0
    %2072 = vmatpush1.bf16.msra.mxu0 0
    %2073 = vmatprep.subr.bf16.mxu0 0
    %2074 = vmatpush1.bf16.msra.mxu0 0
    %2075 = vmatprep.subr.bf16.mxu0 0
    %2076 = vmatpush1.bf16.msra.mxu0 0
    %2077 = vmatprep.subr.bf16.mxu0 0
    %2078 = vmatpush1.bf16.msra.mxu0 0
    %2079 = vmatprep.subr.bf16.mxu0 0
    %2080 = vmatpush1.bf16.msra.mxu0 0
    %2081 = vmatprep.subr.bf16.mxu0 0
    %2082 = vmatpush1.bf16.msra.mxu0 0
    %2083 = vmatprep.subr.bf16.mxu0 0
    %2084 = vmatpush1.bf16.msra.mxu0 %v2065
    %2085 = vmatprep.subr.bf16.mxu0 0
    %2086 = vmatpush1.bf16.msra.mxu0 %v2064
    %2087 = vmatprep.subr.bf16.mxu0 0
    %2088 = vmatpush2.bf16.msra.mxu0 0
    %2089 = vmatprep.subr.bf16.mxu0 0
    %2090 = vmatpush2.bf16.msra.mxu0 0
    %2091 = vmatprep.subr.bf16.mxu0 0
    %2092 = vmatpush2.bf16.msra.mxu0 0
    %2093 = vmatprep.subr.bf16.mxu0 0
    %2094 = vmatpush2.bf16.msra.mxu0 0
    %2095 = vmatprep.subr.bf16.mxu0 0
    %2096 = vmatpush2.bf16.msra.mxu0 0
    %2097 = vmatprep.subr.bf16.mxu0 0
    %2098 = vmatpush2.bf16.msra.mxu0 0
    %2099 = vmatprep.subr.bf16.mxu0 0
    %2100 = vmatpush2.bf16.msra.mxu0 0
    %2101 = vmatprep.subr.bf16.mxu0 0
    %2102 = vmatpush2.bf16.msra.mxu0 0
    %2103 = vmatprep.mubr.bf16.mxu0 0
    %2104 = vmatmul.mubr.bf16.gmra.mxu0 %v2069
    %v2105 = vpop.f32.mrf.mxu0
    %v2106 = vadd.f32 %v2054, %v2105
    %v2107 = vpop.f32.mrf.mxu0
    %v2108 = vpop.f32.mrf.mxu0
    %v2109 = vadd.f32 %v2054, %v2108
    %v2110 = vpop.f32.mrf.mxu0
    %2111 = vdwg.mxu0
    %v2112 = vmul.f32 %v2106, %v2106
    %v2113 = vmul.f32 %v2109, %v2109
    %v2114 = vmul.f32 %v2106, %v2112
    %v2115 = vmul.f32 %v2109, %v2113
    %v2116 = vmul.f32 %v2114, 0.044715
    %v2117 = vmul.f32 %v2115, 0.044715
    %v2118 = vadd.f32 %v2106, %v2116
    %v2119 = vadd.f32 %v2109, %v2117
    %v2120 = vmul.f32 %v2118, 0.7978846
    %v2121 = vmul.f32 %v2119, 0.7978846
    %v2122 = vtanh.pop %v2120
    %v2123 = vtanh.pop %v2121
    %v2124 = vadd.f32 %v2122, 1.0
    %v2125 = vadd.f32 %v2123, 1.0
    %v2126 = vmul.f32 %v2124, 0.5
    %v2127 = vmul.f32 %v2125, 0.5
    %v2128 = vmul.f32 %v2106, %v2126
    %v2129 = vmul.f32 %v2109, %v2127
    %v2130 = vpack.c.bf16 %v2129, %v2128
    %s2131 = scalar_lea.vmem %s10, 64
    %v2132 = vld [vmem:[%s2131] sm:$0xf]
    %v2133 = vld [vmem:[%s2131 + $0x4] sm:$0xf]
    %v2134 = vld [vmem:[%s2131 + $0x8] sm:$0xf]
    %v2135 = vld [vmem:[%s2131 + $0xc] sm:$0xf]
    %v2136 = vld [vmem:[%s2131 + $0x10] sm:$0xf]
    %v2137 = vld [vmem:[%s2131 + $0x14] sm:$0xf]
    %v2138 = vld [vmem:[%s2131 + $0x18] sm:$0xf]
    %v2139 = vld [vmem:[%s2131 + $0x1c] sm:$0xf]
    %v2140 = vld [vmem:[%s2131 + $0x20] sm:$0xf]
    %v2141 = vld [vmem:[%s2131 + $0x24] sm:$0xf]
    %v2142 = vld [vmem:[%s2131 + $0x28] sm:$0xf]
    %v2143 = vld [vmem:[%s2131 + $0x2c] sm:$0xf]
    %v2144 = vld [vmem:[%s2131 + $0x30] sm:$0xf]
    %v2145 = vld [vmem:[%s2131 + $0x34] sm:$0xf]
    %v2146 = vld [vmem:[%s2131 + $0x38] sm:$0xf]
    %v2147 = vld [vmem:[%s2131 + $0x3c] sm:$0xf]
    %s2148 = scalar_lea.vmem %s11, 1
    %v2149 = vld [vmem:[%s2148] sm:$0x1]
    %v2151 = vlaneseq
    %v2152 = vshrl.u32 %v2151, 7
    %v2153 = vsub.s32 0, %v2152
    %v2154 = vrot.slane %v2149, %v2153
    %v2172 = vunpack.c.l.b16 %v2132
    %v2173 = vunpack.c.l.b16 %v2133
    %v2174 = vunpack.c.l.b16 %v2134
    %v2175 = vunpack.c.l.b16 %v2135
    %v2176 = vunpack.c.l.b16 %v2136
    %v2177 = vunpack.c.l.b16 %v2137
    %v2178 = vunpack.c.l.b16 %v2138
    %v2179 = vunpack.c.l.b16 %v2139
    %v2180 = vunpack.c.l.b16 %v2140
    %v2181 = vunpack.c.l.b16 %v2141
    %v2182 = vunpack.c.l.b16 %v2142
    %v2183 = vunpack.c.l.b16 %v2143
    %v2184 = vunpack.c.l.b16 %v2144
    %v2185 = vunpack.c.l.b16 %v2145
    %v2186 = vunpack.c.l.b16 %v2146
    %v2187 = vunpack.c.l.b16 %v2147
    %v2188 = vpack.c.b16 %v2173, %v2172
    %v2189 = vpack.c.b16 %v2175, %v2174
    %v2190 = vpack.c.b16 %v2177, %v2176
    %v2191 = vpack.c.b16 %v2179, %v2178
    %v2192 = vpack.c.b16 %v2181, %v2180
    %v2193 = vpack.c.b16 %v2183, %v2182
    %v2194 = vpack.c.b16 %v2185, %v2184
    %v2195 = vpack.c.b16 %v2187, %v2186
    %2204 = vmatprep.subr.bf16.mxu0 0
    %2205 = vmatpush1.bf16.msra.mxu0 %v2195
    %2206 = vmatprep.subr.bf16.mxu0 0
    %2207 = vmatpush1.bf16.msra.mxu0 %v2194
    %2208 = vmatprep.subr.bf16.mxu0 0
    %2209 = vmatpush1.bf16.msra.mxu0 %v2193
    %2210 = vmatprep.subr.bf16.mxu0 0
    %2211 = vmatpush1.bf16.msra.mxu0 %v2192
    %2212 = vmatprep.subr.bf16.mxu0 0
    %2213 = vmatpush1.bf16.msra.mxu0 %v2191
    %2214 = vmatprep.subr.bf16.mxu0 0
    %2215 = vmatpush1.bf16.msra.mxu0 %v2190
    %2216 = vmatprep.subr.bf16.mxu0 0
    %2217 = vmatpush1.bf16.msra.mxu0 %v2189
    %2218 = vmatprep.subr.bf16.mxu0 0
    %2219 = vmatpush1.bf16.msra.mxu0 %v2188
    %2220 = vmatprep.subr.bf16.mxu0 0
    %2221 = vmatpush2.bf16.msra.mxu0 0
    %2222 = vmatprep.subr.bf16.mxu0 0
    %2223 = vmatpush2.bf16.msra.mxu0 0
    %2224 = vmatprep.subr.bf16.mxu0 0
    %2225 = vmatpush2.bf16.msra.mxu0 0
    %2226 = vmatprep.subr.bf16.mxu0 0
    %2227 = vmatpush2.bf16.msra.mxu0 0
    %2228 = vmatprep.subr.bf16.mxu0 0
    %2229 = vmatpush2.bf16.msra.mxu0 0
    %2230 = vmatprep.subr.bf16.mxu0 0
    %2231 = vmatpush2.bf16.msra.mxu0 0
    %2232 = vmatprep.subr.bf16.mxu0 0
    %2233 = vmatpush2.bf16.msra.mxu0 0
    %2234 = vmatprep.subr.bf16.mxu0 0
    %2235 = vmatpush2.bf16.msra.mxu0 0
    %2236 = vmatprep.mubr.bf16.mxu0 0
    %2237 = vmatmul.mubr.bf16.gmra.mxu0 %v2130
    %v2238 = vpop.f32.mrf.mxu0
    %v2239 = vadd.f32 %v2154, %v2238
    %v2240 = vpop.f32.mrf.mxu0
    %v2241 = vpop.f32.mrf.mxu0
    %v2242 = vadd.f32 %v2154, %v2241
    %v2243 = vpop.f32.mrf.mxu0
    %2244 = vdwg.mxu0
    %v2245 = vadd.f32 %v2239, %v2040
    %v2246 = vadd.f32 %v2242, %v2041
    %s2247 = scalar_lea.vmem %s12, 1
    %v2248 = vld [vmem:[%s2247] sm:$0x1]
    %s2249 = scalar_lea.vmem %s13, 1
    %v2250 = vld [vmem:[%s2249] sm:$0x1]
    %v2251 = vsel %vm95, %v2245, 0.0
    %2252 = vadd.xlane.f32.xlu0 %v2251
    %v2253 = vpop.xlane.xlu0 %2252
    %v2254 = vsel %vm95, %v2246, 0.0
    %2255 = vadd.xlane.f32.xlu0 %v2254
    %v2256 = vpop.xlane.xlu0 %2255
    %v2257 = vmul.f32 %v2253, %v896
    %v2258 = vmul.f32 %v2256, %v896
    %v2259 = vsub.f32 %v2245, %v2257
    %v2260 = vsub.f32 %v2246, %v2258
    %v2261 = vmul.f32 %v2259, %v2259
    %v2262 = vmul.f32 %v2260, %v2260
    %v2263 = vsel %vm95, %v2261, 0.0
    %2264 = vadd.xlane.f32.xlu0 %v2263
    %v2265 = vpop.xlane.xlu0 %2264
    %v2266 = vsel %vm95, %v2262, 0.0
    %2267 = vadd.xlane.f32.xlu0 %v2266
    %v2268 = vpop.xlane.xlu0 %2267
    %v2269 = vmul.f32 %v2265, %v896
    %v2270 = vmul.f32 %v2268, %v896
    %v2271 = vadd.f32 %v2269, 1e-12
    %v2272 = vadd.f32 %v2270, 1e-12
    %v2273 = vrsqrt.pop %v2271
    %v2274 = vrsqrt.pop %v2272
    %v2275 = vmul.f32 %v2259, %v2273
    %v2276 = vmul.f32 %v2260, %v2274
    %v2278 = vlaneseq
    %v2279 = vshrl.u32 %v2278, 7
    %v2280 = vsub.s32 0, %v2279
    %v2281 = vrot.slane %v2248, %v2280
    %v2283 = vmul.f32 %v2275, %v2281
    %v2284 = vmul.f32 %v2276, %v2281
    %v2286 = vlaneseq
    %v2287 = vshrl.u32 %v2286, 7
    %v2288 = vsub.s32 0, %v2287
    %v2289 = vrot.slane %v2250, %v2288
    %v2291 = vadd.f32 %v2283, %v2289
    %v2292 = vadd.f32 %v2284, %v2289
    %v2293 = vpack.c.bf16 %v2292, %v2291
    %s2294 = scalar_lea.vmem %s2, 32
    %v2295 = vld [vmem:[%s2294] sm:$0xf]
    %v2296 = vld [vmem:[%s2294 + $0x4] sm:$0xf]
    %v2297 = vld [vmem:[%s2294 + $0x8] sm:$0xf]
    %v2298 = vld [vmem:[%s2294 + $0xc] sm:$0xf]
    %s2299 = scalar_lea.vmem %s3, 2
    %v2300 = vld [vmem:[%s2299] sm:$0x1]
    %v2302 = vlaneseq
    %v2303 = vshrl.u32 %v2302, 7
    %v2304 = vsub.s32 0, %v2303
    %v2305 = vrot.slane %v2300, %v2304
    %v2311 = vunpack.c.l.b16 %v2295
    %v2312 = vunpack.c.l.b16 %v2296
    %v2313 = vunpack.c.l.b16 %v2297
    %v2314 = vunpack.c.l.b16 %v2298
    %v2315 = vpack.c.b16 %v2312, %v2311
    %v2316 = vpack.c.b16 %v2314, %v2313
    %v2320 = vsel %vm95, %v2293, 0
    %2322 = vmatprep.subr.bf16.mxu0 0
    %2323 = vmatpush1.bf16.msra.mxu0 0
    %2324 = vmatprep.subr.bf16.mxu0 0
    %2325 = vmatpush1.bf16.msra.mxu0 0
    %2326 = vmatprep.subr.bf16.mxu0 0
    %2327 = vmatpush1.bf16.msra.mxu0 0
    %2328 = vmatprep.subr.bf16.mxu0 0
    %2329 = vmatpush1.bf16.msra.mxu0 0
    %2330 = vmatprep.subr.bf16.mxu0 0
    %2331 = vmatpush1.bf16.msra.mxu0 0
    %2332 = vmatprep.subr.bf16.mxu0 0
    %2333 = vmatpush1.bf16.msra.mxu0 0
    %2334 = vmatprep.subr.bf16.mxu0 0
    %2335 = vmatpush1.bf16.msra.mxu0 %v2316
    %2336 = vmatprep.subr.bf16.mxu0 0
    %2337 = vmatpush1.bf16.msra.mxu0 %v2315
    %2338 = vmatprep.subr.bf16.mxu0 0
    %2339 = vmatpush2.bf16.msra.mxu0 0
    %2340 = vmatprep.subr.bf16.mxu0 0
    %2341 = vmatpush2.bf16.msra.mxu0 0
    %2342 = vmatprep.subr.bf16.mxu0 0
    %2343 = vmatpush2.bf16.msra.mxu0 0
    %2344 = vmatprep.subr.bf16.mxu0 0
    %2345 = vmatpush2.bf16.msra.mxu0 0
    %2346 = vmatprep.subr.bf16.mxu0 0
    %2347 = vmatpush2.bf16.msra.mxu0 0
    %2348 = vmatprep.subr.bf16.mxu0 0
    %2349 = vmatpush2.bf16.msra.mxu0 0
    %2350 = vmatprep.subr.bf16.mxu0 0
    %2351 = vmatpush2.bf16.msra.mxu0 0
    %2352 = vmatprep.subr.bf16.mxu0 0
    %2353 = vmatpush2.bf16.msra.mxu0 0
    %2354 = vmatprep.mubr.bf16.mxu0 0
    %2355 = vmatmul.mubr.bf16.gmra.mxu0 %v2320
    %v2356 = vpop.f32.mrf.mxu0
    %v2357 = vadd.f32 %v2305, %v2356
    %v2358 = vpop.f32.mrf.mxu0
    %v2359 = vpop.f32.mrf.mxu0
    %v2360 = vadd.f32 %v2305, %v2359
    %v2361 = vpop.f32.mrf.mxu0
    %2362 = vdwg.mxu0
    %2365 = vrot.lane.b32.xlu0 %v2357, 112
    %v2366 = vpop.permute.xlu0 %2365
    %2367 = vrot.lane.b32.xlu0 %v2360, 112
    %v2368 = vpop.permute.xlu0 %2367
    %2369 = vrot.lane.b32.xlu0 %v2357, 96
    %v2370 = vpop.permute.xlu0 %2369
    %v2371 = vsel %vm148, %v2357, 0
    %v2373 = vsel %vm148, %v2370, 0
    %2375 = vmatprep.subr.mxu0 0.0
    %2376 = vmatpush1.xpose.msra.mxu0 0.0
    %2377 = vmatprep.subr.mxu0 0.0
    %2378 = vmatpush1.xpose.msra.mxu0 0.0
    %2379 = vmatprep.subr.mxu0 0.0
    %2380 = vmatpush1.xpose.msra.mxu0 0.0
    %2381 = vmatprep.subr.mxu0 0.0
    %2382 = vmatpush1.xpose.msra.mxu0 0.0
    %2383 = vmatprep.subr.mxu0 0.0
    %2384 = vmatpush1.xpose.msra.mxu0 0.0
    %2385 = vmatprep.subr.mxu0 0.0
    %2386 = vmatpush1.xpose.msra.mxu0 0.0
    %2387 = vmatprep.subr.mxu0 0.0
    %2388 = vmatpush1.xpose.msra.mxu0 0.0
    %2389 = vmatprep.subr.mxu0 0.0
    %2390 = vmatpush1.xpose.msra.mxu0 0.0
    %2391 = vmatprep.subr.mxu0 0.0
    %2392 = vmatpush1.xpose.msra.mxu0 0.0
    %2393 = vmatprep.subr.mxu0 0.0
    %2394 = vmatpush1.xpose.msra.mxu0 0.0
    %2395 = vmatprep.subr.mxu0 0.0
    %2396 = vmatpush1.xpose.msra.mxu0 0.0
    %2397 = vmatprep.subr.mxu0 0.0
    %2398 = vmatpush1.xpose.msra.mxu0 0.0
    %2399 = vmatprep.subr.mxu0 0.0
    %2400 = vmatpush1.xpose.msra.mxu0 0.0
    %2401 = vmatprep.subr.mxu0 0.0
    %2402 = vmatpush1.xpose.msra.mxu0 0.0
    %2403 = vmatprep.subr.mxu0 0.0
    %2404 = vmatpush1.xpose.msra.mxu0 0.0
    %2405 = vmatprep.subr.mxu0 0.0
    %2406 = vmatpush1.xpose.msra.mxu0 %v2373
    %2407 = vmatprep.subr.mxu0 0.0
    %2408 = vmatpush2.xpose.msra.mxu0 0.0
    %2409 = vmatprep.subr.mxu0 0.0
    %2410 = vmatpush2.xpose.msra.mxu0 0.0
    %2411 = vmatprep.subr.mxu0 0.0
    %2412 = vmatpush2.xpose.msra.mxu0 0.0
    %2413 = vmatprep.subr.mxu0 0.0
    %2414 = vmatpush2.xpose.msra.mxu0 0.0
    %2415 = vmatprep.subr.mxu0 0.0
    %2416 = vmatpush2.xpose.msra.mxu0 0.0
    %2417 = vmatprep.subr.mxu0 0.0
    %2418 = vmatpush2.xpose.msra.mxu0 0.0
    %2419 = vmatprep.subr.mxu0 0.0
    %2420 = vmatpush2.xpose.msra.mxu0 0.0
    %2421 = vmatprep.subr.mxu0 0.0
    %2422 = vmatpush2.xpose.msra.mxu0 0.0
    %2423 = vmatprep.subr.mxu0 0.0
    %2424 = vmatpush2.xpose.msra.mxu0 0.0
    %2425 = vmatprep.subr.mxu0 0.0
    %2426 = vmatpush2.xpose.msra.mxu0 0.0
    %2427 = vmatprep.subr.mxu0 0.0
    %2428 = vmatpush2.xpose.msra.mxu0 0.0
    %2429 = vmatprep.subr.mxu0 0.0
    %2430 = vmatpush2.xpose.msra.mxu0 0.0
    %2431 = vmatprep.subr.mxu0 0.0
    %2432 = vmatpush2.xpose.msra.mxu0 0.0
    %2433 = vmatprep.subr.mxu0 0.0
    %2434 = vmatpush2.xpose.msra.mxu0 0.0
    %2435 = vmatprep.subr.mxu0 0.0
    %2436 = vmatpush2.xpose.msra.mxu0 0.0
    %2437 = vmatprep.subr.mxu0 0.0
    %2438 = vmatpush2.xpose.msra.mxu0 0.0
    %2439 = vmatprep.mubr.f32.mxu0 0.0
    %2440 = vmatmul.mubr.f32.gmra.mxu0 %v2371
    %v2441 = vpop.f32.mrf.mxu0
    %v2442 = vadd.f32 0.0, %v2441
    %v2443 = vpop.f32.mrf.mxu0
    %2444 = vdwg.mxu0
    %2445 = vrot.lane.b32.xlu0 %v2360, 96
    %v2446 = vpop.permute.xlu0 %2445
    %v2447 = vsel %vm148, %v2360, 0
    %v2449 = vsel %vm148, %v2446, 0
    %2451 = vmatprep.subr.mxu0 0.0
    %2452 = vmatpush1.xpose.msra.mxu0 0.0
    %2453 = vmatprep.subr.mxu0 0.0
    %2454 = vmatpush1.xpose.msra.mxu0 0.0
    %2455 = vmatprep.subr.mxu0 0.0
    %2456 = vmatpush1.xpose.msra.mxu0 0.0
    %2457 = vmatprep.subr.mxu0 0.0
    %2458 = vmatpush1.xpose.msra.mxu0 0.0
    %2459 = vmatprep.subr.mxu0 0.0
    %2460 = vmatpush1.xpose.msra.mxu0 0.0
    %2461 = vmatprep.subr.mxu0 0.0
    %2462 = vmatpush1.xpose.msra.mxu0 0.0
    %2463 = vmatprep.subr.mxu0 0.0
    %2464 = vmatpush1.xpose.msra.mxu0 0.0
    %2465 = vmatprep.subr.mxu0 0.0
    %2466 = vmatpush1.xpose.msra.mxu0 0.0
    %2467 = vmatprep.subr.mxu0 0.0
    %2468 = vmatpush1.xpose.msra.mxu0 0.0
    %2469 = vmatprep.subr.mxu0 0.0
    %2470 = vmatpush1.xpose.msra.mxu0 0.0
    %2471 = vmatprep.subr.mxu0 0.0
    %2472 = vmatpush1.xpose.msra.mxu0 0.0
    %2473 = vmatprep.subr.mxu0 0.0
    %2474 = vmatpush1.xpose.msra.mxu0 0.0
    %2475 = vmatprep.subr.mxu0 0.0
    %2476 = vmatpush1.xpose.msra.mxu0 0.0
    %2477 = vmatprep.subr.mxu0 0.0
    %2478 = vmatpush1.xpose.msra.mxu0 0.0
    %2479 = vmatprep.subr.mxu0 0.0
    %2480 = vmatpush1.xpose.msra.mxu0 0.0
    %2481 = vmatprep.subr.mxu0 0.0
    %2482 = vmatpush1.xpose.msra.mxu0 %v2449
    %2483 = vmatprep.subr.mxu0 0.0
    %2484 = vmatpush2.xpose.msra.mxu0 0.0
    %2485 = vmatprep.subr.mxu0 0.0
    %2486 = vmatpush2.xpose.msra.mxu0 0.0
    %2487 = vmatprep.subr.mxu0 0.0
    %2488 = vmatpush2.xpose.msra.mxu0 0.0
    %2489 = vmatprep.subr.mxu0 0.0
    %2490 = vmatpush2.xpose.msra.mxu0 0.0
    %2491 = vmatprep.subr.mxu0 0.0
    %2492 = vmatpush2.xpose.msra.mxu0 0.0
    %2493 = vmatprep.subr.mxu0 0.0
    %2494 = vmatpush2.xpose.msra.mxu0 0.0
    %2495 = vmatprep.subr.mxu0 0.0
    %2496 = vmatpush2.xpose.msra.mxu0 0.0
    %2497 = vmatprep.subr.mxu0 0.0
    %2498 = vmatpush2.xpose.msra.mxu0 0.0
    %2499 = vmatprep.subr.mxu0 0.0
    %2500 = vmatpush2.xpose.msra.mxu0 0.0
    %2501 = vmatprep.subr.mxu0 0.0
    %2502 = vmatpush2.xpose.msra.mxu0 0.0
    %2503 = vmatprep.subr.mxu0 0.0
    %2504 = vmatpush2.xpose.msra.mxu0 0.0
    %2505 = vmatprep.subr.mxu0 0.0
    %2506 = vmatpush2.xpose.msra.mxu0 0.0
    %2507 = vmatprep.subr.mxu0 0.0
    %2508 = vmatpush2.xpose.msra.mxu0 0.0
    %2509 = vmatprep.subr.mxu0 0.0
    %2510 = vmatpush2.xpose.msra.mxu0 0.0
    %2511 = vmatprep.subr.mxu0 0.0
    %2512 = vmatpush2.xpose.msra.mxu0 0.0
    %2513 = vmatprep.subr.mxu0 0.0
    %2514 = vmatpush2.xpose.msra.mxu0 0.0
    %2515 = vmatprep.mubr.f32.mxu0 0.0
    %2516 = vmatmul.mubr.f32.gmra.mxu0 %v2447
    %v2517 = vpop.f32.mrf.mxu0
    %v2518 = vadd.f32 0.0, %v2517
    %v2519 = vpop.f32.mrf.mxu0
    %2520 = vdwg.mxu0
    %2521 = vrot.lane.b32.xlu0 %v2366, 96
    %v2522 = vpop.permute.xlu0 %2521
    %v2523 = vsel %vm148, %v2366, 0
    %v2525 = vsel %vm148, %v2522, 0
    %2527 = vmatprep.subr.mxu0 0.0
    %2528 = vmatpush1.xpose.msra.mxu0 0.0
    %2529 = vmatprep.subr.mxu0 0.0
    %2530 = vmatpush1.xpose.msra.mxu0 0.0
    %2531 = vmatprep.subr.mxu0 0.0
    %2532 = vmatpush1.xpose.msra.mxu0 0.0
    %2533 = vmatprep.subr.mxu0 0.0
    %2534 = vmatpush1.xpose.msra.mxu0 0.0
    %2535 = vmatprep.subr.mxu0 0.0
    %2536 = vmatpush1.xpose.msra.mxu0 0.0
    %2537 = vmatprep.subr.mxu0 0.0
    %2538 = vmatpush1.xpose.msra.mxu0 0.0
    %2539 = vmatprep.subr.mxu0 0.0
    %2540 = vmatpush1.xpose.msra.mxu0 0.0
    %2541 = vmatprep.subr.mxu0 0.0
    %2542 = vmatpush1.xpose.msra.mxu0 0.0
    %2543 = vmatprep.subr.mxu0 0.0
    %2544 = vmatpush1.xpose.msra.mxu0 0.0
    %2545 = vmatprep.subr.mxu0 0.0
    %2546 = vmatpush1.xpose.msra.mxu0 0.0
    %2547 = vmatprep.subr.mxu0 0.0
    %2548 = vmatpush1.xpose.msra.mxu0 0.0
    %2549 = vmatprep.subr.mxu0 0.0
    %2550 = vmatpush1.xpose.msra.mxu0 0.0
    %2551 = vmatprep.subr.mxu0 0.0
    %2552 = vmatpush1.xpose.msra.mxu0 0.0
    %2553 = vmatprep.subr.mxu0 0.0
    %2554 = vmatpush1.xpose.msra.mxu0 0.0
    %2555 = vmatprep.subr.mxu0 0.0
    %2556 = vmatpush1.xpose.msra.mxu0 0.0
    %2557 = vmatprep.subr.mxu0 0.0
    %2558 = vmatpush1.xpose.msra.mxu0 %v2525
    %2559 = vmatprep.subr.mxu0 0.0
    %2560 = vmatpush2.xpose.msra.mxu0 0.0
    %2561 = vmatprep.subr.mxu0 0.0
    %2562 = vmatpush2.xpose.msra.mxu0 0.0
    %2563 = vmatprep.subr.mxu0 0.0
    %2564 = vmatpush2.xpose.msra.mxu0 0.0
    %2565 = vmatprep.subr.mxu0 0.0
    %2566 = vmatpush2.xpose.msra.mxu0 0.0
    %2567 = vmatprep.subr.mxu0 0.0
    %2568 = vmatpush2.xpose.msra.mxu0 0.0
    %2569 = vmatprep.subr.mxu0 0.0
    %2570 = vmatpush2.xpose.msra.mxu0 0.0
    %2571 = vmatprep.subr.mxu0 0.0
    %2572 = vmatpush2.xpose.msra.mxu0 0.0
    %2573 = vmatprep.subr.mxu0 0.0
    %2574 = vmatpush2.xpose.msra.mxu0 0.0
    %2575 = vmatprep.subr.mxu0 0.0
    %2576 = vmatpush2.xpose.msra.mxu0 0.0
    %2577 = vmatprep.subr.mxu0 0.0
    %2578 = vmatpush2.xpose.msra.mxu0 0.0
    %2579 = vmatprep.subr.mxu0 0.0
    %2580 = vmatpush2.xpose.msra.mxu0 0.0
    %2581 = vmatprep.subr.mxu0 0.0
    %2582 = vmatpush2.xpose.msra.mxu0 0.0
    %2583 = vmatprep.subr.mxu0 0.0
    %2584 = vmatpush2.xpose.msra.mxu0 0.0
    %2585 = vmatprep.subr.mxu0 0.0
    %2586 = vmatpush2.xpose.msra.mxu0 0.0
    %2587 = vmatprep.subr.mxu0 0.0
    %2588 = vmatpush2.xpose.msra.mxu0 0.0
    %2589 = vmatprep.subr.mxu0 0.0
    %2590 = vmatpush2.xpose.msra.mxu0 0.0
    %2591 = vmatprep.mubr.f32.mxu0 0.0
    %2592 = vmatmul.mubr.f32.gmra.mxu0 %v2523
    %v2593 = vpop.f32.mrf.mxu0
    %v2594 = vadd.f32 0.0, %v2593
    %v2595 = vpop.f32.mrf.mxu0
    %2596 = vdwg.mxu0
    %2597 = vrot.lane.b32.xlu0 %v2368, 96
    %v2598 = vpop.permute.xlu0 %2597
    %v2599 = vsel %vm148, %v2368, 0
    %v2601 = vsel %vm148, %v2598, 0
    %2603 = vmatprep.subr.mxu0 0.0
    %2604 = vmatpush1.xpose.msra.mxu0 0.0
    %2605 = vmatprep.subr.mxu0 0.0
    %2606 = vmatpush1.xpose.msra.mxu0 0.0
    %2607 = vmatprep.subr.mxu0 0.0
    %2608 = vmatpush1.xpose.msra.mxu0 0.0
    %2609 = vmatprep.subr.mxu0 0.0
    %2610 = vmatpush1.xpose.msra.mxu0 0.0
    %2611 = vmatprep.subr.mxu0 0.0
    %2612 = vmatpush1.xpose.msra.mxu0 0.0
    %2613 = vmatprep.subr.mxu0 0.0
    %2614 = vmatpush1.xpose.msra.mxu0 0.0
    %2615 = vmatprep.subr.mxu0 0.0
    %2616 = vmatpush1.xpose.msra.mxu0 0.0
    %2617 = vmatprep.subr.mxu0 0.0
    %2618 = vmatpush1.xpose.msra.mxu0 0.0
    %2619 = vmatprep.subr.mxu0 0.0
    %2620 = vmatpush1.xpose.msra.mxu0 0.0
    %2621 = vmatprep.subr.mxu0 0.0
    %2622 = vmatpush1.xpose.msra.mxu0 0.0
    %2623 = vmatprep.subr.mxu0 0.0
    %2624 = vmatpush1.xpose.msra.mxu0 0.0
    %2625 = vmatprep.subr.mxu0 0.0
    %2626 = vmatpush1.xpose.msra.mxu0 0.0
    %2627 = vmatprep.subr.mxu0 0.0
    %2628 = vmatpush1.xpose.msra.mxu0 0.0
    %2629 = vmatprep.subr.mxu0 0.0
    %2630 = vmatpush1.xpose.msra.mxu0 0.0
    %2631 = vmatprep.subr.mxu0 0.0
    %2632 = vmatpush1.xpose.msra.mxu0 0.0
    %2633 = vmatprep.subr.mxu0 0.0
    %2634 = vmatpush1.xpose.msra.mxu0 %v2601
    %2635 = vmatprep.subr.mxu0 0.0
    %2636 = vmatpush2.xpose.msra.mxu0 0.0
    %2637 = vmatprep.subr.mxu0 0.0
    %2638 = vmatpush2.xpose.msra.mxu0 0.0
    %2639 = vmatprep.subr.mxu0 0.0
    %2640 = vmatpush2.xpose.msra.mxu0 0.0
    %2641 = vmatprep.subr.mxu0 0.0
    %2642 = vmatpush2.xpose.msra.mxu0 0.0
    %2643 = vmatprep.subr.mxu0 0.0
    %2644 = vmatpush2.xpose.msra.mxu0 0.0
    %2645 = vmatprep.subr.mxu0 0.0
    %2646 = vmatpush2.xpose.msra.mxu0 0.0
    %2647 = vmatprep.subr.mxu0 0.0
    %2648 = vmatpush2.xpose.msra.mxu0 0.0
    %2649 = vmatprep.subr.mxu0 0.0
    %2650 = vmatpush2.xpose.msra.mxu0 0.0
    %2651 = vmatprep.subr.mxu0 0.0
    %2652 = vmatpush2.xpose.msra.mxu0 0.0
    %2653 = vmatprep.subr.mxu0 0.0
    %2654 = vmatpush2.xpose.msra.mxu0 0.0
    %2655 = vmatprep.subr.mxu0 0.0
    %2656 = vmatpush2.xpose.msra.mxu0 0.0
    %2657 = vmatprep.subr.mxu0 0.0
    %2658 = vmatpush2.xpose.msra.mxu0 0.0
    %2659 = vmatprep.subr.mxu0 0.0
    %2660 = vmatpush2.xpose.msra.mxu0 0.0
    %2661 = vmatprep.subr.mxu0 0.0
    %2662 = vmatpush2.xpose.msra.mxu0 0.0
    %2663 = vmatprep.subr.mxu0 0.0
    %2664 = vmatpush2.xpose.msra.mxu0 0.0
    %2665 = vmatprep.subr.mxu0 0.0
    %2666 = vmatpush2.xpose.msra.mxu0 0.0
    %2667 = vmatprep.mubr.f32.mxu0 0.0
    %2668 = vmatmul.mubr.f32.gmra.mxu0 %v2599
    %v2669 = vpop.f32.mrf.mxu0
    %v2670 = vadd.f32 0.0, %v2669
    %v2671 = vpop.f32.mrf.mxu0
    %2672 = vdwg.mxu0
    %v2673 = vmul.f32 %v2442, 0.25
    %v2674 = vmul.f32 %v2518, 0.25
    %v2675 = vmul.f32 %v2594, 0.25
    %v2676 = vmul.f32 %v2670, 0.25
    %v2677 = vadd.f32 %v2673, %v64
    %v2678 = vadd.f32 %v2674, %v68
    %v2679 = vadd.f32 %v2675, %v64
    %v2680 = vadd.f32 %v2676, %v68
    %v2681 = vsel %vm459, %v2677, -inf
    %2682 = vmax.xlane.f32.xlu0 %v2681
    %v2683 = vpop.xlane.xlu0 %2682
    %v2684 = vsel %vm459, %v2678, -inf
    %2685 = vmax.xlane.f32.xlu0 %v2684
    %v2686 = vpop.xlane.xlu0 %2685
    %v2687 = vsel %vm459, %v2679, -inf
    %2688 = vmax.xlane.f32.xlu0 %v2687
    %v2689 = vpop.xlane.xlu0 %2688
    %v2690 = vsel %vm459, %v2680, -inf
    %2691 = vmax.xlane.f32.xlu0 %v2690
    %v2692 = vpop.xlane.xlu0 %2691
    %v2693 = vsub.f32 %v2677, %v2683
    %v2694 = vsub.f32 %v2678, %v2686
    %v2695 = vsub.f32 %v2679, %v2689
    %v2696 = vsub.f32 %v2680, %v2692
    %v2697 = vmul.f32 %v2693, 1.442695
    %v2698 = vpow.pop %v2697
    %v2699 = vmul.f32 %v2694, 1.442695
    %v2700 = vpow.pop %v2699
    %v2701 = vmul.f32 %v2695, 1.442695
    %v2702 = vpow.pop %v2701
    %v2703 = vmul.f32 %v2696, 1.442695
    %v2704 = vpow.pop %v2703
    %v2705 = vsel %vm459, %v2698, 0.0
    %2706 = vadd.xlane.f32.xlu0 %v2705
    %v2707 = vpop.xlane.xlu0 %2706
    %v2708 = vsel %vm459, %v2700, 0.0
    %2709 = vadd.xlane.f32.xlu0 %v2708
    %v2710 = vpop.xlane.xlu0 %2709
    %v2711 = vsel %vm459, %v2702, 0.0
    %2712 = vadd.xlane.f32.xlu0 %v2711
    %v2713 = vpop.xlane.xlu0 %2712
    %v2714 = vsel %vm459, %v2704, 0.0
    %2715 = vadd.xlane.f32.xlu0 %v2714
    %v2716 = vpop.xlane.xlu0 %2715
    %v2717 = vrcp.pop %v2707
    %v2718 = vrcp.pop %v2710
    %v2719 = vrcp.pop %v2713
    %v2720 = vrcp.pop %v2716
    %v2721 = vmul.f32 %v2698, %v2717
    %v2722 = vmul.f32 %v2700, %v2718
    %v2723 = vmul.f32 %v2702, %v2719
    %v2724 = vmul.f32 %v2704, %v2720
    %2725 = vrot.lane.b32.xlu0 %v2357, 64
    %v2726 = vpop.permute.xlu0 %2725
    %v2729 = vsel %vm459, %v2721, 0
    %2731 = vmatprep.subr.mxu0 0.0
    %2732 = vmatpush1.msra.mxu0 0.0
    %2733 = vmatprep.subr.mxu0 0.0
    %2734 = vmatpush1.msra.mxu0 0.0
    %2735 = vmatprep.subr.mxu0 0.0
    %2736 = vmatpush1.msra.mxu0 0.0
    %2737 = vmatprep.subr.mxu0 0.0
    %2738 = vmatpush1.msra.mxu0 0.0
    %2739 = vmatprep.subr.mxu0 0.0
    %2740 = vmatpush1.msra.mxu0 0.0
    %2741 = vmatprep.subr.mxu0 0.0
    %2742 = vmatpush1.msra.mxu0 0.0
    %2743 = vmatprep.subr.mxu0 0.0
    %2744 = vmatpush1.msra.mxu0 0.0
    %2745 = vmatprep.subr.mxu0 0.0
    %2746 = vmatpush1.msra.mxu0 0.0
    %2747 = vmatprep.subr.mxu0 0.0
    %2748 = vmatpush1.msra.mxu0 0.0
    %2749 = vmatprep.subr.mxu0 0.0
    %2750 = vmatpush1.msra.mxu0 0.0
    %2751 = vmatprep.subr.mxu0 0.0
    %2752 = vmatpush1.msra.mxu0 0.0
    %2753 = vmatprep.subr.mxu0 0.0
    %2754 = vmatpush1.msra.mxu0 0.0
    %2755 = vmatprep.subr.mxu0 0.0
    %2756 = vmatpush1.msra.mxu0 0.0
    %2757 = vmatprep.subr.mxu0 0.0
    %2758 = vmatpush1.msra.mxu0 0.0
    %2759 = vmatprep.subr.mxu0 0.0
    %2760 = vmatpush1.msra.mxu0 0.0
    %2761 = vmatprep.subr.mxu0 0.0
    %2762 = vmatpush1.msra.mxu0 %v2726
    %2763 = vmatprep.subr.mxu0 0.0
    %2764 = vmatpush2.msra.mxu0 0.0
    %2765 = vmatprep.subr.mxu0 0.0
    %2766 = vmatpush2.msra.mxu0 0.0
    %2767 = vmatprep.subr.mxu0 0.0
    %2768 = vmatpush2.msra.mxu0 0.0
    %2769 = vmatprep.subr.mxu0 0.0
    %2770 = vmatpush2.msra.mxu0 0.0
    %2771 = vmatprep.subr.mxu0 0.0
    %2772 = vmatpush2.msra.mxu0 0.0
    %2773 = vmatprep.subr.mxu0 0.0
    %2774 = vmatpush2.msra.mxu0 0.0
    %2775 = vmatprep.subr.mxu0 0.0
    %2776 = vmatpush2.msra.mxu0 0.0
    %2777 = vmatprep.subr.mxu0 0.0
    %2778 = vmatpush2.msra.mxu0 0.0
    %2779 = vmatprep.subr.mxu0 0.0
    %2780 = vmatpush2.msra.mxu0 0.0
    %2781 = vmatprep.subr.mxu0 0.0
    %2782 = vmatpush2.msra.mxu0 0.0
    %2783 = vmatprep.subr.mxu0 0.0
    %2784 = vmatpush2.msra.mxu0 0.0
    %2785 = vmatprep.subr.mxu0 0.0
    %2786 = vmatpush2.msra.mxu0 0.0
    %2787 = vmatprep.subr.mxu0 0.0
    %2788 = vmatpush2.msra.mxu0 0.0
    %2789 = vmatprep.subr.mxu0 0.0
    %2790 = vmatpush2.msra.mxu0 0.0
    %2791 = vmatprep.subr.mxu0 0.0
    %2792 = vmatpush2.msra.mxu0 0.0
    %2793 = vmatprep.subr.mxu0 0.0
    %2794 = vmatpush2.msra.mxu0 0.0
    %2795 = vmatprep.mubr.f32.mxu0 0.0
    %2796 = vmatmul.mubr.f32.gmra.mxu0 %v2729
    %v2797 = vpop.f32.mrf.mxu0
    %v2798 = vadd.f32 0.0, %v2797
    %v2799 = vpop.f32.mrf.mxu0
    %2800 = vdwg.mxu0
    %2801 = vrot.lane.b32.xlu0 %v2360, 64
    %v2802 = vpop.permute.xlu0 %2801
    %v2805 = vsel %vm459, %v2722, 0
    %2807 = vmatprep.subr.mxu0 0.0
    %2808 = vmatpush1.msra.mxu0 0.0
    %2809 = vmatprep.subr.mxu0 0.0
    %2810 = vmatpush1.msra.mxu0 0.0
    %2811 = vmatprep.subr.mxu0 0.0
    %2812 = vmatpush1.msra.mxu0 0.0
    %2813 = vmatprep.subr.mxu0 0.0
    %2814 = vmatpush1.msra.mxu0 0.0
    %2815 = vmatprep.subr.mxu0 0.0
    %2816 = vmatpush1.msra.mxu0 0.0
    %2817 = vmatprep.subr.mxu0 0.0
    %2818 = vmatpush1.msra.mxu0 0.0
    %2819 = vmatprep.subr.mxu0 0.0
    %2820 = vmatpush1.msra.mxu0 0.0
    %2821 = vmatprep.subr.mxu0 0.0
    %2822 = vmatpush1.msra.mxu0 0.0
    %2823 = vmatprep.subr.mxu0 0.0
    %2824 = vmatpush1.msra.mxu0 0.0
    %2825 = vmatprep.subr.mxu0 0.0
    %2826 = vmatpush1.msra.mxu0 0.0
    %2827 = vmatprep.subr.mxu0 0.0
    %2828 = vmatpush1.msra.mxu0 0.0
    %2829 = vmatprep.subr.mxu0 0.0
    %2830 = vmatpush1.msra.mxu0 0.0
    %2831 = vmatprep.subr.mxu0 0.0
    %2832 = vmatpush1.msra.mxu0 0.0
    %2833 = vmatprep.subr.mxu0 0.0
    %2834 = vmatpush1.msra.mxu0 0.0
    %2835 = vmatprep.subr.mxu0 0.0
    %2836 = vmatpush1.msra.mxu0 0.0
    %2837 = vmatprep.subr.mxu0 0.0
    %2838 = vmatpush1.msra.mxu0 %v2802
    %2839 = vmatprep.subr.mxu0 0.0
    %2840 = vmatpush2.msra.mxu0 0.0
    %2841 = vmatprep.subr.mxu0 0.0
    %2842 = vmatpush2.msra.mxu0 0.0
    %2843 = vmatprep.subr.mxu0 0.0
    %2844 = vmatpush2.msra.mxu0 0.0
    %2845 = vmatprep.subr.mxu0 0.0
    %2846 = vmatpush2.msra.mxu0 0.0
    %2847 = vmatprep.subr.mxu0 0.0
    %2848 = vmatpush2.msra.mxu0 0.0
    %2849 = vmatprep.subr.mxu0 0.0
    %2850 = vmatpush2.msra.mxu0 0.0
    %2851 = vmatprep.subr.mxu0 0.0
    %2852 = vmatpush2.msra.mxu0 0.0
    %2853 = vmatprep.subr.mxu0 0.0
    %2854 = vmatpush2.msra.mxu0 0.0
    %2855 = vmatprep.subr.mxu0 0.0
    %2856 = vmatpush2.msra.mxu0 0.0
    %2857 = vmatprep.subr.mxu0 0.0
    %2858 = vmatpush2.msra.mxu0 0.0
    %2859 = vmatprep.subr.mxu0 0.0
    %2860 = vmatpush2.msra.mxu0 0.0
    %2861 = vmatprep.subr.mxu0 0.0
    %2862 = vmatpush2.msra.mxu0 0.0
    %2863 = vmatprep.subr.mxu0 0.0
    %2864 = vmatpush2.msra.mxu0 0.0
    %2865 = vmatprep.subr.mxu0 0.0
    %2866 = vmatpush2.msra.mxu0 0.0
    %2867 = vmatprep.subr.mxu0 0.0
    %2868 = vmatpush2.msra.mxu0 0.0
    %2869 = vmatprep.subr.mxu0 0.0
    %2870 = vmatpush2.msra.mxu0 0.0
    %2871 = vmatprep.mubr.f32.mxu0 0.0
    %2872 = vmatmul.mubr.f32.gmra.mxu0 %v2805
    %v2873 = vpop.f32.mrf.mxu0
    %v2874 = vadd.f32 0.0, %v2873
    %v2875 = vpop.f32.mrf.mxu0
    %2876 = vdwg.mxu0
    %2877 = vrot.lane.b32.xlu0 %v2366, 64
    %v2878 = vpop.permute.xlu0 %2877
    %v2881 = vsel %vm459, %v2723, 0
    %2883 = vmatprep.subr.mxu0 0.0
    %2884 = vmatpush1.msra.mxu0 0.0
    %2885 = vmatprep.subr.mxu0 0.0
    %2886 = vmatpush1.msra.mxu0 0.0
    %2887 = vmatprep.subr.mxu0 0.0
    %2888 = vmatpush1.msra.mxu0 0.0
    %2889 = vmatprep.subr.mxu0 0.0
    %2890 = vmatpush1.msra.mxu0 0.0
    %2891 = vmatprep.subr.mxu0 0.0
    %2892 = vmatpush1.msra.mxu0 0.0
    %2893 = vmatprep.subr.mxu0 0.0
    %2894 = vmatpush1.msra.mxu0 0.0
    %2895 = vmatprep.subr.mxu0 0.0
    %2896 = vmatpush1.msra.mxu0 0.0
    %2897 = vmatprep.subr.mxu0 0.0
    %2898 = vmatpush1.msra.mxu0 0.0
    %2899 = vmatprep.subr.mxu0 0.0
    %2900 = vmatpush1.msra.mxu0 0.0
    %2901 = vmatprep.subr.mxu0 0.0
    %2902 = vmatpush1.msra.mxu0 0.0
    %2903 = vmatprep.subr.mxu0 0.0
    %2904 = vmatpush1.msra.mxu0 0.0
    %2905 = vmatprep.subr.mxu0 0.0
    %2906 = vmatpush1.msra.mxu0 0.0
    %2907 = vmatprep.subr.mxu0 0.0
    %2908 = vmatpush1.msra.mxu0 0.0
    %2909 = vmatprep.subr.mxu0 0.0
    %2910 = vmatpush1.msra.mxu0 0.0
    %2911 = vmatprep.subr.mxu0 0.0
    %2912 = vmatpush1.msra.mxu0 0.0
    %2913 = vmatprep.subr.mxu0 0.0
    %2914 = vmatpush1.msra.mxu0 %v2878
    %2915 = vmatprep.subr.mxu0 0.0
    %2916 = vmatpush2.msra.mxu0 0.0
    %2917 = vmatprep.subr.mxu0 0.0
    %2918 = vmatpush2.msra.mxu0 0.0
    %2919 = vmatprep.subr.mxu0 0.0
    %2920 = vmatpush2.msra.mxu0 0.0
    %2921 = vmatprep.subr.mxu0 0.0
    %2922 = vmatpush2.msra.mxu0 0.0
    %2923 = vmatprep.subr.mxu0 0.0
    %2924 = vmatpush2.msra.mxu0 0.0
    %2925 = vmatprep.subr.mxu0 0.0
    %2926 = vmatpush2.msra.mxu0 0.0
    %2927 = vmatprep.subr.mxu0 0.0
    %2928 = vmatpush2.msra.mxu0 0.0
    %2929 = vmatprep.subr.mxu0 0.0
    %2930 = vmatpush2.msra.mxu0 0.0
    %2931 = vmatprep.subr.mxu0 0.0
    %2932 = vmatpush2.msra.mxu0 0.0
    %2933 = vmatprep.subr.mxu0 0.0
    %2934 = vmatpush2.msra.mxu0 0.0
    %2935 = vmatprep.subr.mxu0 0.0
    %2936 = vmatpush2.msra.mxu0 0.0
    %2937 = vmatprep.subr.mxu0 0.0
    %2938 = vmatpush2.msra.mxu0 0.0
    %2939 = vmatprep.subr.mxu0 0.0
    %2940 = vmatpush2.msra.mxu0 0.0
    %2941 = vmatprep.subr.mxu0 0.0
    %2942 = vmatpush2.msra.mxu0 0.0
    %2943 = vmatprep.subr.mxu0 0.0
    %2944 = vmatpush2.msra.mxu0 0.0
    %2945 = vmatprep.subr.mxu0 0.0
    %2946 = vmatpush2.msra.mxu0 0.0
    %2947 = vmatprep.mubr.f32.mxu0 0.0
    %2948 = vmatmul.mubr.f32.gmra.mxu0 %v2881
    %v2949 = vpop.f32.mrf.mxu0
    %v2950 = vadd.f32 0.0, %v2949
    %v2951 = vpop.f32.mrf.mxu0
    %2952 = vdwg.mxu0
    %2953 = vrot.lane.b32.xlu0 %v2368, 64
    %v2954 = vpop.permute.xlu0 %2953
    %v2957 = vsel %vm459, %v2724, 0
    %2959 = vmatprep.subr.mxu0 0.0
    %2960 = vmatpush1.msra.mxu0 0.0
    %2961 = vmatprep.subr.mxu0 0.0
    %2962 = vmatpush1.msra.mxu0 0.0
    %2963 = vmatprep.subr.mxu0 0.0
    %2964 = vmatpush1.msra.mxu0 0.0
    %2965 = vmatprep.subr.mxu0 0.0
    %2966 = vmatpush1.msra.mxu0 0.0
    %2967 = vmatprep.subr.mxu0 0.0
    %2968 = vmatpush1.msra.mxu0 0.0
    %2969 = vmatprep.subr.mxu0 0.0
    %2970 = vmatpush1.msra.mxu0 0.0
    %2971 = vmatprep.subr.mxu0 0.0
    %2972 = vmatpush1.msra.mxu0 0.0
    %2973 = vmatprep.subr.mxu0 0.0
    %2974 = vmatpush1.msra.mxu0 0.0
    %2975 = vmatprep.subr.mxu0 0.0
    %2976 = vmatpush1.msra.mxu0 0.0
    %2977 = vmatprep.subr.mxu0 0.0
    %2978 = vmatpush1.msra.mxu0 0.0
    %2979 = vmatprep.subr.mxu0 0.0
    %2980 = vmatpush1.msra.mxu0 0.0
    %2981 = vmatprep.subr.mxu0 0.0
    %2982 = vmatpush1.msra.mxu0 0.0
    %2983 = vmatprep.subr.mxu0 0.0
    %2984 = vmatpush1.msra.mxu0 0.0
    %2985 = vmatprep.subr.mxu0 0.0
    %2986 = vmatpush1.msra.mxu0 0.0
    %2987 = vmatprep.subr.mxu0 0.0
    %2988 = vmatpush1.msra.mxu0 0.0
    %2989 = vmatprep.subr.mxu0 0.0
    %2990 = vmatpush1.msra.mxu0 %v2954
    %2991 = vmatprep.subr.mxu0 0.0
    %2992 = vmatpush2.msra.mxu0 0.0
    %2993 = vmatprep.subr.mxu0 0.0
    %2994 = vmatpush2.msra.mxu0 0.0
    %2995 = vmatprep.subr.mxu0 0.0
    %2996 = vmatpush2.msra.mxu0 0.0
    %2997 = vmatprep.subr.mxu0 0.0
    %2998 = vmatpush2.msra.mxu0 0.0
    %2999 = vmatprep.subr.mxu0 0.0
    %3000 = vmatpush2.msra.mxu0 0.0
    %3001 = vmatprep.subr.mxu0 0.0
    %3002 = vmatpush2.msra.mxu0 0.0
    %3003 = vmatprep.subr.mxu0 0.0
    %3004 = vmatpush2.msra.mxu0 0.0
    %3005 = vmatprep.subr.mxu0 0.0
    %3006 = vmatpush2.msra.mxu0 0.0
    %3007 = vmatprep.subr.mxu0 0.0
    %3008 = vmatpush2.msra.mxu0 0.0
    %3009 = vmatprep.subr.mxu0 0.0
    %3010 = vmatpush2.msra.mxu0 0.0
    %3011 = vmatprep.subr.mxu0 0.0
    %3012 = vmatpush2.msra.mxu0 0.0
    %3013 = vmatprep.subr.mxu0 0.0
    %3014 = vmatpush2.msra.mxu0 0.0
    %3015 = vmatprep.subr.mxu0 0.0
    %3016 = vmatpush2.msra.mxu0 0.0
    %3017 = vmatprep.subr.mxu0 0.0
    %3018 = vmatpush2.msra.mxu0 0.0
    %3019 = vmatprep.subr.mxu0 0.0
    %3020 = vmatpush2.msra.mxu0 0.0
    %3021 = vmatprep.subr.mxu0 0.0
    %3022 = vmatpush2.msra.mxu0 0.0
    %3023 = vmatprep.mubr.f32.mxu0 0.0
    %3024 = vmatmul.mubr.f32.gmra.mxu0 %v2957
    %v3025 = vpop.f32.mrf.mxu0
    %v3026 = vadd.f32 0.0, %v3025
    %v3027 = vpop.f32.mrf.mxu0
    %3028 = vdwg.mxu0
    %3031 = vrot.lane.b32.xlu0 %v2950, 16
    %v3032 = vpop.permute.xlu0 %3031
    %3033 = vrot.lane.b32.xlu0 %v3026, 16
    %v3034 = vpop.permute.xlu0 %3033
    %v3037 = vsel %vm148, %v2798, %v3032
    %v3038 = vsel %vm148, %v2874, %v3034
    %v3039 = vpack.c.bf16 %v3038, %v3037
    %s3040 = scalar_lea.vmem %s4, 32
    %v3041 = vld [vmem:[%s3040] sm:$0xf]
    %v3042 = vld [vmem:[%s3040 + $0x4] sm:$0xf]
    %v3043 = vld [vmem:[%s3040 + $0x8] sm:$0xf]
    %v3044 = vld [vmem:[%s3040 + $0xc] sm:$0xf]
    %s3045 = scalar_lea.vmem %s5, 2
    %v3046 = vld [vmem:[%s3045] sm:$0x1]
    %v3048 = vlaneseq
    %v3049 = vshrl.u32 %v3048, 7
    %v3050 = vsub.s32 0, %v3049
    %v3051 = vrot.slane %v3046, %v3050
    %v3057 = vunpack.c.l.b16 %v3041
    %v3058 = vunpack.c.l.b16 %v3042
    %v3059 = vunpack.c.l.b16 %v3043
    %v3060 = vunpack.c.l.b16 %v3044
    %v3061 = vpack.c.b16 %v3058, %v3057
    %v3062 = vpack.c.b16 %v3060, %v3059
    %v3066 = vsel %vm95, %v3039, 0
    %3068 = vmatprep.subr.bf16.mxu0 0
    %3069 = vmatpush1.bf16.msra.mxu0 0
    %3070 = vmatprep.subr.bf16.mxu0 0
    %3071 = vmatpush1.bf16.msra.mxu0 0
    %3072 = vmatprep.subr.bf16.mxu0 0
    %3073 = vmatpush1.bf16.msra.mxu0 0
    %3074 = vmatprep.subr.bf16.mxu0 0
    %3075 = vmatpush1.bf16.msra.mxu0 0
    %3076 = vmatprep.subr.bf16.mxu0 0
    %3077 = vmatpush1.bf16.msra.mxu0 0
    %3078 = vmatprep.subr.bf16.mxu0 0
    %3079 = vmatpush1.bf16.msra.mxu0 0
    %3080 = vmatprep.subr.bf16.mxu0 0
    %3081 = vmatpush1.bf16.msra.mxu0 %v3062
    %3082 = vmatprep.subr.bf16.mxu0 0
    %3083 = vmatpush1.bf16.msra.mxu0 %v3061
    %3084 = vmatprep.subr.bf16.mxu0 0
    %3085 = vmatpush2.bf16.msra.mxu0 0
    %3086 = vmatprep.subr.bf16.mxu0 0
    %3087 = vmatpush2.bf16.msra.mxu0 0
    %3088 = vmatprep.subr.bf16.mxu0 0
    %3089 = vmatpush2.bf16.msra.mxu0 0
    %3090 = vmatprep.subr.bf16.mxu0 0
    %3091 = vmatpush2.bf16.msra.mxu0 0
    %3092 = vmatprep.subr.bf16.mxu0 0
    %3093 = vmatpush2.bf16.msra.mxu0 0
    %3094 = vmatprep.subr.bf16.mxu0 0
    %3095 = vmatpush2.bf16.msra.mxu0 0
    %3096 = vmatprep.subr.bf16.mxu0 0
    %3097 = vmatpush2.bf16.msra.mxu0 0
    %3098 = vmatprep.subr.bf16.mxu0 0
    %3099 = vmatpush2.bf16.msra.mxu0 0
    %3100 = vmatprep.mubr.bf16.mxu0 0
    %3101 = vmatmul.mubr.bf16.gmra.mxu0 %v3066
    %v3102 = vpop.f32.mrf.mxu0
    %v3103 = vadd.f32 %v3051, %v3102
    %v3104 = vpop.f32.mrf.mxu0
    %v3105 = vpop.f32.mrf.mxu0
    %v3106 = vadd.f32 %v3051, %v3105
    %v3107 = vpop.f32.mrf.mxu0
    %3108 = vdwg.mxu0
    %v3109 = vadd.f32 %v3103, %v2291
    %v3110 = vadd.f32 %v3106, %v2292
    %s3111 = scalar_lea.vmem %s6, 2
    %v3112 = vld [vmem:[%s3111] sm:$0x1]
    %s3113 = scalar_lea.vmem %s7, 2
    %v3114 = vld [vmem:[%s3113] sm:$0x1]
    %v3115 = vsel %vm95, %v3109, 0.0
    %3116 = vadd.xlane.f32.xlu0 %v3115
    %v3117 = vpop.xlane.xlu0 %3116
    %v3118 = vsel %vm95, %v3110, 0.0
    %3119 = vadd.xlane.f32.xlu0 %v3118
    %v3120 = vpop.xlane.xlu0 %3119
    %v3121 = vmul.f32 %v3117, %v896
    %v3122 = vmul.f32 %v3120, %v896
    %v3123 = vsub.f32 %v3109, %v3121
    %v3124 = vsub.f32 %v3110, %v3122
    %v3125 = vmul.f32 %v3123, %v3123
    %v3126 = vmul.f32 %v3124, %v3124
    %v3127 = vsel %vm95, %v3125, 0.0
    %3128 = vadd.xlane.f32.xlu0 %v3127
    %v3129 = vpop.xlane.xlu0 %3128
    %v3130 = vsel %vm95, %v3126, 0.0
    %3131 = vadd.xlane.f32.xlu0 %v3130
    %v3132 = vpop.xlane.xlu0 %3131
    %v3133 = vmul.f32 %v3129, %v896
    %v3134 = vmul.f32 %v3132, %v896
    %v3135 = vadd.f32 %v3133, 1e-12
    %v3136 = vadd.f32 %v3134, 1e-12
    %v3137 = vrsqrt.pop %v3135
    %v3138 = vrsqrt.pop %v3136
    %v3139 = vmul.f32 %v3123, %v3137
    %v3140 = vmul.f32 %v3124, %v3138
    %v3142 = vlaneseq
    %v3143 = vshrl.u32 %v3142, 7
    %v3144 = vsub.s32 0, %v3143
    %v3145 = vrot.slane %v3112, %v3144
    %v3147 = vmul.f32 %v3139, %v3145
    %v3148 = vmul.f32 %v3140, %v3145
    %v3150 = vlaneseq
    %v3151 = vshrl.u32 %v3150, 7
    %v3152 = vsub.s32 0, %v3151
    %v3153 = vrot.slane %v3114, %v3152
    %v3155 = vadd.f32 %v3147, %v3153
    %v3156 = vadd.f32 %v3148, %v3153
    %v3157 = vpack.c.bf16 %v3156, %v3155
    %s3158 = scalar_lea.vmem %s8, 32
    %v3159 = vld [vmem:[%s3158] sm:$0xf]
    %v3160 = vld [vmem:[%s3158 + $0x4] sm:$0xf]
    %v3161 = vld [vmem:[%s3158 + $0x8] sm:$0xf]
    %v3162 = vld [vmem:[%s3158 + $0xc] sm:$0xf]
    %s3163 = scalar_lea.vmem %s9, 2
    %v3164 = vld [vmem:[%s3163] sm:$0x1]
    %v3166 = vlaneseq
    %v3167 = vshrl.u32 %v3166, 7
    %v3168 = vsub.s32 0, %v3167
    %v3169 = vrot.slane %v3164, %v3168
    %v3175 = vunpack.c.l.b16 %v3159
    %v3176 = vunpack.c.l.b16 %v3160
    %v3177 = vunpack.c.l.b16 %v3161
    %v3178 = vunpack.c.l.b16 %v3162
    %v3179 = vpack.c.b16 %v3176, %v3175
    %v3180 = vpack.c.b16 %v3178, %v3177
    %v3184 = vsel %vm95, %v3157, 0
    %3186 = vmatprep.subr.bf16.mxu0 0
    %3187 = vmatpush1.bf16.msra.mxu0 0
    %3188 = vmatprep.subr.bf16.mxu0 0
    %3189 = vmatpush1.bf16.msra.mxu0 0
    %3190 = vmatprep.subr.bf16.mxu0 0
    %3191 = vmatpush1.bf16.msra.mxu0 0
    %3192 = vmatprep.subr.bf16.mxu0 0
    %3193 = vmatpush1.bf16.msra.mxu0 0
    %3194 = vmatprep.subr.bf16.mxu0 0
    %3195 = vmatpush1.bf16.msra.mxu0 0
    %3196 = vmatprep.subr.bf16.mxu0 0
    %3197 = vmatpush1.bf16.msra.mxu0 0
    %3198 = vmatprep.subr.bf16.mxu0 0
    %3199 = vmatpush1.bf16.msra.mxu0 %v3180
    %3200 = vmatprep.subr.bf16.mxu0 0
    %3201 = vmatpush1.bf16.msra.mxu0 %v3179
    %3202 = vmatprep.subr.bf16.mxu0 0
    %3203 = vmatpush2.bf16.msra.mxu0 0
    %3204 = vmatprep.subr.bf16.mxu0 0
    %3205 = vmatpush2.bf16.msra.mxu0 0
    %3206 = vmatprep.subr.bf16.mxu0 0
    %3207 = vmatpush2.bf16.msra.mxu0 0
    %3208 = vmatprep.subr.bf16.mxu0 0
    %3209 = vmatpush2.bf16.msra.mxu0 0
    %3210 = vmatprep.subr.bf16.mxu0 0
    %3211 = vmatpush2.bf16.msra.mxu0 0
    %3212 = vmatprep.subr.bf16.mxu0 0
    %3213 = vmatpush2.bf16.msra.mxu0 0
    %3214 = vmatprep.subr.bf16.mxu0 0
    %3215 = vmatpush2.bf16.msra.mxu0 0
    %3216 = vmatprep.subr.bf16.mxu0 0
    %3217 = vmatpush2.bf16.msra.mxu0 0
    %3218 = vmatprep.mubr.bf16.mxu0 0
    %3219 = vmatmul.mubr.bf16.gmra.mxu0 %v3184
    %v3220 = vpop.f32.mrf.mxu0
    %v3221 = vadd.f32 %v3169, %v3220
    %v3222 = vpop.f32.mrf.mxu0
    %v3223 = vpop.f32.mrf.mxu0
    %v3224 = vadd.f32 %v3169, %v3223
    %v3225 = vpop.f32.mrf.mxu0
    %3226 = vdwg.mxu0
    %v3227 = vmul.f32 %v3221, %v3221
    %v3228 = vmul.f32 %v3224, %v3224
    %v3229 = vmul.f32 %v3221, %v3227
    %v3230 = vmul.f32 %v3224, %v3228
    %v3231 = vmul.f32 %v3229, 0.044715
    %v3232 = vmul.f32 %v3230, 0.044715
    %v3233 = vadd.f32 %v3221, %v3231
    %v3234 = vadd.f32 %v3224, %v3232
    %v3235 = vmul.f32 %v3233, 0.7978846
    %v3236 = vmul.f32 %v3234, 0.7978846
    %v3237 = vtanh.pop %v3235
    %v3238 = vtanh.pop %v3236
    %v3239 = vadd.f32 %v3237, 1.0
    %v3240 = vadd.f32 %v3238, 1.0
    %v3241 = vmul.f32 %v3239, 0.5
    %v3242 = vmul.f32 %v3240, 0.5
    %v3243 = vmul.f32 %v3221, %v3241
    %v3244 = vmul.f32 %v3224, %v3242
    %v3245 = vpack.c.bf16 %v3244, %v3243
    %s3246 = scalar_lea.vmem %s10, 128
    %v3247 = vld [vmem:[%s3246] sm:$0xf]
    %v3248 = vld [vmem:[%s3246 + $0x4] sm:$0xf]
    %v3249 = vld [vmem:[%s3246 + $0x8] sm:$0xf]
    %v3250 = vld [vmem:[%s3246 + $0xc] sm:$0xf]
    %v3251 = vld [vmem:[%s3246 + $0x10] sm:$0xf]
    %v3252 = vld [vmem:[%s3246 + $0x14] sm:$0xf]
    %v3253 = vld [vmem:[%s3246 + $0x18] sm:$0xf]
    %v3254 = vld [vmem:[%s3246 + $0x1c] sm:$0xf]
    %v3255 = vld [vmem:[%s3246 + $0x20] sm:$0xf]
    %v3256 = vld [vmem:[%s3246 + $0x24] sm:$0xf]
    %v3257 = vld [vmem:[%s3246 + $0x28] sm:$0xf]
    %v3258 = vld [vmem:[%s3246 + $0x2c] sm:$0xf]
    %v3259 = vld [vmem:[%s3246 + $0x30] sm:$0xf]
    %v3260 = vld [vmem:[%s3246 + $0x34] sm:$0xf]
    %v3261 = vld [vmem:[%s3246 + $0x38] sm:$0xf]
    %v3262 = vld [vmem:[%s3246 + $0x3c] sm:$0xf]
    %s3263 = scalar_lea.vmem %s11, 2
    %v3264 = vld [vmem:[%s3263] sm:$0x1]
    %v3266 = vlaneseq
    %v3267 = vshrl.u32 %v3266, 7
    %v3268 = vsub.s32 0, %v3267
    %v3269 = vrot.slane %v3264, %v3268
    %v3287 = vunpack.c.l.b16 %v3247
    %v3288 = vunpack.c.l.b16 %v3248
    %v3289 = vunpack.c.l.b16 %v3249
    %v3290 = vunpack.c.l.b16 %v3250
    %v3291 = vunpack.c.l.b16 %v3251
    %v3292 = vunpack.c.l.b16 %v3252
    %v3293 = vunpack.c.l.b16 %v3253
    %v3294 = vunpack.c.l.b16 %v3254
    %v3295 = vunpack.c.l.b16 %v3255
    %v3296 = vunpack.c.l.b16 %v3256
    %v3297 = vunpack.c.l.b16 %v3257
    %v3298 = vunpack.c.l.b16 %v3258
    %v3299 = vunpack.c.l.b16 %v3259
    %v3300 = vunpack.c.l.b16 %v3260
    %v3301 = vunpack.c.l.b16 %v3261
    %v3302 = vunpack.c.l.b16 %v3262
    %v3303 = vpack.c.b16 %v3288, %v3287
    %v3304 = vpack.c.b16 %v3290, %v3289
    %v3305 = vpack.c.b16 %v3292, %v3291
    %v3306 = vpack.c.b16 %v3294, %v3293
    %v3307 = vpack.c.b16 %v3296, %v3295
    %v3308 = vpack.c.b16 %v3298, %v3297
    %v3309 = vpack.c.b16 %v3300, %v3299
    %v3310 = vpack.c.b16 %v3302, %v3301
    %3319 = vmatprep.subr.bf16.mxu0 0
    %3320 = vmatpush1.bf16.msra.mxu0 %v3310
    %3321 = vmatprep.subr.bf16.mxu0 0
    %3322 = vmatpush1.bf16.msra.mxu0 %v3309
    %3323 = vmatprep.subr.bf16.mxu0 0
    %3324 = vmatpush1.bf16.msra.mxu0 %v3308
    %3325 = vmatprep.subr.bf16.mxu0 0
    %3326 = vmatpush1.bf16.msra.mxu0 %v3307
    %3327 = vmatprep.subr.bf16.mxu0 0
    %3328 = vmatpush1.bf16.msra.mxu0 %v3306
    %3329 = vmatprep.subr.bf16.mxu0 0
    %3330 = vmatpush1.bf16.msra.mxu0 %v3305
    %3331 = vmatprep.subr.bf16.mxu0 0
    %3332 = vmatpush1.bf16.msra.mxu0 %v3304
    %3333 = vmatprep.subr.bf16.mxu0 0
    %3334 = vmatpush1.bf16.msra.mxu0 %v3303
    %3335 = vmatprep.subr.bf16.mxu0 0
    %3336 = vmatpush2.bf16.msra.mxu0 0
    %3337 = vmatprep.subr.bf16.mxu0 0
    %3338 = vmatpush2.bf16.msra.mxu0 0
    %3339 = vmatprep.subr.bf16.mxu0 0
    %3340 = vmatpush2.bf16.msra.mxu0 0
    %3341 = vmatprep.subr.bf16.mxu0 0
    %3342 = vmatpush2.bf16.msra.mxu0 0
    %3343 = vmatprep.subr.bf16.mxu0 0
    %3344 = vmatpush2.bf16.msra.mxu0 0
    %3345 = vmatprep.subr.bf16.mxu0 0
    %3346 = vmatpush2.bf16.msra.mxu0 0
    %3347 = vmatprep.subr.bf16.mxu0 0
    %3348 = vmatpush2.bf16.msra.mxu0 0
    %3349 = vmatprep.subr.bf16.mxu0 0
    %3350 = vmatpush2.bf16.msra.mxu0 0
    %3351 = vmatprep.mubr.bf16.mxu0 0
    %3352 = vmatmul.mubr.bf16.gmra.mxu0 %v3245
    %v3353 = vpop.f32.mrf.mxu0
    %v3354 = vadd.f32 %v3269, %v3353
    %v3355 = vpop.f32.mrf.mxu0
    %v3356 = vpop.f32.mrf.mxu0
    %v3357 = vadd.f32 %v3269, %v3356
    %v3358 = vpop.f32.mrf.mxu0
    %3359 = vdwg.mxu0
    %v3360 = vadd.f32 %v3354, %v3155
    %v3361 = vadd.f32 %v3357, %v3156
    %s3362 = scalar_lea.vmem %s12, 2
    %v3363 = vld [vmem:[%s3362] sm:$0x1]
    %s3364 = scalar_lea.vmem %s13, 2
    %v3365 = vld [vmem:[%s3364] sm:$0x1]
    %v3366 = vsel %vm95, %v3360, 0.0
    %3367 = vadd.xlane.f32.xlu0 %v3366
    %v3368 = vpop.xlane.xlu0 %3367
    %v3369 = vsel %vm95, %v3361, 0.0
    %3370 = vadd.xlane.f32.xlu0 %v3369
    %v3371 = vpop.xlane.xlu0 %3370
    %v3372 = vmul.f32 %v3368, %v896
    %v3373 = vmul.f32 %v3371, %v896
    %v3374 = vsub.f32 %v3360, %v3372
    %v3375 = vsub.f32 %v3361, %v3373
    %v3376 = vmul.f32 %v3374, %v3374
    %v3377 = vmul.f32 %v3375, %v3375
    %v3378 = vsel %vm95, %v3376, 0.0
    %3379 = vadd.xlane.f32.xlu0 %v3378
    %v3380 = vpop.xlane.xlu0 %3379
    %v3381 = vsel %vm95, %v3377, 0.0
    %3382 = vadd.xlane.f32.xlu0 %v3381
    %v3383 = vpop.xlane.xlu0 %3382
    %v3384 = vmul.f32 %v3380, %v896
    %v3385 = vmul.f32 %v3383, %v896
    %v3386 = vadd.f32 %v3384, 1e-12
    %v3387 = vadd.f32 %v3385, 1e-12
    %v3388 = vrsqrt.pop %v3386
    %v3389 = vrsqrt.pop %v3387
    %v3390 = vmul.f32 %v3374, %v3388
    %v3391 = vmul.f32 %v3375, %v3389
    %v3393 = vlaneseq
    %v3394 = vshrl.u32 %v3393, 7
    %v3395 = vsub.s32 0, %v3394
    %v3396 = vrot.slane %v3363, %v3395
    %v3398 = vmul.f32 %v3390, %v3396
    %v3399 = vmul.f32 %v3391, %v3396
    %v3401 = vlaneseq
    %v3402 = vshrl.u32 %v3401, 7
    %v3403 = vsub.s32 0, %v3402
    %v3404 = vrot.slane %v3365, %v3403
    %v3406 = vadd.f32 %v3398, %v3404
    %v3407 = vadd.f32 %v3399, %v3404
    %v3408 = vpack.c.bf16 %v3407, %v3406
    %s3409 = scalar_lea.vmem %s2, 48
    %v3410 = vld [vmem:[%s3409] sm:$0xf]
    %v3411 = vld [vmem:[%s3409 + $0x4] sm:$0xf]
    %v3412 = vld [vmem:[%s3409 + $0x8] sm:$0xf]
    %v3413 = vld [vmem:[%s3409 + $0xc] sm:$0xf]
    %s3414 = scalar_lea.vmem %s3, 3
    %v3415 = vld [vmem:[%s3414] sm:$0x1]
    %v3417 = vlaneseq
    %v3418 = vshrl.u32 %v3417, 7
    %v3419 = vsub.s32 0, %v3418
    %v3420 = vrot.slane %v3415, %v3419
    %v3426 = vunpack.c.l.b16 %v3410
    %v3427 = vunpack.c.l.b16 %v3411
    %v3428 = vunpack.c.l.b16 %v3412
    %v3429 = vunpack.c.l.b16 %v3413
    %v3430 = vpack.c.b16 %v3427, %v3426
    %v3431 = vpack.c.b16 %v3429, %v3428
    %v3435 = vsel %vm95, %v3408, 0
    %3437 = vmatprep.subr.bf16.mxu0 0
    %3438 = vmatpush1.bf16.msra.mxu0 0
    %3439 = vmatprep.subr.bf16.mxu0 0
    %3440 = vmatpush1.bf16.msra.mxu0 0
    %3441 = vmatprep.subr.bf16.mxu0 0
    %3442 = vmatpush1.bf16.msra.mxu0 0
    %3443 = vmatprep.subr.bf16.mxu0 0
    %3444 = vmatpush1.bf16.msra.mxu0 0
    %3445 = vmatprep.subr.bf16.mxu0 0
    %3446 = vmatpush1.bf16.msra.mxu0 0
    %3447 = vmatprep.subr.bf16.mxu0 0
    %3448 = vmatpush1.bf16.msra.mxu0 0
    %3449 = vmatprep.subr.bf16.mxu0 0
    %3450 = vmatpush1.bf16.msra.mxu0 %v3431
    %3451 = vmatprep.subr.bf16.mxu0 0
    %3452 = vmatpush1.bf16.msra.mxu0 %v3430
    %3453 = vmatprep.subr.bf16.mxu0 0
    %3454 = vmatpush2.bf16.msra.mxu0 0
    %3455 = vmatprep.subr.bf16.mxu0 0
    %3456 = vmatpush2.bf16.msra.mxu0 0
    %3457 = vmatprep.subr.bf16.mxu0 0
    %3458 = vmatpush2.bf16.msra.mxu0 0
    %3459 = vmatprep.subr.bf16.mxu0 0
    %3460 = vmatpush2.bf16.msra.mxu0 0
    %3461 = vmatprep.subr.bf16.mxu0 0
    %3462 = vmatpush2.bf16.msra.mxu0 0
    %3463 = vmatprep.subr.bf16.mxu0 0
    %3464 = vmatpush2.bf16.msra.mxu0 0
    %3465 = vmatprep.subr.bf16.mxu0 0
    %3466 = vmatpush2.bf16.msra.mxu0 0
    %3467 = vmatprep.subr.bf16.mxu0 0
    %3468 = vmatpush2.bf16.msra.mxu0 0
    %3469 = vmatprep.mubr.bf16.mxu0 0
    %3470 = vmatmul.mubr.bf16.gmra.mxu0 %v3435
    %v3471 = vpop.f32.mrf.mxu0
    %v3472 = vadd.f32 %v3420, %v3471
    %v3473 = vpop.f32.mrf.mxu0
    %v3474 = vpop.f32.mrf.mxu0
    %v3475 = vadd.f32 %v3420, %v3474
    %v3476 = vpop.f32.mrf.mxu0
    %3477 = vdwg.mxu0
    %3480 = vrot.lane.b32.xlu0 %v3472, 112
    %v3481 = vpop.permute.xlu0 %3480
    %3482 = vrot.lane.b32.xlu0 %v3475, 112
    %v3483 = vpop.permute.xlu0 %3482
    %3484 = vrot.lane.b32.xlu0 %v3472, 96
    %v3485 = vpop.permute.xlu0 %3484
    %v3486 = vsel %vm148, %v3472, 0
    %v3488 = vsel %vm148, %v3485, 0
    %3490 = vmatprep.subr.mxu0 0.0
    %3491 = vmatpush1.xpose.msra.mxu0 0.0
    %3492 = vmatprep.subr.mxu0 0.0
    %3493 = vmatpush1.xpose.msra.mxu0 0.0
    %3494 = vmatprep.subr.mxu0 0.0
    %3495 = vmatpush1.xpose.msra.mxu0 0.0
    %3496 = vmatprep.subr.mxu0 0.0
    %3497 = vmatpush1.xpose.msra.mxu0 0.0
    %3498 = vmatprep.subr.mxu0 0.0
    %3499 = vmatpush1.xpose.msra.mxu0 0.0
    %3500 = vmatprep.subr.mxu0 0.0
    %3501 = vmatpush1.xpose.msra.mxu0 0.0
    %3502 = vmatprep.subr.mxu0 0.0
    %3503 = vmatpush1.xpose.msra.mxu0 0.0
    %3504 = vmatprep.subr.mxu0 0.0
    %3505 = vmatpush1.xpose.msra.mxu0 0.0
    %3506 = vmatprep.subr.mxu0 0.0
    %3507 = vmatpush1.xpose.msra.mxu0 0.0
    %3508 = vmatprep.subr.mxu0 0.0
    %3509 = vmatpush1.xpose.msra.mxu0 0.0
    %3510 = vmatprep.subr.mxu0 0.0
    %3511 = vmatpush1.xpose.msra.mxu0 0.0
    %3512 = vmatprep.subr.mxu0 0.0
    %3513 = vmatpush1.xpose.msra.mxu0 0.0
    %3514 = vmatprep.subr.mxu0 0.0
    %3515 = vmatpush1.xpose.msra.mxu0 0.0
    %3516 = vmatprep.subr.mxu0 0.0
    %3517 = vmatpush1.xpose.msra.mxu0 0.0
    %3518 = vmatprep.subr.mxu0 0.0
    %3519 = vmatpush1.xpose.msra.mxu0 0.0
    %3520 = vmatprep.subr.mxu0 0.0
    %3521 = vmatpush1.xpose.msra.mxu0 %v3488
    %3522 = vmatprep.subr.mxu0 0.0
    %3523 = vmatpush2.xpose.msra.mxu0 0.0
    %3524 = vmatprep.subr.mxu0 0.0
    %3525 = vmatpush2.xpose.msra.mxu0 0.0
    %3526 = vmatprep.subr.mxu0 0.0
    %3527 = vmatpush2.xpose.msra.mxu0 0.0
    %3528 = vmatprep.subr.mxu0 0.0
    %3529 = vmatpush2.xpose.msra.mxu0 0.0
    %3530 = vmatprep.subr.mxu0 0.0
    %3531 = vmatpush2.xpose.msra.mxu0 0.0
    %3532 = vmatprep.subr.mxu0 0.0
    %3533 = vmatpush2.xpose.msra.mxu0 0.0
    %3534 = vmatprep.subr.mxu0 0.0
    %3535 = vmatpush2.xpose.msra.mxu0 0.0
    %3536 = vmatprep.subr.mxu0 0.0
    %3537 = vmatpush2.xpose.msra.mxu0 0.0
    %3538 = vmatprep.subr.mxu0 0.0
    %3539 = vmatpush2.xpose.msra.mxu0 0.0
    %3540 = vmatprep.subr.mxu0 0.0
    %3541 = vmatpush2.xpose.msra.mxu0 0.0
    %3542 = vmatprep.subr.mxu0 0.0
    %3543 = vmatpush2.xpose.msra.mxu0 0.0
    %3544 = vmatprep.subr.mxu0 0.0
    %3545 = vmatpush2.xpose.msra.mxu0 0.0
    %3546 = vmatprep.subr.mxu0 0.0
    %3547 = vmatpush2.xpose.msra.mxu0 0.0
    %3548 = vmatprep.subr.mxu0 0.0
    %3549 = vmatpush2.xpose.msra.mxu0 0.0
    %3550 = vmatprep.subr.mxu0 0.0
    %3551 = vmatpush2.xpose.msra.mxu0 0.0
    %3552 = vmatprep.subr.mxu0 0.0
    %3553 = vmatpush2.xpose.msra.mxu0 0.0
    %3554 = vmatprep.mubr.f32.mxu0 0.0
    %3555 = vmatmul.mubr.f32.gmra.mxu0 %v3486
    %v3556 = vpop.f32.mrf.mxu0
    %v3557 = vadd.f32 0.0, %v3556
    %v3558 = vpop.f32.mrf.mxu0
    %3559 = vdwg.mxu0
    %3560 = vrot.lane.b32.xlu0 %v3475, 96
    %v3561 = vpop.permute.xlu0 %3560
    %v3562 = vsel %vm148, %v3475, 0
    %v3564 = vsel %vm148, %v3561, 0
    %3566 = vmatprep.subr.mxu0 0.0
    %3567 = vmatpush1.xpose.msra.mxu0 0.0
    %3568 = vmatprep.subr.mxu0 0.0
    %3569 = vmatpush1.xpose.msra.mxu0 0.0
    %3570 = vmatprep.subr.mxu0 0.0
    %3571 = vmatpush1.xpose.msra.mxu0 0.0
    %3572 = vmatprep.subr.mxu0 0.0
    %3573 = vmatpush1.xpose.msra.mxu0 0.0
    %3574 = vmatprep.subr.mxu0 0.0
    %3575 = vmatpush1.xpose.msra.mxu0 0.0
    %3576 = vmatprep.subr.mxu0 0.0
    %3577 = vmatpush1.xpose.msra.mxu0 0.0
    %3578 = vmatprep.subr.mxu0 0.0
    %3579 = vmatpush1.xpose.msra.mxu0 0.0
    %3580 = vmatprep.subr.mxu0 0.0
    %3581 = vmatpush1.xpose.msra.mxu0 0.0
    %3582 = vmatprep.subr.mxu0 0.0
    %3583 = vmatpush1.xpose.msra.mxu0 0.0
    %3584 = vmatprep.subr.mxu0 0.0
    %3585 = vmatpush1.xpose.msra.mxu0 0.0
    %3586 = vmatprep.subr.mxu0 0.0
    %3587 = vmatpush1.xpose.msra.mxu0 0.0
    %3588 = vmatprep.subr.mxu0 0.0
    %3589 = vmatpush1.xpose.msra.mxu0 0.0
    %3590 = vmatprep.subr.mxu0 0.0
    %3591 = vmatpush1.xpose.msra.mxu0 0.0
    %3592 = vmatprep.subr.mxu0 0.0
    %3593 = vmatpush1.xpose.msra.mxu0 0.0
    %3594 = vmatprep.subr.mxu0 0.0
    %3595 = vmatpush1.xpose.msra.mxu0 0.0
    %3596 = vmatprep.subr.mxu0 0.0
    %3597 = vmatpush1.xpose.msra.mxu0 %v3564
    %3598 = vmatprep.subr.mxu0 0.0
    %3599 = vmatpush2.xpose.msra.mxu0 0.0
    %3600 = vmatprep.subr.mxu0 0.0
    %3601 = vmatpush2.xpose.msra.mxu0 0.0
    %3602 = vmatprep.subr.mxu0 0.0
    %3603 = vmatpush2.xpose.msra.mxu0 0.0
    %3604 = vmatprep.subr.mxu0 0.0
    %3605 = vmatpush2.xpose.msra.mxu0 0.0
    %3606 = vmatprep.subr.mxu0 0.0
    %3607 = vmatpush2.xpose.msra.mxu0 0.0
    %3608 = vmatprep.subr.mxu0 0.0
    %3609 = vmatpush2.xpose.msra.mxu0 0.0
    %3610 = vmatprep.subr.mxu0 0.0
    %3611 = vmatpush2.xpose.msra.mxu0 0.0
    %3612 = vmatprep.subr.mxu0 0.0
    %3613 = vmatpush2.xpose.msra.mxu0 0.0
    %3614 = vmatprep.subr.mxu0 0.0
    %3615 = vmatpush2.xpose.msra.mxu0 0.0
    %3616 = vmatprep.subr.mxu0 0.0
    %3617 = vmatpush2.xpose.msra.mxu0 0.0
    %3618 = vmatprep.subr.mxu0 0.0
    %3619 = vmatpush2.xpose.msra.mxu0 0.0
    %3620 = vmatprep.subr.mxu0 0.0
    %3621 = vmatpush2.xpose.msra.mxu0 0.0
    %3622 = vmatprep.subr.mxu0 0.0
    %3623 = vmatpush2.xpose.msra.mxu0 0.0
    %3624 = vmatprep.subr.mxu0 0.0
    %3625 = vmatpush2.xpose.msra.mxu0 0.0
    %3626 = vmatprep.subr.mxu0 0.0
    %3627 = vmatpush2.xpose.msra.mxu0 0.0
    %3628 = vmatprep.subr.mxu0 0.0
    %3629 = vmatpush2.xpose.msra.mxu0 0.0
    %3630 = vmatprep.mubr.f32.mxu0 0.0
    %3631 = vmatmul.mubr.f32.gmra.mxu0 %v3562
    %v3632 = vpop.f32.mrf.mxu0
    %v3633 = vadd.f32 0.0, %v3632
    %v3634 = vpop.f32.mrf.mxu0
    %3635 = vdwg.mxu0
    %3636 = vrot.lane.b32.xlu0 %v3481, 96
    %v3637 = vpop.permute.xlu0 %3636
    %v3638 = vsel %vm148, %v3481, 0
    %v3640 = vsel %vm148, %v3637, 0
    %3642 = vmatprep.subr.mxu0 0.0
    %3643 = vmatpush1.xpose.msra.mxu0 0.0
    %3644 = vmatprep.subr.mxu0 0.0
    %3645 = vmatpush1.xpose.msra.mxu0 0.0
    %3646 = vmatprep.subr.mxu0 0.0
    %3647 = vmatpush1.xpose.msra.mxu0 0.0
    %3648 = vmatprep.subr.mxu0 0.0
    %3649 = vmatpush1.xpose.msra.mxu0 0.0
    %3650 = vmatprep.subr.mxu0 0.0
    %3651 = vmatpush1.xpose.msra.mxu0 0.0
    %3652 = vmatprep.subr.mxu0 0.0
    %3653 = vmatpush1.xpose.msra.mxu0 0.0
    %3654 = vmatprep.subr.mxu0 0.0
    %3655 = vmatpush1.xpose.msra.mxu0 0.0
    %3656 = vmatprep.subr.mxu0 0.0
    %3657 = vmatpush1.xpose.msra.mxu0 0.0
    %3658 = vmatprep.subr.mxu0 0.0
    %3659 = vmatpush1.xpose.msra.mxu0 0.0
    %3660 = vmatprep.subr.mxu0 0.0
    %3661 = vmatpush1.xpose.msra.mxu0 0.0
    %3662 = vmatprep.subr.mxu0 0.0
    %3663 = vmatpush1.xpose.msra.mxu0 0.0
    %3664 = vmatprep.subr.mxu0 0.0
    %3665 = vmatpush1.xpose.msra.mxu0 0.0
    %3666 = vmatprep.subr.mxu0 0.0
    %3667 = vmatpush1.xpose.msra.mxu0 0.0
    %3668 = vmatprep.subr.mxu0 0.0
    %3669 = vmatpush1.xpose.msra.mxu0 0.0
    %3670 = vmatprep.subr.mxu0 0.0
    %3671 = vmatpush1.xpose.msra.mxu0 0.0
    %3672 = vmatprep.subr.mxu0 0.0
    %3673 = vmatpush1.xpose.msra.mxu0 %v3640
    %3674 = vmatprep.subr.mxu0 0.0
    %3675 = vmatpush2.xpose.msra.mxu0 0.0
    %3676 = vmatprep.subr.mxu0 0.0
    %3677 = vmatpush2.xpose.msra.mxu0 0.0
    %3678 = vmatprep.subr.mxu0 0.0
    %3679 = vmatpush2.xpose.msra.mxu0 0.0
    %3680 = vmatprep.subr.mxu0 0.0
    %3681 = vmatpush2.xpose.msra.mxu0 0.0
    %3682 = vmatprep.subr.mxu0 0.0
    %3683 = vmatpush2.xpose.msra.mxu0 0.0
    %3684 = vmatprep.subr.mxu0 0.0
    %3685 = vmatpush2.xpose.msra.mxu0 0.0
    %3686 = vmatprep.subr.mxu0 0.0
    %3687 = vmatpush2.xpose.msra.mxu0 0.0
    %3688 = vmatprep.subr.mxu0 0.0
    %3689 = vmatpush2.xpose.msra.mxu0 0.0
    %3690 = vmatprep.subr.mxu0 0.0
    %3691 = vmatpush2.xpose.msra.mxu0 0.0
    %3692 = vmatprep.subr.mxu0 0.0
    %3693 = vmatpush2.xpose.msra.mxu0 0.0
    %3694 = vmatprep.subr.mxu0 0.0
    %3695 = vmatpush2.xpose.msra.mxu0 0.0
    %3696 = vmatprep.subr.mxu0 0.0
    %3697 = vmatpush2.xpose.msra.mxu0 0.0
    %3698 = vmatprep.subr.mxu0 0.0
    %3699 = vmatpush2.xpose.msra.mxu0 0.0
    %3700 = vmatprep.subr.mxu0 0.0
    %3701 = vmatpush2.xpose.msra.mxu0 0.0
    %3702 = vmatprep.subr.mxu0 0.0
    %3703 = vmatpush2.xpose.msra.mxu0 0.0
    %3704 = vmatprep.subr.mxu0 0.0
    %3705 = vmatpush2.xpose.msra.mxu0 0.0
    %3706 = vmatprep.mubr.f32.mxu0 0.0
    %3707 = vmatmul.mubr.f32.gmra.mxu0 %v3638
    %v3708 = vpop.f32.mrf.mxu0
    %v3709 = vadd.f32 0.0, %v3708
    %v3710 = vpop.f32.mrf.mxu0
    %3711 = vdwg.mxu0
    %3712 = vrot.lane.b32.xlu0 %v3483, 96
    %v3713 = vpop.permute.xlu0 %3712
    %v3714 = vsel %vm148, %v3483, 0
    %v3716 = vsel %vm148, %v3713, 0
    %3718 = vmatprep.subr.mxu0 0.0
    %3719 = vmatpush1.xpose.msra.mxu0 0.0
    %3720 = vmatprep.subr.mxu0 0.0
    %3721 = vmatpush1.xpose.msra.mxu0 0.0
    %3722 = vmatprep.subr.mxu0 0.0
    %3723 = vmatpush1.xpose.msra.mxu0 0.0
    %3724 = vmatprep.subr.mxu0 0.0
    %3725 = vmatpush1.xpose.msra.mxu0 0.0
    %3726 = vmatprep.subr.mxu0 0.0
    %3727 = vmatpush1.xpose.msra.mxu0 0.0
    %3728 = vmatprep.subr.mxu0 0.0
    %3729 = vmatpush1.xpose.msra.mxu0 0.0
    %3730 = vmatprep.subr.mxu0 0.0
    %3731 = vmatpush1.xpose.msra.mxu0 0.0
    %3732 = vmatprep.subr.mxu0 0.0
    %3733 = vmatpush1.xpose.msra.mxu0 0.0
    %3734 = vmatprep.subr.mxu0 0.0
    %3735 = vmatpush1.xpose.msra.mxu0 0.0
    %3736 = vmatprep.subr.mxu0 0.0
    %3737 = vmatpush1.xpose.msra.mxu0 0.0
    %3738 = vmatprep.subr.mxu0 0.0
    %3739 = vmatpush1.xpose.msra.mxu0 0.0
    %3740 = vmatprep.subr.mxu0 0.0
    %3741 = vmatpush1.xpose.msra.mxu0 0.0
    %3742 = vmatprep.subr.mxu0 0.0
    %3743 = vmatpush1.xpose.msra.mxu0 0.0
    %3744 = vmatprep.subr.mxu0 0.0
    %3745 = vmatpush1.xpose.msra.mxu0 0.0
    %3746 = vmatprep.subr.mxu0 0.0
    %3747 = vmatpush1.xpose.msra.mxu0 0.0
    %3748 = vmatprep.subr.mxu0 0.0
    %3749 = vmatpush1.xpose.msra.mxu0 %v3716
    %3750 = vmatprep.subr.mxu0 0.0
    %3751 = vmatpush2.xpose.msra.mxu0 0.0
    %3752 = vmatprep.subr.mxu0 0.0
    %3753 = vmatpush2.xpose.msra.mxu0 0.0
    %3754 = vmatprep.subr.mxu0 0.0
    %3755 = vmatpush2.xpose.msra.mxu0 0.0
    %3756 = vmatprep.subr.mxu0 0.0
    %3757 = vmatpush2.xpose.msra.mxu0 0.0
    %3758 = vmatprep.subr.mxu0 0.0
    %3759 = vmatpush2.xpose.msra.mxu0 0.0
    %3760 = vmatprep.subr.mxu0 0.0
    %3761 = vmatpush2.xpose.msra.mxu0 0.0
    %3762 = vmatprep.subr.mxu0 0.0
    %3763 = vmatpush2.xpose.msra.mxu0 0.0
    %3764 = vmatprep.subr.mxu0 0.0
    %3765 = vmatpush2.xpose.msra.mxu0 0.0
    %3766 = vmatprep.subr.mxu0 0.0
    %3767 = vmatpush2.xpose.msra.mxu0 0.0
    %3768 = vmatprep.subr.mxu0 0.0
    %3769 = vmatpush2.xpose.msra.mxu0 0.0
    %3770 = vmatprep.subr.mxu0 0.0
    %3771 = vmatpush2.xpose.msra.mxu0 0.0
    %3772 = vmatprep.subr.mxu0 0.0
    %3773 = vmatpush2.xpose.msra.mxu0 0.0
    %3774 = vmatprep.subr.mxu0 0.0
    %3775 = vmatpush2.xpose.msra.mxu0 0.0
    %3776 = vmatprep.subr.mxu0 0.0
    %3777 = vmatpush2.xpose.msra.mxu0 0.0
    %3778 = vmatprep.subr.mxu0 0.0
    %3779 = vmatpush2.xpose.msra.mxu0 0.0
    %3780 = vmatprep.subr.mxu0 0.0
    %3781 = vmatpush2.xpose.msra.mxu0 0.0
    %3782 = vmatprep.mubr.f32.mxu0 0.0
    %3783 = vmatmul.mubr.f32.gmra.mxu0 %v3714
    %v3784 = vpop.f32.mrf.mxu0
    %v3785 = vadd.f32 0.0, %v3784
    %v3786 = vpop.f32.mrf.mxu0
    %3787 = vdwg.mxu0
    %v3788 = vmul.f32 %v3557, 0.25
    %v3789 = vmul.f32 %v3633, 0.25
    %v3790 = vmul.f32 %v3709, 0.25
    %v3791 = vmul.f32 %v3785, 0.25
    %v3792 = vadd.f32 %v3788, %v64
    %v3793 = vadd.f32 %v3789, %v68
    %v3794 = vadd.f32 %v3790, %v64
    %v3795 = vadd.f32 %v3791, %v68
    %v3796 = vsel %vm459, %v3792, -inf
    %3797 = vmax.xlane.f32.xlu0 %v3796
    %v3798 = vpop.xlane.xlu0 %3797
    %v3799 = vsel %vm459, %v3793, -inf
    %3800 = vmax.xlane.f32.xlu0 %v3799
    %v3801 = vpop.xlane.xlu0 %3800
    %v3802 = vsel %vm459, %v3794, -inf
    %3803 = vmax.xlane.f32.xlu0 %v3802
    %v3804 = vpop.xlane.xlu0 %3803
    %v3805 = vsel %vm459, %v3795, -inf
    %3806 = vmax.xlane.f32.xlu0 %v3805
    %v3807 = vpop.xlane.xlu0 %3806
    %v3808 = vsub.f32 %v3792, %v3798
    %v3809 = vsub.f32 %v3793, %v3801
    %v3810 = vsub.f32 %v3794, %v3804
    %v3811 = vsub.f32 %v3795, %v3807
    %v3812 = vmul.f32 %v3808, 1.442695
    %v3813 = vpow.pop %v3812
    %v3814 = vmul.f32 %v3809, 1.442695
    %v3815 = vpow.pop %v3814
    %v3816 = vmul.f32 %v3810, 1.442695
    %v3817 = vpow.pop %v3816
    %v3818 = vmul.f32 %v3811, 1.442695
    %v3819 = vpow.pop %v3818
    %v3820 = vsel %vm459, %v3813, 0.0
    %3821 = vadd.xlane.f32.xlu0 %v3820
    %v3822 = vpop.xlane.xlu0 %3821
    %v3823 = vsel %vm459, %v3815, 0.0
    %3824 = vadd.xlane.f32.xlu0 %v3823
    %v3825 = vpop.xlane.xlu0 %3824
    %v3826 = vsel %vm459, %v3817, 0.0
    %3827 = vadd.xlane.f32.xlu0 %v3826
    %v3828 = vpop.xlane.xlu0 %3827
    %v3829 = vsel %vm459, %v3819, 0.0
    %3830 = vadd.xlane.f32.xlu0 %v3829
    %v3831 = vpop.xlane.xlu0 %3830
    %v3832 = vrcp.pop %v3822
    %v3833 = vrcp.pop %v3825
    %v3834 = vrcp.pop %v3828
    %v3835 = vrcp.pop %v3831
    %v3836 = vmul.f32 %v3813, %v3832
    %v3837 = vmul.f32 %v3815, %v3833
    %v3838 = vmul.f32 %v3817, %v3834
    %v3839 = vmul.f32 %v3819, %v3835
    %3840 = vrot.lane.b32.xlu0 %v3472, 64
    %v3841 = vpop.permute.xlu0 %3840
    %v3844 = vsel %vm459, %v3836, 0
    %3846 = vmatprep.subr.mxu0 0.0
    %3847 = vmatpush1.msra.mxu0 0.0
    %3848 = vmatprep.subr.mxu0 0.0
    %3849 = vmatpush1.msra.mxu0 0.0
    %3850 = vmatprep.subr.mxu0 0.0
    %3851 = vmatpush1.msra.mxu0 0.0
    %3852 = vmatprep.subr.mxu0 0.0
    %3853 = vmatpush1.msra.mxu0 0.0
    %3854 = vmatprep.subr.mxu0 0.0
    %3855 = vmatpush1.msra.mxu0 0.0
    %3856 = vmatprep.subr.mxu0 0.0
    %3857 = vmatpush1.msra.mxu0 0.0
    %3858 = vmatprep.subr.mxu0 0.0
    %3859 = vmatpush1.msra.mxu0 0.0
    %3860 = vmatprep.subr.mxu0 0.0
    %3861 = vmatpush1.msra.mxu0 0.0
    %3862 = vmatprep.subr.mxu0 0.0
    %3863 = vmatpush1.msra.mxu0 0.0
    %3864 = vmatprep.subr.mxu0 0.0
    %3865 = vmatpush1.msra.mxu0 0.0
    %3866 = vmatprep.subr.mxu0 0.0
    %3867 = vmatpush1.msra.mxu0 0.0
    %3868 = vmatprep.subr.mxu0 0.0
    %3869 = vmatpush1.msra.mxu0 0.0
    %3870 = vmatprep.subr.mxu0 0.0
    %3871 = vmatpush1.msra.mxu0 0.0
    %3872 = vmatprep.subr.mxu0 0.0
    %3873 = vmatpush1.msra.mxu0 0.0
    %3874 = vmatprep.subr.mxu0 0.0
    %3875 = vmatpush1.msra.mxu0 0.0
    %3876 = vmatprep.subr.mxu0 0.0
    %3877 = vmatpush1.msra.mxu0 %v3841
    %3878 = vmatprep.subr.mxu0 0.0
    %3879 = vmatpush2.msra.mxu0 0.0
    %3880 = vmatprep.subr.mxu0 0.0
    %3881 = vmatpush2.msra.mxu0 0.0
    %3882 = vmatprep.subr.mxu0 0.0
    %3883 = vmatpush2.msra.mxu0 0.0
    %3884 = vmatprep.subr.mxu0 0.0
    %3885 = vmatpush2.msra.mxu0 0.0
    %3886 = vmatprep.subr.mxu0 0.0
    %3887 = vmatpush2.msra.mxu0 0.0
    %3888 = vmatprep.subr.mxu0 0.0
    %3889 = vmatpush2.msra.mxu0 0.0
    %3890 = vmatprep.subr.mxu0 0.0
    %3891 = vmatpush2.msra.mxu0 0.0
    %3892 = vmatprep.subr.mxu0 0.0
    %3893 = vmatpush2.msra.mxu0 0.0
    %3894 = vmatprep.subr.mxu0 0.0
    %3895 = vmatpush2.msra.mxu0 0.0
    %3896 = vmatprep.subr.mxu0 0.0
    %3897 = vmatpush2.msra.mxu0 0.0
    %3898 = vmatprep.subr.mxu0 0.0
    %3899 = vmatpush2.msra.mxu0 0.0
    %3900 = vmatprep.subr.mxu0 0.0
    %3901 = vmatpush2.msra.mxu0 0.0
    %3902 = vmatprep.subr.mxu0 0.0
    %3903 = vmatpush2.msra.mxu0 0.0
    %3904 = vmatprep.subr.mxu0 0.0
    %3905 = vmatpush2.msra.mxu0 0.0
    %3906 = vmatprep.subr.mxu0 0.0
    %3907 = vmatpush2.msra.mxu0 0.0
    %3908 = vmatprep.subr.mxu0 0.0
    %3909 = vmatpush2.msra.mxu0 0.0
    %3910 = vmatprep.mubr.f32.mxu0 0.0
    %3911 = vmatmul.mubr.f32.gmra.mxu0 %v3844
    %v3912 = vpop.f32.mrf.mxu0
    %v3913 = vadd.f32 0.0, %v3912
    %v3914 = vpop.f32.mrf.mxu0
    %3915 = vdwg.mxu0
    %3916 = vrot.lane.b32.xlu0 %v3475, 64
    %v3917 = vpop.permute.xlu0 %3916
    %v3920 = vsel %vm459, %v3837, 0
    %3922 = vmatprep.subr.mxu0 0.0
    %3923 = vmatpush1.msra.mxu0 0.0
    %3924 = vmatprep.subr.mxu0 0.0
    %3925 = vmatpush1.msra.mxu0 0.0
    %3926 = vmatprep.subr.mxu0 0.0
    %3927 = vmatpush1.msra.mxu0 0.0
    %3928 = vmatprep.subr.mxu0 0.0
    %3929 = vmatpush1.msra.mxu0 0.0
    %3930 = vmatprep.subr.mxu0 0.0
    %3931 = vmatpush1.msra.mxu0 0.0
    %3932 = vmatprep.subr.mxu0 0.0
    %3933 = vmatpush1.msra.mxu0 0.0
    %3934 = vmatprep.subr.mxu0 0.0
    %3935 = vmatpush1.msra.mxu0 0.0
    %3936 = vmatprep.subr.mxu0 0.0
    %3937 = vmatpush1.msra.mxu0 0.0
    %3938 = vmatprep.subr.mxu0 0.0
    %3939 = vmatpush1.msra.mxu0 0.0
    %3940 = vmatprep.subr.mxu0 0.0
    %3941 = vmatpush1.msra.mxu0 0.0
    %3942 = vmatprep.subr.mxu0 0.0
    %3943 = vmatpush1.msra.mxu0 0.0
    %3944 = vmatprep.subr.mxu0 0.0
    %3945 = vmatpush1.msra.mxu0 0.0
    %3946 = vmatprep.subr.mxu0 0.0
    %3947 = vmatpush1.msra.mxu0 0.0
    %3948 = vmatprep.subr.mxu0 0.0
    %3949 = vmatpush1.msra.mxu0 0.0
    %3950 = vmatprep.subr.mxu0 0.0
    %3951 = vmatpush1.msra.mxu0 0.0
    %3952 = vmatprep.subr.mxu0 0.0
    %3953 = vmatpush1.msra.mxu0 %v3917
    %3954 = vmatprep.subr.mxu0 0.0
    %3955 = vmatpush2.msra.mxu0 0.0
    %3956 = vmatprep.subr.mxu0 0.0
    %3957 = vmatpush2.msra.mxu0 0.0
    %3958 = vmatprep.subr.mxu0 0.0
    %3959 = vmatpush2.msra.mxu0 0.0
    %3960 = vmatprep.subr.mxu0 0.0
    %3961 = vmatpush2.msra.mxu0 0.0
    %3962 = vmatprep.subr.mxu0 0.0
    %3963 = vmatpush2.msra.mxu0 0.0
    %3964 = vmatprep.subr.mxu0 0.0
    %3965 = vmatpush2.msra.mxu0 0.0
    %3966 = vmatprep.subr.mxu0 0.0
    %3967 = vmatpush2.msra.mxu0 0.0
    %3968 = vmatprep.subr.mxu0 0.0
    %3969 = vmatpush2.msra.mxu0 0.0
    %3970 = vmatprep.subr.mxu0 0.0
    %3971 = vmatpush2.msra.mxu0 0.0
    %3972 = vmatprep.subr.mxu0 0.0
    %3973 = vmatpush2.msra.mxu0 0.0
    %3974 = vmatprep.subr.mxu0 0.0
    %3975 = vmatpush2.msra.mxu0 0.0
    %3976 = vmatprep.subr.mxu0 0.0
    %3977 = vmatpush2.msra.mxu0 0.0
    %3978 = vmatprep.subr.mxu0 0.0
    %3979 = vmatpush2.msra.mxu0 0.0
    %3980 = vmatprep.subr.mxu0 0.0
    %3981 = vmatpush2.msra.mxu0 0.0
    %3982 = vmatprep.subr.mxu0 0.0
    %3983 = vmatpush2.msra.mxu0 0.0
    %3984 = vmatprep.subr.mxu0 0.0
    %3985 = vmatpush2.msra.mxu0 0.0
    %3986 = vmatprep.mubr.f32.mxu0 0.0
    %3987 = vmatmul.mubr.f32.gmra.mxu0 %v3920
    %v3988 = vpop.f32.mrf.mxu0
    %v3989 = vadd.f32 0.0, %v3988
    %v3990 = vpop.f32.mrf.mxu0
    %3991 = vdwg.mxu0
    %3992 = vrot.lane.b32.xlu0 %v3481, 64
    %v3993 = vpop.permute.xlu0 %3992
    %v3996 = vsel %vm459, %v3838, 0
    %3998 = vmatprep.subr.mxu0 0.0
    %3999 = vmatpush1.msra.mxu0 0.0
    %4000 = vmatprep.subr.mxu0 0.0
    %4001 = vmatpush1.msra.mxu0 0.0
    %4002 = vmatprep.subr.mxu0 0.0
    %4003 = vmatpush1.msra.mxu0 0.0
    %4004 = vmatprep.subr.mxu0 0.0
    %4005 = vmatpush1.msra.mxu0 0.0
    %4006 = vmatprep.subr.mxu0 0.0
    %4007 = vmatpush1.msra.mxu0 0.0
    %4008 = vmatprep.subr.mxu0 0.0
    %4009 = vmatpush1.msra.mxu0 0.0
    %4010 = vmatprep.subr.mxu0 0.0
    %4011 = vmatpush1.msra.mxu0 0.0
    %4012 = vmatprep.subr.mxu0 0.0
    %4013 = vmatpush1.msra.mxu0 0.0
    %4014 = vmatprep.subr.mxu0 0.0
    %4015 = vmatpush1.msra.mxu0 0.0
    %4016 = vmatprep.subr.mxu0 0.0
    %4017 = vmatpush1.msra.mxu0 0.0
    %4018 = vmatprep.subr.mxu0 0.0
    %4019 = vmatpush1.msra.mxu0 0.0
    %4020 = vmatprep.subr.mxu0 0.0
    %4021 = vmatpush1.msra.mxu0 0.0
    %4022 = vmatprep.subr.mxu0 0.0
    %4023 = vmatpush1.msra.mxu0 0.0
    %4024 = vmatprep.subr.mxu0 0.0
    %4025 = vmatpush1.msra.mxu0 0.0
    %4026 = vmatprep.subr.mxu0 0.0
    %4027 = vmatpush1.msra.mxu0 0.0
    %4028 = vmatprep.subr.mxu0 0.0
    %4029 = vmatpush1.msra.mxu0 %v3993
    %4030 = vmatprep.subr.mxu0 0.0
    %4031 = vmatpush2.msra.mxu0 0.0
    %4032 = vmatprep.subr.mxu0 0.0
    %4033 = vmatpush2.msra.mxu0 0.0
    %4034 = vmatprep.subr.mxu0 0.0
    %4035 = vmatpush2.msra.mxu0 0.0
    %4036 = vmatprep.subr.mxu0 0.0
    %4037 = vmatpush2.msra.mxu0 0.0
    %4038 = vmatprep.subr.mxu0 0.0
    %4039 = vmatpush2.msra.mxu0 0.0
    %4040 = vmatprep.subr.mxu0 0.0
    %4041 = vmatpush2.msra.mxu0 0.0
    %4042 = vmatprep.subr.mxu0 0.0
    %4043 = vmatpush2.msra.mxu0 0.0
    %4044 = vmatprep.subr.mxu0 0.0
    %4045 = vmatpush2.msra.mxu0 0.0
    %4046 = vmatprep.subr.mxu0 0.0
    %4047 = vmatpush2.msra.mxu0 0.0
    %4048 = vmatprep.subr.mxu0 0.0
    %4049 = vmatpush2.msra.mxu0 0.0
    %4050 = vmatprep.subr.mxu0 0.0
    %4051 = vmatpush2.msra.mxu0 0.0
    %4052 = vmatprep.subr.mxu0 0.0
    %4053 = vmatpush2.msra.mxu0 0.0
    %4054 = vmatprep.subr.mxu0 0.0
    %4055 = vmatpush2.msra.mxu0 0.0
    %4056 = vmatprep.subr.mxu0 0.0
    %4057 = vmatpush2.msra.mxu0 0.0
    %4058 = vmatprep.subr.mxu0 0.0
    %4059 = vmatpush2.msra.mxu0 0.0
    %4060 = vmatprep.subr.mxu0 0.0
    %4061 = vmatpush2.msra.mxu0 0.0
    %4062 = vmatprep.mubr.f32.mxu0 0.0
    %4063 = vmatmul.mubr.f32.gmra.mxu0 %v3996
    %v4064 = vpop.f32.mrf.mxu0
    %v4065 = vadd.f32 0.0, %v4064
    %v4066 = vpop.f32.mrf.mxu0
    %4067 = vdwg.mxu0
    %4068 = vrot.lane.b32.xlu0 %v3483, 64
    %v4069 = vpop.permute.xlu0 %4068
    %v4072 = vsel %vm459, %v3839, 0
    %4074 = vmatprep.subr.mxu0 0.0
    %4075 = vmatpush1.msra.mxu0 0.0
    %4076 = vmatprep.subr.mxu0 0.0
    %4077 = vmatpush1.msra.mxu0 0.0
    %4078 = vmatprep.subr.mxu0 0.0
    %4079 = vmatpush1.msra.mxu0 0.0
    %4080 = vmatprep.subr.mxu0 0.0
    %4081 = vmatpush1.msra.mxu0 0.0
    %4082 = vmatprep.subr.mxu0 0.0
    %4083 = vmatpush1.msra.mxu0 0.0
    %4084 = vmatprep.subr.mxu0 0.0
    %4085 = vmatpush1.msra.mxu0 0.0
    %4086 = vmatprep.subr.mxu0 0.0
    %4087 = vmatpush1.msra.mxu0 0.0
    %4088 = vmatprep.subr.mxu0 0.0
    %4089 = vmatpush1.msra.mxu0 0.0
    %4090 = vmatprep.subr.mxu0 0.0
    %4091 = vmatpush1.msra.mxu0 0.0
    %4092 = vmatprep.subr.mxu0 0.0
    %4093 = vmatpush1.msra.mxu0 0.0
    %4094 = vmatprep.subr.mxu0 0.0
    %4095 = vmatpush1.msra.mxu0 0.0
    %4096 = vmatprep.subr.mxu0 0.0
    %4097 = vmatpush1.msra.mxu0 0.0
    %4098 = vmatprep.subr.mxu0 0.0
    %4099 = vmatpush1.msra.mxu0 0.0
    %4100 = vmatprep.subr.mxu0 0.0
    %4101 = vmatpush1.msra.mxu0 0.0
    %4102 = vmatprep.subr.mxu0 0.0
    %4103 = vmatpush1.msra.mxu0 0.0
    %4104 = vmatprep.subr.mxu0 0.0
    %4105 = vmatpush1.msra.mxu0 %v4069
    %4106 = vmatprep.subr.mxu0 0.0
    %4107 = vmatpush2.msra.mxu0 0.0
    %4108 = vmatprep.subr.mxu0 0.0
    %4109 = vmatpush2.msra.mxu0 0.0
    %4110 = vmatprep.subr.mxu0 0.0
    %4111 = vmatpush2.msra.mxu0 0.0
    %4112 = vmatprep.subr.mxu0 0.0
    %4113 = vmatpush2.msra.mxu0 0.0
    %4114 = vmatprep.subr.mxu0 0.0
    %4115 = vmatpush2.msra.mxu0 0.0
    %4116 = vmatprep.subr.mxu0 0.0
    %4117 = vmatpush2.msra.mxu0 0.0
    %4118 = vmatprep.subr.mxu0 0.0
    %4119 = vmatpush2.msra.mxu0 0.0
    %4120 = vmatprep.subr.mxu0 0.0
    %4121 = vmatpush2.msra.mxu0 0.0
    %4122 = vmatprep.subr.mxu0 0.0
    %4123 = vmatpush2.msra.mxu0 0.0
    %4124 = vmatprep.subr.mxu0 0.0
    %4125 = vmatpush2.msra.mxu0 0.0
    %4126 = vmatprep.subr.mxu0 0.0
    %4127 = vmatpush2.msra.mxu0 0.0
    %4128 = vmatprep.subr.mxu0 0.0
    %4129 = vmatpush2.msra.mxu0 0.0
    %4130 = vmatprep.subr.mxu0 0.0
    %4131 = vmatpush2.msra.mxu0 0.0
    %4132 = vmatprep.subr.mxu0 0.0
    %4133 = vmatpush2.msra.mxu0 0.0
    %4134 = vmatprep.subr.mxu0 0.0
    %4135 = vmatpush2.msra.mxu0 0.0
    %4136 = vmatprep.subr.mxu0 0.0
    %4137 = vmatpush2.msra.mxu0 0.0
    %4138 = vmatprep.mubr.f32.mxu0 0.0
    %4139 = vmatmul.mubr.f32.gmra.mxu0 %v4072
    %v4140 = vpop.f32.mrf.mxu0
    %v4141 = vadd.f32 0.0, %v4140
    %v4142 = vpop.f32.mrf.mxu0
    %4143 = vdwg.mxu0
    %4146 = vrot.lane.b32.xlu0 %v4065, 16
    %v4147 = vpop.permute.xlu0 %4146
    %4148 = vrot.lane.b32.xlu0 %v4141, 16
    %v4149 = vpop.permute.xlu0 %4148
    %v4152 = vsel %vm148, %v3913, %v4147
    %v4153 = vsel %vm148, %v3989, %v4149
    %v4154 = vpack.c.bf16 %v4153, %v4152
    %s4155 = scalar_lea.vmem %s4, 48
    %v4156 = vld [vmem:[%s4155] sm:$0xf]
    %v4157 = vld [vmem:[%s4155 + $0x4] sm:$0xf]
    %v4158 = vld [vmem:[%s4155 + $0x8] sm:$0xf]
    %v4159 = vld [vmem:[%s4155 + $0xc] sm:$0xf]
    %s4160 = scalar_lea.vmem %s5, 3
    %v4161 = vld [vmem:[%s4160] sm:$0x1]
    %v4163 = vlaneseq
    %v4164 = vshrl.u32 %v4163, 7
    %v4165 = vsub.s32 0, %v4164
    %v4166 = vrot.slane %v4161, %v4165
    %v4172 = vunpack.c.l.b16 %v4156
    %v4173 = vunpack.c.l.b16 %v4157
    %v4174 = vunpack.c.l.b16 %v4158
    %v4175 = vunpack.c.l.b16 %v4159
    %v4176 = vpack.c.b16 %v4173, %v4172
    %v4177 = vpack.c.b16 %v4175, %v4174
    %v4181 = vsel %vm95, %v4154, 0
    %4183 = vmatprep.subr.bf16.mxu0 0
    %4184 = vmatpush1.bf16.msra.mxu0 0
    %4185 = vmatprep.subr.bf16.mxu0 0
    %4186 = vmatpush1.bf16.msra.mxu0 0
    %4187 = vmatprep.subr.bf16.mxu0 0
    %4188 = vmatpush1.bf16.msra.mxu0 0
    %4189 = vmatprep.subr.bf16.mxu0 0
    %4190 = vmatpush1.bf16.msra.mxu0 0
    %4191 = vmatprep.subr.bf16.mxu0 0
    %4192 = vmatpush1.bf16.msra.mxu0 0
    %4193 = vmatprep.subr.bf16.mxu0 0
    %4194 = vmatpush1.bf16.msra.mxu0 0
    %4195 = vmatprep.subr.bf16.mxu0 0
    %4196 = vmatpush1.bf16.msra.mxu0 %v4177
    %4197 = vmatprep.subr.bf16.mxu0 0
    %4198 = vmatpush1.bf16.msra.mxu0 %v4176
    %4199 = vmatprep.subr.bf16.mxu0 0
    %4200 = vmatpush2.bf16.msra.mxu0 0
    %4201 = vmatprep.subr.bf16.mxu0 0
    %4202 = vmatpush2.bf16.msra.mxu0 0
    %4203 = vmatprep.subr.bf16.mxu0 0
    %4204 = vmatpush2.bf16.msra.mxu0 0
    %4205 = vmatprep.subr.bf16.mxu0 0
    %4206 = vmatpush2.bf16.msra.mxu0 0
    %4207 = vmatprep.subr.bf16.mxu0 0
    %4208 = vmatpush2.bf16.msra.mxu0 0
    %4209 = vmatprep.subr.bf16.mxu0 0
    %4210 = vmatpush2.bf16.msra.mxu0 0
    %4211 = vmatprep.subr.bf16.mxu0 0
    %4212 = vmatpush2.bf16.msra.mxu0 0
    %4213 = vmatprep.subr.bf16.mxu0 0
    %4214 = vmatpush2.bf16.msra.mxu0 0
    %4215 = vmatprep.mubr.bf16.mxu0 0
    %4216 = vmatmul.mubr.bf16.gmra.mxu0 %v4181
    %v4217 = vpop.f32.mrf.mxu0
    %v4218 = vadd.f32 %v4166, %v4217
    %v4219 = vpop.f32.mrf.mxu0
    %v4220 = vpop.f32.mrf.mxu0
    %v4221 = vadd.f32 %v4166, %v4220
    %v4222 = vpop.f32.mrf.mxu0
    %4223 = vdwg.mxu0
    %v4224 = vadd.f32 %v4218, %v3406
    %v4225 = vadd.f32 %v4221, %v3407
    %s4226 = scalar_lea.vmem %s6, 3
    %v4227 = vld [vmem:[%s4226] sm:$0x1]
    %s4228 = scalar_lea.vmem %s7, 3
    %v4229 = vld [vmem:[%s4228] sm:$0x1]
    %v4230 = vsel %vm95, %v4224, 0.0
    %4231 = vadd.xlane.f32.xlu0 %v4230
    %v4232 = vpop.xlane.xlu0 %4231
    %v4233 = vsel %vm95, %v4225, 0.0
    %4234 = vadd.xlane.f32.xlu0 %v4233
    %v4235 = vpop.xlane.xlu0 %4234
    %v4236 = vmul.f32 %v4232, %v896
    %v4237 = vmul.f32 %v4235, %v896
    %v4238 = vsub.f32 %v4224, %v4236
    %v4239 = vsub.f32 %v4225, %v4237
    %v4240 = vmul.f32 %v4238, %v4238
    %v4241 = vmul.f32 %v4239, %v4239
    %v4242 = vsel %vm95, %v4240, 0.0
    %4243 = vadd.xlane.f32.xlu0 %v4242
    %v4244 = vpop.xlane.xlu0 %4243
    %v4245 = vsel %vm95, %v4241, 0.0
    %4246 = vadd.xlane.f32.xlu0 %v4245
    %v4247 = vpop.xlane.xlu0 %4246
    %v4248 = vmul.f32 %v4244, %v896
    %v4249 = vmul.f32 %v4247, %v896
    %v4250 = vadd.f32 %v4248, 1e-12
    %v4251 = vadd.f32 %v4249, 1e-12
    %v4252 = vrsqrt.pop %v4250
    %v4253 = vrsqrt.pop %v4251
    %v4254 = vmul.f32 %v4238, %v4252
    %v4255 = vmul.f32 %v4239, %v4253
    %v4257 = vlaneseq
    %v4258 = vshrl.u32 %v4257, 7
    %v4259 = vsub.s32 0, %v4258
    %v4260 = vrot.slane %v4227, %v4259
    %v4262 = vmul.f32 %v4254, %v4260
    %v4263 = vmul.f32 %v4255, %v4260
    %v4265 = vlaneseq
    %v4266 = vshrl.u32 %v4265, 7
    %v4267 = vsub.s32 0, %v4266
    %v4268 = vrot.slane %v4229, %v4267
    %v4270 = vadd.f32 %v4262, %v4268
    %v4271 = vadd.f32 %v4263, %v4268
    %v4272 = vpack.c.bf16 %v4271, %v4270
    %s4273 = scalar_lea.vmem %s8, 48
    %v4274 = vld [vmem:[%s4273] sm:$0xf]
    %v4275 = vld [vmem:[%s4273 + $0x4] sm:$0xf]
    %v4276 = vld [vmem:[%s4273 + $0x8] sm:$0xf]
    %v4277 = vld [vmem:[%s4273 + $0xc] sm:$0xf]
    %s4278 = scalar_lea.vmem %s9, 3
    %v4279 = vld [vmem:[%s4278] sm:$0x1]
    %v4281 = vlaneseq
    %v4282 = vshrl.u32 %v4281, 7
    %v4283 = vsub.s32 0, %v4282
    %v4284 = vrot.slane %v4279, %v4283
    %v4290 = vunpack.c.l.b16 %v4274
    %v4291 = vunpack.c.l.b16 %v4275
    %v4292 = vunpack.c.l.b16 %v4276
    %v4293 = vunpack.c.l.b16 %v4277
    %v4294 = vpack.c.b16 %v4291, %v4290
    %v4295 = vpack.c.b16 %v4293, %v4292
    %v4299 = vsel %vm95, %v4272, 0
    %4301 = vmatprep.subr.bf16.mxu0 0
    %4302 = vmatpush1.bf16.msra.mxu0 0
    %4303 = vmatprep.subr.bf16.mxu0 0
    %4304 = vmatpush1.bf16.msra.mxu0 0
    %4305 = vmatprep.subr.bf16.mxu0 0
    %4306 = vmatpush1.bf16.msra.mxu0 0
    %4307 = vmatprep.subr.bf16.mxu0 0
    %4308 = vmatpush1.bf16.msra.mxu0 0
    %4309 = vmatprep.subr.bf16.mxu0 0
    %4310 = vmatpush1.bf16.msra.mxu0 0
    %4311 = vmatprep.subr.bf16.mxu0 0
    %4312 = vmatpush1.bf16.msra.mxu0 0
    %4313 = vmatprep.subr.bf16.mxu0 0
    %4314 = vmatpush1.bf16.msra.mxu0 %v4295
    %4315 = vmatprep.subr.bf16.mxu0 0
    %4316 = vmatpush1.bf16.msra.mxu0 %v4294
    %4317 = vmatprep.subr.bf16.mxu0 0
    %4318 = vmatpush2.bf16.msra.mxu0 0
    %4319 = vmatprep.subr.bf16.mxu0 0
    %4320 = vmatpush2.bf16.msra.mxu0 0
    %4321 = vmatprep.subr.bf16.mxu0 0
    %4322 = vmatpush2.bf16.msra.mxu0 0
    %4323 = vmatprep.subr.bf16.mxu0 0
    %4324 = vmatpush2.bf16.msra.mxu0 0
    %4325 = vmatprep.subr.bf16.mxu0 0
    %4326 = vmatpush2.bf16.msra.mxu0 0
    %4327 = vmatprep.subr.bf16.mxu0 0
    %4328 = vmatpush2.bf16.msra.mxu0 0
    %4329 = vmatprep.subr.bf16.mxu0 0
    %4330 = vmatpush2.bf16.msra.mxu0 0
    %4331 = vmatprep.subr.bf16.mxu0 0
    %4332 = vmatpush2.bf16.msra.mxu0 0
    %4333 = vmatprep.mubr.bf16.mxu0 0
    %4334 = vmatmul.mubr.bf16.gmra.mxu0 %v4299
    %v4335 = vpop.f32.mrf.mxu0
    %v4336 = vadd.f32 %v4284, %v4335
    %v4337 = vpop.f32.mrf.mxu0
    %v4338 = vpop.f32.mrf.mxu0
    %v4339 = vadd.f32 %v4284, %v4338
    %v4340 = vpop.f32.mrf.mxu0
    %4341 = vdwg.mxu0
    %v4342 = vmul.f32 %v4336, %v4336
    %v4343 = vmul.f32 %v4339, %v4339
    %v4344 = vmul.f32 %v4336, %v4342
    %v4345 = vmul.f32 %v4339, %v4343
    %v4346 = vmul.f32 %v4344, 0.044715
    %v4347 = vmul.f32 %v4345, 0.044715
    %v4348 = vadd.f32 %v4336, %v4346
    %v4349 = vadd.f32 %v4339, %v4347
    %v4350 = vmul.f32 %v4348, 0.7978846
    %v4351 = vmul.f32 %v4349, 0.7978846
    %v4352 = vtanh.pop %v4350
    %v4353 = vtanh.pop %v4351
    %v4354 = vadd.f32 %v4352, 1.0
    %v4355 = vadd.f32 %v4353, 1.0
    %v4356 = vmul.f32 %v4354, 0.5
    %v4357 = vmul.f32 %v4355, 0.5
    %v4358 = vmul.f32 %v4336, %v4356
    %v4359 = vmul.f32 %v4339, %v4357
    %v4360 = vpack.c.bf16 %v4359, %v4358
    %s4361 = scalar_lea.vmem %s10, 192
    %v4362 = vld [vmem:[%s4361] sm:$0xf]
    %v4363 = vld [vmem:[%s4361 + $0x4] sm:$0xf]
    %v4364 = vld [vmem:[%s4361 + $0x8] sm:$0xf]
    %v4365 = vld [vmem:[%s4361 + $0xc] sm:$0xf]
    %v4366 = vld [vmem:[%s4361 + $0x10] sm:$0xf]
    %v4367 = vld [vmem:[%s4361 + $0x14] sm:$0xf]
    %v4368 = vld [vmem:[%s4361 + $0x18] sm:$0xf]
    %v4369 = vld [vmem:[%s4361 + $0x1c] sm:$0xf]
    %v4370 = vld [vmem:[%s4361 + $0x20] sm:$0xf]
    %v4371 = vld [vmem:[%s4361 + $0x24] sm:$0xf]
    %v4372 = vld [vmem:[%s4361 + $0x28] sm:$0xf]
    %v4373 = vld [vmem:[%s4361 + $0x2c] sm:$0xf]
    %v4374 = vld [vmem:[%s4361 + $0x30] sm:$0xf]
    %v4375 = vld [vmem:[%s4361 + $0x34] sm:$0xf]
    %v4376 = vld [vmem:[%s4361 + $0x38] sm:$0xf]
    %v4377 = vld [vmem:[%s4361 + $0x3c] sm:$0xf]
    %s4378 = scalar_lea.vmem %s11, 3
    %v4379 = vld [vmem:[%s4378] sm:$0x1]
    %v4381 = vlaneseq
    %v4382 = vshrl.u32 %v4381, 7
    %v4383 = vsub.s32 0, %v4382
    %v4384 = vrot.slane %v4379, %v4383
    %v4402 = vunpack.c.l.b16 %v4362
    %v4403 = vunpack.c.l.b16 %v4363
    %v4404 = vunpack.c.l.b16 %v4364
    %v4405 = vunpack.c.l.b16 %v4365
    %v4406 = vunpack.c.l.b16 %v4366
    %v4407 = vunpack.c.l.b16 %v4367
    %v4408 = vunpack.c.l.b16 %v4368
    %v4409 = vunpack.c.l.b16 %v4369
    %v4410 = vunpack.c.l.b16 %v4370
    %v4411 = vunpack.c.l.b16 %v4371
    %v4412 = vunpack.c.l.b16 %v4372
    %v4413 = vunpack.c.l.b16 %v4373
    %v4414 = vunpack.c.l.b16 %v4374
    %v4415 = vunpack.c.l.b16 %v4375
    %v4416 = vunpack.c.l.b16 %v4376
    %v4417 = vunpack.c.l.b16 %v4377
    %v4418 = vpack.c.b16 %v4403, %v4402
    %v4419 = vpack.c.b16 %v4405, %v4404
    %v4420 = vpack.c.b16 %v4407, %v4406
    %v4421 = vpack.c.b16 %v4409, %v4408
    %v4422 = vpack.c.b16 %v4411, %v4410
    %v4423 = vpack.c.b16 %v4413, %v4412
    %v4424 = vpack.c.b16 %v4415, %v4414
    %v4425 = vpack.c.b16 %v4417, %v4416
    %4434 = vmatprep.subr.bf16.mxu0 0
    %4435 = vmatpush1.bf16.msra.mxu0 %v4425
    %4436 = vmatprep.subr.bf16.mxu0 0
    %4437 = vmatpush1.bf16.msra.mxu0 %v4424
    %4438 = vmatprep.subr.bf16.mxu0 0
    %4439 = vmatpush1.bf16.msra.mxu0 %v4423
    %4440 = vmatprep.subr.bf16.mxu0 0
    %4441 = vmatpush1.bf16.msra.mxu0 %v4422
    %4442 = vmatprep.subr.bf16.mxu0 0
    %4443 = vmatpush1.bf16.msra.mxu0 %v4421
    %4444 = vmatprep.subr.bf16.mxu0 0
    %4445 = vmatpush1.bf16.msra.mxu0 %v4420
    %4446 = vmatprep.subr.bf16.mxu0 0
    %4447 = vmatpush1.bf16.msra.mxu0 %v4419
    %4448 = vmatprep.subr.bf16.mxu0 0
    %4449 = vmatpush1.bf16.msra.mxu0 %v4418
    %4450 = vmatprep.subr.bf16.mxu0 0
    %4451 = vmatpush2.bf16.msra.mxu0 0
    %4452 = vmatprep.subr.bf16.mxu0 0
    %4453 = vmatpush2.bf16.msra.mxu0 0
    %4454 = vmatprep.subr.bf16.mxu0 0
    %4455 = vmatpush2.bf16.msra.mxu0 0
    %4456 = vmatprep.subr.bf16.mxu0 0
    %4457 = vmatpush2.bf16.msra.mxu0 0
    %4458 = vmatprep.subr.bf16.mxu0 0
    %4459 = vmatpush2.bf16.msra.mxu0 0
    %4460 = vmatprep.subr.bf16.mxu0 0
    %4461 = vmatpush2.bf16.msra.mxu0 0
    %4462 = vmatprep.subr.bf16.mxu0 0
    %4463 = vmatpush2.bf16.msra.mxu0 0
    %4464 = vmatprep.subr.bf16.mxu0 0
    %4465 = vmatpush2.bf16.msra.mxu0 0
    %4466 = vmatprep.mubr.bf16.mxu0 0
    %4467 = vmatmul.mubr.bf16.gmra.mxu0 %v4360
    %v4468 = vpop.f32.mrf.mxu0
    %v4469 = vadd.f32 %v4384, %v4468
    %v4470 = vpop.f32.mrf.mxu0
    %v4471 = vpop.f32.mrf.mxu0
    %v4472 = vadd.f32 %v4384, %v4471
    %v4473 = vpop.f32.mrf.mxu0
    %4474 = vdwg.mxu0
    %v4475 = vadd.f32 %v4469, %v4270
    %v4476 = vadd.f32 %v4472, %v4271
    %s4477 = scalar_lea.vmem %s12, 3
    %v4478 = vld [vmem:[%s4477] sm:$0x1]
    %s4479 = scalar_lea.vmem %s13, 3
    %v4480 = vld [vmem:[%s4479] sm:$0x1]
    %v4481 = vsel %vm95, %v4475, 0.0
    %4482 = vadd.xlane.f32.xlu0 %v4481
    %v4483 = vpop.xlane.xlu0 %4482
    %v4484 = vsel %vm95, %v4476, 0.0
    %4485 = vadd.xlane.f32.xlu0 %v4484
    %v4486 = vpop.xlane.xlu0 %4485
    %v4487 = vmul.f32 %v4483, %v896
    %v4488 = vmul.f32 %v4486, %v896
    %v4489 = vsub.f32 %v4475, %v4487
    %v4490 = vsub.f32 %v4476, %v4488
    %v4491 = vmul.f32 %v4489, %v4489
    %v4492 = vmul.f32 %v4490, %v4490
    %v4493 = vsel %vm95, %v4491, 0.0
    %4494 = vadd.xlane.f32.xlu0 %v4493
    %v4495 = vpop.xlane.xlu0 %4494
    %v4496 = vsel %vm95, %v4492, 0.0
    %4497 = vadd.xlane.f32.xlu0 %v4496
    %v4498 = vpop.xlane.xlu0 %4497
    %v4499 = vmul.f32 %v4495, %v896
    %v4500 = vmul.f32 %v4498, %v896
    %v4501 = vadd.f32 %v4499, 1e-12
    %v4502 = vadd.f32 %v4500, 1e-12
    %v4503 = vrsqrt.pop %v4501
    %v4504 = vrsqrt.pop %v4502
    %v4505 = vmul.f32 %v4489, %v4503
    %v4506 = vmul.f32 %v4490, %v4504
    %v4508 = vlaneseq
    %v4509 = vshrl.u32 %v4508, 7
    %v4510 = vsub.s32 0, %v4509
    %v4511 = vrot.slane %v4478, %v4510
    %v4513 = vmul.f32 %v4505, %v4511
    %v4514 = vmul.f32 %v4506, %v4511
    %v4516 = vlaneseq
    %v4517 = vshrl.u32 %v4516, 7
    %v4518 = vsub.s32 0, %v4517
    %v4519 = vrot.slane %v4480, %v4518
    %v4521 = vadd.f32 %v4513, %v4519
    %v4522 = vadd.f32 %v4514, %v4519
    %v4525 = vrot.slane %v4522, 7
    %vm4526 = vcmask 1041409
    %v4527 = vsel %vm4526, %v4525, %v4521
    %v4531 = vrot.slane %v3407, 7
    %v4532 = vsel %vm4526, %v4531, %v3406
    %4533 = vrot.lane.b32.xlu0 %v4532, 32
    %v4534 = vpop.permute.xlu0 %4533
    %v4538 = vrot.slane %v2292, 7
    %v4539 = vsel %vm4526, %v4538, %v2291
    %4540 = vrot.lane.b32.xlu0 %v4539, 64
    %v4541 = vpop.permute.xlu0 %4540
    %v4545 = vrot.slane %v1177, 7
    %v4546 = vsel %vm4526, %v4545, %v1176
    %4547 = vrot.lane.b32.xlu0 %v4546, 96
    %v4548 = vpop.permute.xlu0 %4547
    %v4550 = vsel %vm95, %v4527, %v4534
    %vm4551 = vcmask 523264
    %v4552 = vsel %vm4551, %v4550, %v4541
    %vm4553 = vcmask 785408
    %v4554 = vsel %vm4553, %v4552, %v4548
    %v4555 = vpack.c.bf16 %v4554, %v4554
    %v4556 = vld [vmem:[%s14] sm:$0xf]
    %v4557 = vld [vmem:[%s14 + $0x4] sm:$0xf]
    %v4558 = vld [vmem:[%s14 + $0x8] sm:$0xf]
    %v4559 = vld [vmem:[%s14 + $0xc] sm:$0xf]
    %v4560 = vld [vmem:[%s14 + $0x10] sm:$0xf]
    %v4561 = vld [vmem:[%s14 + $0x14] sm:$0xf]
    %v4562 = vld [vmem:[%s14 + $0x18] sm:$0xf]
    %v4563 = vld [vmem:[%s14 + $0x1c] sm:$0xf]
    %v4564 = vld [vmem:[%s14 + $0x20] sm:$0xf]
    %v4565 = vld [vmem:[%s14 + $0x24] sm:$0xf]
    %v4566 = vld [vmem:[%s14 + $0x28] sm:$0xf]
    %v4567 = vld [vmem:[%s14 + $0x2c] sm:$0xf]
    %v4568 = vld [vmem:[%s14 + $0x30] sm:$0xf]
    %v4569 = vld [vmem:[%s14 + $0x34] sm:$0xf]
    %v4570 = vld [vmem:[%s14 + $0x38] sm:$0xf]
    %v4571 = vld [vmem:[%s14 + $0x3c] sm:$0xf]
    %v4572 = vld [vmem:[%s15] sm:$0x1]
    %v4574 = vlaneseq
    %v4575 = vshrl.u32 %v4574, 7
    %v4576 = vsub.s32 0, %v4575
    %v4577 = vrot.slane %v4572, %v4576
    %v4595 = vunpack.c.l.b16 %v4556
    %v4596 = vunpack.c.l.b16 %v4557
    %v4597 = vunpack.c.l.b16 %v4558
    %v4598 = vunpack.c.l.b16 %v4559
    %v4599 = vunpack.c.l.b16 %v4560
    %v4600 = vunpack.c.l.b16 %v4561
    %v4601 = vunpack.c.l.b16 %v4562
    %v4602 = vunpack.c.l.b16 %v4563
    %v4603 = vunpack.c.l.b16 %v4564
    %v4604 = vunpack.c.l.b16 %v4565
    %v4605 = vunpack.c.l.b16 %v4566
    %v4606 = vunpack.c.l.b16 %v4567
    %v4607 = vunpack.c.l.b16 %v4568
    %v4608 = vunpack.c.l.b16 %v4569
    %v4609 = vunpack.c.l.b16 %v4570
    %v4610 = vunpack.c.l.b16 %v4571
    %v4611 = vpack.c.b16 %v4596, %v4595
    %v4612 = vpack.c.b16 %v4598, %v4597
    %v4613 = vpack.c.b16 %v4600, %v4599
    %v4614 = vpack.c.b16 %v4602, %v4601
    %v4615 = vpack.c.b16 %v4604, %v4603
    %v4616 = vpack.c.b16 %v4606, %v4605
    %v4617 = vpack.c.b16 %v4608, %v4607
    %v4618 = vpack.c.b16 %v4610, %v4609
    %4627 = vmatprep.subr.bf16.mxu0 0
    %4628 = vmatpush1.bf16.msra.mxu0 %v4618
    %4629 = vmatprep.subr.bf16.mxu0 0
    %4630 = vmatpush1.bf16.msra.mxu0 %v4617
    %4631 = vmatprep.subr.bf16.mxu0 0
    %4632 = vmatpush1.bf16.msra.mxu0 %v4616
    %4633 = vmatprep.subr.bf16.mxu0 0
    %4634 = vmatpush1.bf16.msra.mxu0 %v4615
    %4635 = vmatprep.subr.bf16.mxu0 0
    %4636 = vmatpush1.bf16.msra.mxu0 %v4614
    %4637 = vmatprep.subr.bf16.mxu0 0
    %4638 = vmatpush1.bf16.msra.mxu0 %v4613
    %4639 = vmatprep.subr.bf16.mxu0 0
    %4640 = vmatpush1.bf16.msra.mxu0 %v4612
    %4641 = vmatprep.subr.bf16.mxu0 0
    %4642 = vmatpush1.bf16.msra.mxu0 %v4611
    %4643 = vmatprep.subr.bf16.mxu0 0
    %4644 = vmatpush2.bf16.msra.mxu0 0
    %4645 = vmatprep.subr.bf16.mxu0 0
    %4646 = vmatpush2.bf16.msra.mxu0 0
    %4647 = vmatprep.subr.bf16.mxu0 0
    %4648 = vmatpush2.bf16.msra.mxu0 0
    %4649 = vmatprep.subr.bf16.mxu0 0
    %4650 = vmatpush2.bf16.msra.mxu0 0
    %4651 = vmatprep.subr.bf16.mxu0 0
    %4652 = vmatpush2.bf16.msra.mxu0 0
    %4653 = vmatprep.subr.bf16.mxu0 0
    %4654 = vmatpush2.bf16.msra.mxu0 0
    %4655 = vmatprep.subr.bf16.mxu0 0
    %4656 = vmatpush2.bf16.msra.mxu0 0
    %4657 = vmatprep.subr.bf16.mxu0 0
    %4658 = vmatpush2.bf16.msra.mxu0 0
    %4659 = vmatprep.mubr.bf16.mxu0 0
    %4660 = vmatmul.mubr.bf16.gmra.mxu0 %v4555
    %v4661 = vpop.f32.mrf.mxu0
    %v4662 = vadd.f32 %v4577, %v4661
    %v4663 = vpop.f32.mrf.mxu0
    %v4664 = vpop.f32.mrf.mxu0
    %v4665 = vpop.f32.mrf.mxu0
    %4666 = vdwg.mxu0
    %v4667 = vlaneseq
    %v4668 = vand.u32 %v4667, 127
    %vm4669 = vcmp.lt.s32.totalorder %v4668, 6
    %v4670 = vxor.u32 %v4662, 2147483648
    %v4671 = vmul.f32 %v4670, 1.442695
    %v4672 = vpow.pop %v4671
    %v4673 = vadd.f32 %v4672, 1.0
    %v4674 = vrcp.pop %v4673
    %v4675 = vmul.f32 1.0, %v4674
    %v4676 = vsel %vm4669, %v4675, %v4662
    %4677 = vst [vmem:[#allocation2] sm:$0x3] %v4676
    // Predicated region
    $region66: #{tpu_custom_call.1} parent=1 // pred_check
      _
    $region67: #{tpu_custom_call.1} parent=1 // pred_check_branch
      %4679 = sbr.rel (0) target = $region69
    $region68: #{tpu_custom_call.1} parent=1 // pred_region
      %s4681 = ssub.s32 32, 32
      %4682 = vsyncadd [#allocation3], %s4681
      %s4684 = sshll.u32 [#allocation2], 4
      %s4685 = int_to_ptr.vmem [resolvable:$true] %s4684
      %4687 = dma.vmem_to_hbm [thread:$0]  %s4685, 32, %s16, [#allocation3]
    $region69: #{tpu_custom_call.1} parent=1 // pred_fallthru
      _
    // Predicated region
    $region70: #{tpu_custom_call.1} parent=1 // pred_check
      _
    $region71: #{tpu_custom_call.1} parent=1 // pred_check_branch
      %4689 = sbr.rel (0) target = $region73
    $region72: #{tpu_custom_call.1} parent=1 // pred_region
      %4690 = dma.done [#allocation3], 32
    $region73: #{tpu_custom_call.1} parent=1 // pred_fallthru
      _
    %4691 = vsyncpa [#allocation3], 1

</llo_original>
